<compile_context>
chip_gen: v7x
topology: tpu7x:2x2x1
jax: 0.10.0
libtpu: 0.0.40
codegen_flags: <defaults>
</compile_context>

<pallas_src>
import math
import jax
import jax.numpy as jnp
from jax.experimental import pallas as pl
from jax.experimental.pallas import tpu as pltpu

# ----------------------------- small config ---------------------------------
H = 32            # hidden_size
EXPAND = 2
E = EXPAND * H    # expanded_size = 64
N = 8             # state_size
R = 4             # time_step_rank
K = 4             # conv_kernel
L = 8             # seq_len
B = 2             # batch
BL = B * L        # 16 (batch folded into matmul M dim)
BN = B * N        # 16 (batch stacked into scan state)
NUM_LAYERS = 2    # num_hidden_layers (small)
F = 2             # fractal_count_per_layer (small)
VOCAB = 256
MAX_POS = 64
EPS = 1e-5

_FRACTAL_DIMS = [1.2 + (2.4 - 1.2) * i / max(F - 1, 1) for i in range(F)]
FRAC_SCALES = tuple(1.0 / d for d in _FRACTAL_DIMS)

# ----------------------------- slab layouts ----------------------------------
# bf16 weight slab, per layer (W_ROWS, 128):
W_INPROJ = 0        # rows   0: 32, lanes 0:128  -> in_proj weight (H, 2E)
W_DBC = 32          # rows  32: 96, lanes 0:128  -> [delta | B | C] (E, 128)
W_OUT = 96          # rows  96:160, lanes 0:32   -> out_proj weight (E, H)
W_FRAC = 96         # rows  96:160, lanes 64:96  -> fractal weights (F*H, H)
W_ROWS = 160

# f32 vector/param slab, per layer (V_ROWS, 128):
V_LN_W, V_LN_B = 0, 1          # (1, H) each
V_INPROJ_B = 2                 # (1, 2E)
V_DBC_B = 3                    # (1, 128) [delta_b | B_b | C_b]
V_CONV_B = 4                   # (1, E)
V_D = 5                        # (1, E)
V_OUT_B = 6                    # (1, H)
V_CONV_W = 8                   # rows  8:12, lanes 0:E  (K, E)
V_A = 12                       # rows 12:20, lanes 0:E  (N, E) = -exp(A_log)
V_FR_LN_W = 20                 # rows 20:22, lanes 0:H
V_FR_LN_B = 22                 # rows 22:24, lanes 0:H
V_FR_B = 24                    # rows 24:26, lanes 0:H
V_ROWS = 32


# ----------------------------- in-kernel helpers -----------------------------
def _sigmoid(x):
    return 1.0 / (1.0 + jnp.exp(-x))


def _softplus(x):
    # numerically stable: max(x, 0) + log(1 + exp(-|x|))
    return jnp.maximum(x, 0.0) + jnp.log(1.0 + jnp.exp(-jnp.abs(x)))


def _layernorm(x, w, b):
    mu = jnp.mean(x, axis=-1, keepdims=True)
    var = jnp.mean((x - mu) ** 2, axis=-1, keepdims=True)
    return (x - mu) * jax.lax.rsqrt(var + EPS) * w + b


def _mm(a_f32, w_bf16):
    # activations cast to bf16 once at the call, weights already bf16 in slab.
    return jnp.dot(a_f32.astype(jnp.bfloat16), w_bf16,
                   preferred_element_type=jnp.float32)


# ----------------------------- fused forward kernel --------------------------
def fused_forward_kernel(hs_ref, mask_ref, shift_ref, wslab_ref, vslab_ref,
                         fln_ref, out_ref, da_ref, dxb_ref, hist_ref):
    x = hs_ref[...]                       # (BL, H) f32
    mask = mask_ref[...]                  # (BL, 1) f32
    shift_bf = shift_ref[...]             # (K*BL, BL) bf16 (precomputed)

    for layer in range(NUM_LAYERS):
        vs = vslab_ref[layer]             # (V_ROWS, 128) f32, value-sliced below

        residual = x
        hs = _layernorm(x, vs[V_LN_W:V_LN_W + 1, 0:H],
                        vs[V_LN_B:V_LN_B + 1, 0:H])

        # --- in_proj: ONE 128-lane-wide MXU call, split xs / gate after ------
        xg = _mm(hs, wslab_ref[layer, W_INPROJ:W_INPROJ + H, :]) \
            + vs[V_INPROJ_B:V_INPROJ_B + 1, 0:2 * E]              # (BL, 2E)
        xs = xg[:, 0:E]                                            # (BL, E)
        gate = xg[:, E:2 * E]                                      # (BL, E)

        # --- depthwise causal conv1d: ONE stacked shift matmul + K VPU FMAs --
        shifted = jnp.dot(shift_bf, xs.astype(jnp.bfloat16),
                          preferred_element_type=jnp.float32)      # (K*BL, E)
        conv = vs[V_CONV_B:V_CONV_B + 1, 0:E]
        for j in range(K):
            tap = vs[V_CONV_W + (K - 1 - j):V_CONV_W + (K - j), 0:E]  # (1, E)
            conv = conv + tap * shifted[j * BL:(j + 1) * BL, :]
        xs = conv

        # --- SelectiveScanKernel: swish + mask -------------------------------
        xs = xs * _sigmoid(xs)
        xs = xs * mask

        # --- fused delta/B/C projection: ONE (E,128)-wide MXU call -----------
        dbc = _mm(xs, wslab_ref[layer, W_DBC:W_DBC + E, :]) \
            + vs[V_DBC_B:V_DBC_B + 1, :]                           # (BL, 128)
        delta = _softplus(dbc[:, 0:E])                             # (BL, E)
        Bm = dbc[:, E:E + N]                                       # (BL, N)
        Cm = dbc[:, E + N:E + 2 * N]                               # (BL, N)
        A = vs[V_A:V_A + N, 0:E]                                   # (N, E)

        # --- hoisted scan tensors (exp OFF the serial chain) -----------------
        dA = jnp.exp(delta[:, None, :] * A[None, :, :])            # (BL, N, E)
        dxB = (delta * xs)[:, None, :] * Bm[:, :, None]            # (BL, N, E)
        # time-major, both batch elements stacked along the state axis:
        # scratch[t, b*N + n, :]  <-  tensor[b*L + t, n, :]
        da_ref[:, 0:N, :] = dA[0:L]
        da_ref[:, N:2 * N, :] = dA[L:BL]
        dxb_ref[:, 0:N, :] = dxB[0:L]
        dxb_ref[:, N:2 * N, :] = dxB[L:BL]

        # --- L-step serial recurrence: one (16,64) VPU FMA per step ----------
        h = jnp.zeros((BN, E), jnp.float32)
        for t in range(L):
            h = da_ref[t] * h + dxb_ref[t]
            hist_ref[t] = h

        # --- deferred C-readout + D skip (batched, off the serial chain) -----
        hist = hist_ref[...]                                       # (L, BN, E)
        H_bt = jnp.concatenate([hist[:, 0:N, :], hist[:, N:2 * N, :]],
                               axis=0)                             # (BL, N, E)
        ys = xs * vs[V_D:V_D + 1, 0:E] \
            + jnp.sum(Cm[:, :, None] * H_bt, axis=1)               # (BL, E)

        # --- gating + out_proj + residual ------------------------------------
        ys = _sigmoid(gate) * ys
        x = _mm(ys, wslab_ref[layer, W_OUT:W_OUT + E, 0:H]) \
            + vs[V_OUT_B:V_OUT_B + 1, 0:H] + residual              # (BL, H)

        # --- FractalLayer: residual stack of fractal transforms --------------
        for i in range(F):
            z = _layernorm(x, vs[V_FR_LN_W + i:V_FR_LN_W + i + 1, 0:H],
                           vs[V_FR_LN_B + i:V_FR_LN_B + i + 1, 0:H])
            fw = wslab_ref[layer, W_FRAC + i * H:W_FRAC + (i + 1) * H, 64:96]
            z = jnp.tanh(_mm(z, fw) + vs[V_FR_B + i:V_FR_B + i + 1, 0:H])
            x = x + FRAC_SCALES[i] * z

    # Final layernorm fused into the same kernel (epilogue).
    out_ref[...] = _layernorm(x, fln_ref[0:1, :], fln_ref[1:2, :])


def fused_forward_call(hs, mask, shiftmat, wslab, vslab, fln):
    return pl.pallas_call(
        fused_forward_kernel,
        out_shape=jax.ShapeDtypeStruct((BL, H), jnp.float32),
        grid=(1,),
        in_specs=[
            pl.BlockSpec((BL, H), lambda i: (0, 0)),
            pl.BlockSpec((BL, 1), lambda i: (0, 0)),
            pl.BlockSpec((K * BL, BL), lambda i: (0, 0)),
            pl.BlockSpec((NUM_LAYERS, W_ROWS, 128), lambda i: (0, 0, 0)),
            pl.BlockSpec((NUM_LAYERS, V_ROWS, 128), lambda i: (0, 0, 0)),
            pl.BlockSpec((2, H), lambda i: (0, 0)),
        ],
        out_specs=pl.BlockSpec((BL, H), lambda i: (0, 0)),
        scratch_shapes=[
            pltpu.VMEM((L, BN, E), jnp.float32),   # dA   (time-major, stacked)
            pltpu.VMEM((L, BN, E), jnp.float32),   # dxB
            pltpu.VMEM((L, BN, E), jnp.float32),   # state history
        ],
        compiler_params=pltpu.CompilerParams(
            dimension_semantics=("arbitrary",)),
    )(hs, mask, shiftmat, wslab, vslab, fln)


# ----------------------------- parameter init --------------------------------
def _nrm(key, shape, std):
    return jax.random.normal(key, shape, jnp.float32) * std


def init_layer_params(key):
    ks = jax.random.split(key, 6)
    kaiming = math.sqrt(1.0 / 3.0)   # gain for leaky_relu(a=sqrt(5))
    return {
        "ln_w": jnp.ones((1, H), jnp.float32),
        "ln_b": jnp.zeros((1, H), jnp.float32),
        "inproj_w": _nrm(ks[0], (H, 2 * E), kaiming / math.sqrt(H)),
        "inproj_b": jnp.zeros((1, 2 * E), jnp.float32),
        "conv_w": _nrm(ks[1], (K, E), 1.0 / math.sqrt(K)),
        "conv_b": jnp.zeros((1, E), jnp.float32),
        "xproj_w": _nrm(ks[2], (E, R + 2 * N), kaiming / math.sqrt(E)),
        "xproj_b": jnp.zeros((1, R + 2 * N), jnp.float32),
        "dtproj_w": _nrm(ks[3], (R, E), kaiming / math.sqrt(R)),
        "dtproj_b": jnp.full((1, E), -2.0, jnp.float32),
        "a_log": jnp.broadcast_to(
            jnp.log(jnp.arange(1, N + 1, dtype=jnp.float32))[:, None], (N, E)),
        "d": jnp.ones((1, E), jnp.float32),
        "outproj_w": _nrm(ks[4], (E, H), kaiming / math.sqrt(E)),
        "outproj_b": jnp.zeros((1, H), jnp.float32),
        "frac_ln_w": jnp.ones((F, H), jnp.float32),
        "frac_ln_b": jnp.zeros((F, H), jnp.float32),
        "frac_w": _nrm(ks[5], (F, H, H), 1.0 / math.sqrt(H)),
        "frac_b": jnp.zeros((F, H), jnp.float32),
    }


def _pack_layer(lp):
    """Compose/concat projections and pack into bf16 weight + f32 vector slabs."""
    # compose x_proj[:, :R] @ dt_proj into a single delta projection, then
    # concat [delta | B | C] into one 128-lane-wide weight.
    delta_w = lp["xproj_w"][:, :R] @ lp["dtproj_w"]                    # (E, E)
    delta_b = lp["xproj_b"][:, :R] @ lp["dtproj_w"] + lp["dtproj_b"]   # (1, E)
    dbc_w = jnp.zeros((E, 128), jnp.float32)
    dbc_w = dbc_w.at[:, 0:E].set(delta_w)
    dbc_w = dbc_w.at[:, E:E + N].set(lp["xproj_w"][:, R:R + N])
    dbc_w = dbc_w.at[:, E + N:E + 2 * N].set(lp["xproj_w"][:, R + N:R + 2 * N])
    dbc_b = jnp.zeros((1, 128), jnp.float32)
    dbc_b = dbc_b.at[:, 0:E].set(delta_b)
    dbc_b = dbc_b.at[:, E:E + N].set(lp["xproj_b"][:, R:R + N])
    dbc_b = dbc_b.at[:, E + N:E + 2 * N].set(lp["xproj_b"][:, R + N:R + 2 * N])

    # bf16 weight slab
    w = jnp.zeros((W_ROWS, 128), jnp.float32)
    w = w.at[W_INPROJ:W_INPROJ + H, :].set(lp["inproj_w"])
    w = w.at[W_DBC:W_DBC + E, :].set(dbc_w)
    w = w.at[W_OUT:W_OUT + E, 0:H].set(lp["outproj_w"])
    w = w.at[W_FRAC:W_FRAC + F * H, 64:96].set(lp["frac_w"].reshape(F * H, H))
    wslab = w.astype(jnp.bfloat16)

    # f32 vector slab
    v = jnp.zeros((V_ROWS, 128), jnp.float32)
    v = v.at[V_LN_W, 0:H].set(lp["ln_w"][0])
    v = v.at[V_LN_B, 0:H].set(lp["ln_b"][0])
    v = v.at[V_INPROJ_B, 0:2 * E].set(lp["inproj_b"][0])
    v = v.at[V_DBC_B, :].set(dbc_b[0])
    v = v.at[V_CONV_B, 0:E].set(lp["conv_b"][0])
    v = v.at[V_D, 0:E].set(lp["d"][0])
    v = v.at[V_OUT_B, 0:H].set(lp["outproj_b"][0])
    v = v.at[V_CONV_W:V_CONV_W + K, 0:E].set(lp["conv_w"])
    v = v.at[V_A:V_A + N, 0:E].set(-jnp.exp(lp["a_log"]))
    v = v.at[V_FR_LN_W:V_FR_LN_W + F, 0:H].set(lp["frac_ln_w"])
    v = v.at[V_FR_LN_B:V_FR_LN_B + F, 0:H].set(lp["frac_ln_b"])
    v = v.at[V_FR_B:V_FR_B + F, 0:H].set(lp["frac_b"])
    return wslab, v


def _build_shift_matrix():
    """Stacked causal shift matrix S (K*BL, BL): block j, row i picks x[i-j]
    within the same batch element (else 0).  Precomputed once in the wrapper
    so no iota/compare/select preamble runs inside the kernel."""
    rows = jnp.arange(K * BL)
    cols = jnp.arange(BL)
    j = rows // BL
    i = rows % BL
    same_batch = (i[:, None] // L) == (cols[None, :] // L)
    hit = same_batch & ((i[:, None] - cols[None, :]) == j[:, None])
    return jnp.where(hit, 1.0, 0.0).astype(jnp.bfloat16)


def init_params(key):
    keys = jax.random.split(key, NUM_LAYERS + 2)
    tok_emb = _nrm(keys[0], (VOCAB, H), 0.02).at[0].set(0.0)   # padding_idx = 0
    pos_emb = _nrm(keys[1], (MAX_POS, H), 0.02)
    packed = [_pack_layer(init_layer_params(keys[2 + i]))
              for i in range(NUM_LAYERS)]
    wslab = jnp.stack([p[0] for p in packed])          # (NUM_LAYERS, 160, 128) bf16
    vslab = jnp.stack([p[1] for p in packed])          # (NUM_LAYERS,  32, 128) f32
    fln = jnp.concatenate([jnp.ones((1, H), jnp.float32),
                           jnp.zeros((1, H), jnp.float32)], axis=0)   # (2, H)
    return {"tok_emb": tok_emb, "pos_emb": pos_emb, "wslab": wslab,
            "vslab": vslab, "fln": fln, "shift": _build_shift_matrix()}


# ----------------------------- full model forward ----------------------------
def fractal_mamba_forward(input_ids, attention_mask, params):
    tok = params["tok_emb"][input_ids]                       # (B, L, H)
    pos = params["pos_emb"][jnp.arange(L)][None, :, :]       # (1, L, H)
    hs = (tok + pos).astype(jnp.float32).reshape(BL, H)
    # embedding dropout: identity in eval mode
    mask = attention_mask.astype(jnp.float32).reshape(BL, 1)
    out = fused_forward_call(hs, mask, params["shift"], params["wslab"],
                             params["vslab"], params["fln"])
    return out.reshape(B, L, H)


# ----------------------------- main -------------------------------------------
if __name__ == "__main__":
    key = jax.random.PRNGKey(0)
    k_ids, k_params = jax.random.split(key)

    input_ids = jax.random.randint(k_ids, (B, L), 1, VOCAB, dtype=jnp.int32)
    attention_mask = jnp.ones((B, L), jnp.float32)
    params = init_params(k_params)

    fwd = jax.jit(fractal_mamba_forward)
    out = fwd(input_ids, attention_mask, params)
    out = jax.block_until_ready(out)

    assert out.shape == (B, L, H)
    assert bool(jnp.all(jnp.isfinite(out)))
    print("KERNEL_OK")
</pallas_src>

<mosaic_0001>
module attributes {stable_mosaic.version = 11 : i64} {
  func.func @fused_forward_kernel(%arg0: i32, %arg1: memref<16x32xf32, #tpu.memory_space<vmem>>, %arg2: memref<16x1xf32, #tpu.memory_space<vmem>>, %arg3: memref<64x16xbf16, #tpu.memory_space<vmem>>, %arg4: memref<2x160x128xbf16, #tpu.memory_space<vmem>>, %arg5: memref<2x32x128xf32, #tpu.memory_space<vmem>>, %arg6: memref<2x32xf32, #tpu.memory_space<vmem>>, %arg7: memref<16x32xf32, #tpu.memory_space<vmem>>, %arg8: memref<8x16x64xf32, #tpu.memory_space<vmem>>, %arg9: memref<8x16x64xf32, #tpu.memory_space<vmem>>, %arg10: memref<8x16x64xf32, #tpu.memory_space<vmem>>) attributes {dimension_semantics = [#tpu.dimension_semantics<arbitrary>], iteration_bounds = array<i64: 1>, scalar_prefetch = 0 : i64, scratch_operands = 3 : i64, tpu.core_type = #tpu.core_type<tc>, window_params = [{pipeline_mode = #tpu.pipeline_mode<synchronous>, transform_indices = @transform_0, window_bounds = array<i64: 16, 32>}, {pipeline_mode = #tpu.pipeline_mode<synchronous>, transform_indices = @transform_1, window_bounds = array<i64: 16, 1>}, {pipeline_mode = #tpu.pipeline_mode<synchronous>, transform_indices = @transform_2, window_bounds = array<i64: 64, 16>}, {pipeline_mode = #tpu.pipeline_mode<synchronous>, transform_indices = @transform_3, window_bounds = array<i64: 2, 160, 128>}, {pipeline_mode = #tpu.pipeline_mode<synchronous>, transform_indices = @transform_4, window_bounds = array<i64: 2, 32, 128>}, {pipeline_mode = #tpu.pipeline_mode<synchronous>, transform_indices = @transform_5, window_bounds = array<i64: 2, 32>}, {pipeline_mode = #tpu.pipeline_mode<synchronous>, transform_indices = @transform_6, window_bounds = array<i64: 16, 32>}]} {
    %c0 = arith.constant 0 : index
    %c0_0 = arith.constant 0 : index
    %0 = vector.load %arg1[%c0, %c0_0] : memref<16x32xf32, #tpu.memory_space<vmem>>, vector<16x32xf32>
    %c0_1 = arith.constant 0 : index
    %c0_2 = arith.constant 0 : index
    %1 = vector.load %arg2[%c0_1, %c0_2] : memref<16x1xf32, #tpu.memory_space<vmem>>, vector<16x1xf32>
    %c0_3 = arith.constant 0 : index
    %c0_4 = arith.constant 0 : index
    %2 = vector.load %arg3[%c0_3, %c0_4] : memref<64x16xbf16, #tpu.memory_space<vmem>>, vector<64x16xbf16>
    %c0_5 = arith.constant 0 : index
    %c0_6 = arith.constant 0 : index
    %c0_7 = arith.constant 0 : index
    %3 = vector.load %arg5[%c0_5, %c0_6, %c0_7] : memref<2x32x128xf32, #tpu.memory_space<vmem>>, vector<1x32x128xf32>
    %4 = vector.shape_cast %3 : vector<1x32x128xf32> to vector<32x128xf32>
    %5 = vector.extract_strided_slice %4 {offsets = [0, 0], sizes = [1, 32], strides = [1, 1]} : vector<32x128xf32> to vector<1x32xf32>
    %6 = vector.extract_strided_slice %4 {offsets = [1, 0], sizes = [1, 32], strides = [1, 1]} : vector<32x128xf32> to vector<1x32xf32>
    %cst = arith.constant dense<0.000000e+00> : vector<16xf32>
    %7 = vector.multi_reduction <add>, %0, %cst [1] : vector<16x32xf32> to vector<16xf32>
    %8 = vector.shape_cast %7 : vector<16xf32> to vector<16x1xf32>
    %cst_8 = arith.constant 3.200000e+01 : f32
    %9 = vector.broadcast %cst_8 : f32 to vector<16x1xf32>
    %10 = arith.divf %8, %9 : vector<16x1xf32>
    %11 = vector.broadcast %10 : vector<16x1xf32> to vector<16x32xf32>
    %12 = arith.subf %0, %11 : vector<16x32xf32>
    %13 = arith.mulf %12, %12 : vector<16x32xf32>
    %cst_9 = arith.constant dense<0.000000e+00> : vector<16xf32>
    %14 = vector.multi_reduction <add>, %13, %cst_9 [1] : vector<16x32xf32> to vector<16xf32>
    %15 = vector.shape_cast %14 : vector<16xf32> to vector<16x1xf32>
    %cst_10 = arith.constant 3.200000e+01 : f32
    %16 = vector.broadcast %cst_10 : f32 to vector<16x1xf32>
    %17 = arith.divf %15, %16 : vector<16x1xf32>
    %18 = vector.broadcast %10 : vector<16x1xf32> to vector<16x32xf32>
    %19 = arith.subf %0, %18 : vector<16x32xf32>
    %cst_11 = arith.constant 9.99999974E-6 : f32
    %20 = vector.broadcast %cst_11 : f32 to vector<16x1xf32>
    %21 = arith.addf %17, %20 : vector<16x1xf32>
    %22 = math.rsqrt %21 : vector<16x1xf32>
    %23 = vector.broadcast %22 : vector<16x1xf32> to vector<16x32xf32>
    %24 = arith.mulf %19, %23 : vector<16x32xf32>
    %25 = vector.broadcast %5 : vector<1x32xf32> to vector<16x32xf32>
    %26 = arith.mulf %24, %25 : vector<16x32xf32>
    %27 = vector.broadcast %6 : vector<1x32xf32> to vector<16x32xf32>
    %28 = arith.addf %26, %27 : vector<16x32xf32>
    %c0_12 = arith.constant 0 : index
    %c0_13 = arith.constant 0 : index
    %c0_14 = arith.constant 0 : index
    %29 = vector.load %arg4[%c0_12, %c0_13, %c0_14] : memref<2x160x128xbf16, #tpu.memory_space<vmem>>, vector<1x32x128xbf16>
    %30 = vector.shape_cast %29 : vector<1x32x128xbf16> to vector<32x128xbf16>
    %31 = arith.truncf %28 : vector<16x32xf32> to vector<16x32xbf16>
    %cst_15 = arith.constant dense<0.000000e+00> : vector<16x128xf32>
    %32 = tpu.matmul %31, %30, %cst_15 {dimension_numbers = #tpu.dot_dimension_numbers<[1], [0], [0], [1], [0, 0, 1, 1], [], []>} : vector<16x32xbf16>, vector<32x128xbf16>, vector<16x128xf32> -> vector<16x128xf32>
    %33 = vector.extract_strided_slice %4 {offsets = [2, 0], sizes = [1, 128], strides = [1, 1]} : vector<32x128xf32> to vector<1x128xf32>
    %34 = vector.broadcast %33 : vector<1x128xf32> to vector<16x128xf32>
    %35 = arith.addf %32, %34 : vector<16x128xf32>
    %36 = vector.extract_strided_slice %35 {offsets = [0, 0], sizes = [16, 64], strides = [1, 1]} : vector<16x128xf32> to vector<16x64xf32>
    %37 = vector.extract_strided_slice %35 {offsets = [0, 64], sizes = [16, 64], strides = [1, 1]} : vector<16x128xf32> to vector<16x64xf32>
    %38 = arith.truncf %36 : vector<16x64xf32> to vector<16x64xbf16>
    %cst_16 = arith.constant dense<0.000000e+00> : vector<64x64xf32>
    %39 = tpu.matmul %2, %38, %cst_16 {dimension_numbers = #tpu.dot_dimension_numbers<[1], [0], [0], [1], [0, 0, 1, 1], [], []>} : vector<64x16xbf16>, vector<16x64xbf16>, vector<64x64xf32> -> vector<64x64xf32>
    %40 = vector.extract_strided_slice %4 {offsets = [4, 0], sizes = [1, 64], strides = [1, 1]} : vector<32x128xf32> to vector<1x64xf32>
    %41 = vector.extract_strided_slice %4 {offsets = [11, 0], sizes = [1, 64], strides = [1, 1]} : vector<32x128xf32> to vector<1x64xf32>
    %42 = vector.extract_strided_slice %39 {offsets = [0, 0], sizes = [16, 64], strides = [1, 1]} : vector<64x64xf32> to vector<16x64xf32>
    %43 = vector.broadcast %41 : vector<1x64xf32> to vector<16x64xf32>
    %44 = arith.mulf %43, %42 : vector<16x64xf32>
    %45 = vector.broadcast %40 : vector<1x64xf32> to vector<16x64xf32>
    %46 = arith.addf %45, %44 : vector<16x64xf32>
    %47 = vector.extract_strided_slice %4 {offsets = [10, 0], sizes = [1, 64], strides = [1, 1]} : vector<32x128xf32> to vector<1x64xf32>
    %48 = vector.extract_strided_slice %39 {offsets = [16, 0], sizes = [16, 64], strides = [1, 1]} : vector<64x64xf32> to vector<16x64xf32>
    %49 = vector.broadcast %47 : vector<1x64xf32> to vector<16x64xf32>
    %50 = arith.mulf %49, %48 : vector<16x64xf32>
    %51 = arith.addf %46, %50 : vector<16x64xf32>
    %52 = vector.extract_strided_slice %4 {offsets = [9, 0], sizes = [1, 64], strides = [1, 1]} : vector<32x128xf32> to vector<1x64xf32>
    %53 = vector.extract_strided_slice %39 {offsets = [32, 0], sizes = [16, 64], strides = [1, 1]} : vector<64x64xf32> to vector<16x64xf32>
    %54 = vector.broadcast %52 : vector<1x64xf32> to vector<16x64xf32>
    %55 = arith.mulf %54, %53 : vector<16x64xf32>
    %56 = arith.addf %51, %55 : vector<16x64xf32>
    %57 = vector.extract_strided_slice %4 {offsets = [8, 0], sizes = [1, 64], strides = [1, 1]} : vector<32x128xf32> to vector<1x64xf32>
    %58 = vector.extract_strided_slice %39 {offsets = [48, 0], sizes = [16, 64], strides = [1, 1]} : vector<64x64xf32> to vector<16x64xf32>
    %59 = vector.broadcast %57 : vector<1x64xf32> to vector<16x64xf32>
    %60 = arith.mulf %59, %58 : vector<16x64xf32>
    %61 = arith.addf %56, %60 : vector<16x64xf32>
    %cst_17 = arith.constant 0.000000e+00 : f32
    %62 = vector.broadcast %cst_17 : f32 to vector<16x64xf32>
    %63 = arith.subf %62, %61 : vector<16x64xf32>
    %64 = math.exp %63 : vector<16x64xf32>
    %cst_18 = arith.constant 1.000000e+00 : f32
    %65 = vector.broadcast %cst_18 : f32 to vector<16x64xf32>
    %66 = arith.addf %65, %64 : vector<16x64xf32>
    %cst_19 = arith.constant 1.000000e+00 : f32
    %67 = vector.broadcast %cst_19 : f32 to vector<16x64xf32>
    %68 = arith.divf %67, %66 : vector<16x64xf32>
    %69 = arith.mulf %61, %68 : vector<16x64xf32>
    %70 = vector.broadcast %1 : vector<16x1xf32> to vector<16x64xf32>
    %71 = arith.mulf %69, %70 : vector<16x64xf32>
    %c0_20 = arith.constant 0 : index
    %c32 = arith.constant 32 : index
    %c0_21 = arith.constant 0 : index
    %72 = vector.load %arg4[%c0_20, %c32, %c0_21] : memref<2x160x128xbf16, #tpu.memory_space<vmem>>, vector<1x64x128xbf16>
    %73 = vector.shape_cast %72 : vector<1x64x128xbf16> to vector<64x128xbf16>
    %74 = arith.truncf %71 : vector<16x64xf32> to vector<16x64xbf16>
    %cst_22 = arith.constant dense<0.000000e+00> : vector<16x128xf32>
    %75 = tpu.matmul %74, %73, %cst_22 {dimension_numbers = #tpu.dot_dimension_numbers<[1], [0], [0], [1], [0, 0, 1, 1], [], []>} : vector<16x64xbf16>, vector<64x128xbf16>, vector<16x128xf32> -> vector<16x128xf32>
    %76 = vector.extract_strided_slice %4 {offsets = [3, 0], sizes = [1, 128], strides = [1, 1]} : vector<32x128xf32> to vector<1x128xf32>
    %77 = vector.broadcast %76 : vector<1x128xf32> to vector<16x128xf32>
    %78 = arith.addf %75, %77 : vector<16x128xf32>
    %79 = vector.extract_strided_slice %78 {offsets = [0, 0], sizes = [16, 64], strides = [1, 1]} : vector<16x128xf32> to vector<16x64xf32>
    %cst_23 = arith.constant 0.000000e+00 : f32
    %80 = vector.broadcast %cst_23 : f32 to vector<16x64xf32>
    %81 = arith.maximumf %79, %80 : vector<16x64xf32>
    %82 = math.absf %79 : vector<16x64xf32>
    %cst_24 = arith.constant 0.000000e+00 : f32
    %83 = vector.broadcast %cst_24 : f32 to vector<16x64xf32>
    %84 = arith.subf %83, %82 : vector<16x64xf32>
    %85 = math.exp %84 : vector<16x64xf32>
    %cst_25 = arith.constant 1.000000e+00 : f32
    %86 = vector.broadcast %cst_25 : f32 to vector<16x64xf32>
    %87 = arith.addf %86, %85 : vector<16x64xf32>
    %88 = math.log %87 : vector<16x64xf32>
    %89 = arith.addf %81, %88 : vector<16x64xf32>
    %90 = vector.extract_strided_slice %78 {offsets = [0, 64], sizes = [16, 8], strides = [1, 1]} : vector<16x128xf32> to vector<16x8xf32>
    %91 = vector.extract_strided_slice %78 {offsets = [0, 72], sizes = [16, 8], strides = [1, 1]} : vector<16x128xf32> to vector<16x8xf32>
    %92 = vector.extract_strided_slice %4 {offsets = [12, 0], sizes = [8, 64], strides = [1, 1]} : vector<32x128xf32> to vector<8x64xf32>
    %93 = vector.shape_cast %89 : vector<16x64xf32> to vector<16x1x64xf32>
    %94 = vector.shape_cast %92 : vector<8x64xf32> to vector<1x8x64xf32>
    %95 = vector.broadcast %93 : vector<16x1x64xf32> to vector<16x8x64xf32>
    %96 = vector.broadcast %94 : vector<1x8x64xf32> to vector<16x8x64xf32>
    %97 = arith.mulf %95, %96 : vector<16x8x64xf32>
    %98 = math.exp %97 : vector<16x8x64xf32>
    %99 = arith.mulf %89, %71 : vector<16x64xf32>
    %100 = vector.shape_cast %99 : vector<16x64xf32> to vector<16x1x64xf32>
    %101 = vector.shape_cast %90 : vector<16x8xf32> to vector<16x8x1xf32>
    %102 = vector.broadcast %100 : vector<16x1x64xf32> to vector<16x8x64xf32>
    %103 = vector.broadcast %101 : vector<16x8x1xf32> to vector<16x8x64xf32>
    %104 = arith.mulf %102, %103 : vector<16x8x64xf32>
    %105 = vector.extract_strided_slice %98 {offsets = [0, 0, 0], sizes = [8, 8, 64], strides = [1, 1, 1]} : vector<16x8x64xf32> to vector<8x8x64xf32>
    %c0_26 = arith.constant 0 : index
    %c0_27 = arith.constant 0 : index
    %c0_28 = arith.constant 0 : index
    %106 = vector.load %arg8[%c0_26, %c0_27, %c0_28] : memref<8x16x64xf32, #tpu.memory_space<vmem>>, vector<8x8x64xf32>
    tpu.vector_store %arg8[%c0_26, %c0_27, %c0_28], %105 {strides = array<i32>} : memref<8x16x64xf32, #tpu.memory_space<vmem>>, vector<8x8x64xf32>,
    %107 = vector.extract_strided_slice %98 {offsets = [8, 0, 0], sizes = [8, 8, 64], strides = [1, 1, 1]} : vector<16x8x64xf32> to vector<8x8x64xf32>
    %c0_29 = arith.constant 0 : index
    %c8 = arith.constant 8 : index
    %c0_30 = arith.constant 0 : index
    %108 = vector.load %arg8[%c0_29, %c8, %c0_30] : memref<8x16x64xf32, #tpu.memory_space<vmem>>, vector<8x8x64xf32>
    tpu.vector_store %arg8[%c0_29, %c8, %c0_30], %107 {strides = array<i32>} : memref<8x16x64xf32, #tpu.memory_space<vmem>>, vector<8x8x64xf32>,
    %109 = vector.extract_strided_slice %104 {offsets = [0, 0, 0], sizes = [8, 8, 64], strides = [1, 1, 1]} : vector<16x8x64xf32> to vector<8x8x64xf32>
    %c0_31 = arith.constant 0 : index
    %c0_32 = arith.constant 0 : index
    %c0_33 = arith.constant 0 : index
    %110 = vector.load %arg9[%c0_31, %c0_32, %c0_33] : memref<8x16x64xf32, #tpu.memory_space<vmem>>, vector<8x8x64xf32>
    tpu.vector_store %arg9[%c0_31, %c0_32, %c0_33], %109 {strides = array<i32>} : memref<8x16x64xf32, #tpu.memory_space<vmem>>, vector<8x8x64xf32>,
    %111 = vector.extract_strided_slice %104 {offsets = [8, 0, 0], sizes = [8, 8, 64], strides = [1, 1, 1]} : vector<16x8x64xf32> to vector<8x8x64xf32>
    %c0_34 = arith.constant 0 : index
    %c8_35 = arith.constant 8 : index
    %c0_36 = arith.constant 0 : index
    %112 = vector.load %arg9[%c0_34, %c8_35, %c0_36] : memref<8x16x64xf32, #tpu.memory_space<vmem>>, vector<8x8x64xf32>
    tpu.vector_store %arg9[%c0_34, %c8_35, %c0_36], %111 {strides = array<i32>} : memref<8x16x64xf32, #tpu.memory_space<vmem>>, vector<8x8x64xf32>,
    %cst_37 = arith.constant 0.000000e+00 : f32
    %113 = vector.broadcast %cst_37 : f32 to vector<16x64xf32>
    %c0_38 = arith.constant 0 : index
    %c0_39 = arith.constant 0 : index
    %c0_40 = arith.constant 0 : index
    %114 = vector.load %arg8[%c0_38, %c0_39, %c0_40] : memref<8x16x64xf32, #tpu.memory_space<vmem>>, vector<1x16x64xf32>
    %115 = vector.shape_cast %114 : vector<1x16x64xf32> to vector<16x64xf32>
    %116 = arith.mulf %115, %113 : vector<16x64xf32>
    %c0_41 = arith.constant 0 : index
    %c0_42 = arith.constant 0 : index
    %c0_43 = arith.constant 0 : index
    %117 = vector.load %arg9[%c0_41, %c0_42, %c0_43] : memref<8x16x64xf32, #tpu.memory_space<vmem>>, vector<1x16x64xf32>
    %118 = vector.shape_cast %117 : vector<1x16x64xf32> to vector<16x64xf32>
    %119 = arith.addf %116, %118 : vector<16x64xf32>
    %c0_44 = arith.constant 0 : index
    %c0_45 = arith.constant 0 : index
    %c0_46 = arith.constant 0 : index
    %120 = vector.load %arg10[%c0_44, %c0_45, %c0_46] : memref<8x16x64xf32, #tpu.memory_space<vmem>>, vector<1x16x64xf32>
    %121 = vector.shape_cast %120 : vector<1x16x64xf32> to vector<16x64xf32>
    %122 = vector.shape_cast %119 : vector<16x64xf32> to vector<1x16x64xf32>
    tpu.vector_store %arg10[%c0_44, %c0_45, %c0_46], %122 {strides = array<i32>} : memref<8x16x64xf32, #tpu.memory_space<vmem>>, vector<1x16x64xf32>,
    %c1 = arith.constant 1 : index
    %c0_47 = arith.constant 0 : index
    %c0_48 = arith.constant 0 : index
    %123 = vector.load %arg8[%c1, %c0_47, %c0_48] : memref<8x16x64xf32, #tpu.memory_space<vmem>>, vector<1x16x64xf32>
    %124 = vector.shape_cast %123 : vector<1x16x64xf32> to vector<16x64xf32>
    %125 = arith.mulf %124, %119 : vector<16x64xf32>
    %c1_49 = arith.constant 1 : index
    %c0_50 = arith.constant 0 : index
    %c0_51 = arith.constant 0 : index
    %126 = vector.load %arg9[%c1_49, %c0_50, %c0_51] : memref<8x16x64xf32, #tpu.memory_space<vmem>>, vector<1x16x64xf32>
    %127 = vector.shape_cast %126 : vector<1x16x64xf32> to vector<16x64xf32>
    %128 = arith.addf %125, %127 : vector<16x64xf32>
    %c1_52 = arith.constant 1 : index
    %c0_53 = arith.constant 0 : index
    %c0_54 = arith.constant 0 : index
    %129 = vector.load %arg10[%c1_52, %c0_53, %c0_54] : memref<8x16x64xf32, #tpu.memory_space<vmem>>, vector<1x16x64xf32>
    %130 = vector.shape_cast %129 : vector<1x16x64xf32> to vector<16x64xf32>
    %131 = vector.shape_cast %128 : vector<16x64xf32> to vector<1x16x64xf32>
    tpu.vector_store %arg10[%c1_52, %c0_53, %c0_54], %131 {strides = array<i32>} : memref<8x16x64xf32, #tpu.memory_space<vmem>>, vector<1x16x64xf32>,
    %c2 = arith.constant 2 : index
    %c0_55 = arith.constant 0 : index
    %c0_56 = arith.constant 0 : index
    %132 = vector.load %arg8[%c2, %c0_55, %c0_56] : memref<8x16x64xf32, #tpu.memory_space<vmem>>, vector<1x16x64xf32>
    %133 = vector.shape_cast %132 : vector<1x16x64xf32> to vector<16x64xf32>
    %134 = arith.mulf %133, %128 : vector<16x64xf32>
    %c2_57 = arith.constant 2 : index
    %c0_58 = arith.constant 0 : index
    %c0_59 = arith.constant 0 : index
    %135 = vector.load %arg9[%c2_57, %c0_58, %c0_59] : memref<8x16x64xf32, #tpu.memory_space<vmem>>, vector<1x16x64xf32>
    %136 = vector.shape_cast %135 : vector<1x16x64xf32> to vector<16x64xf32>
    %137 = arith.addf %134, %136 : vector<16x64xf32>
    %c2_60 = arith.constant 2 : index
    %c0_61 = arith.constant 0 : index
    %c0_62 = arith.constant 0 : index
    %138 = vector.load %arg10[%c2_60, %c0_61, %c0_62] : memref<8x16x64xf32, #tpu.memory_space<vmem>>, vector<1x16x64xf32>
    %139 = vector.shape_cast %138 : vector<1x16x64xf32> to vector<16x64xf32>
    %140 = vector.shape_cast %137 : vector<16x64xf32> to vector<1x16x64xf32>
    tpu.vector_store %arg10[%c2_60, %c0_61, %c0_62], %140 {strides = array<i32>} : memref<8x16x64xf32, #tpu.memory_space<vmem>>, vector<1x16x64xf32>,
    %c3 = arith.constant 3 : index
    %c0_63 = arith.constant 0 : index
    %c0_64 = arith.constant 0 : index
    %141 = vector.load %arg8[%c3, %c0_63, %c0_64] : memref<8x16x64xf32, #tpu.memory_space<vmem>>, vector<1x16x64xf32>
    %142 = vector.shape_cast %141 : vector<1x16x64xf32> to vector<16x64xf32>
    %143 = arith.mulf %142, %137 : vector<16x64xf32>
    %c3_65 = arith.constant 3 : index
    %c0_66 = arith.constant 0 : index
    %c0_67 = arith.constant 0 : index
    %144 = vector.load %arg9[%c3_65, %c0_66, %c0_67] : memref<8x16x64xf32, #tpu.memory_space<vmem>>, vector<1x16x64xf32>
    %145 = vector.shape_cast %144 : vector<1x16x64xf32> to vector<16x64xf32>
    %146 = arith.addf %143, %145 : vector<16x64xf32>
    %c3_68 = arith.constant 3 : index
    %c0_69 = arith.constant 0 : index
    %c0_70 = arith.constant 0 : index
    %147 = vector.load %arg10[%c3_68, %c0_69, %c0_70] : memref<8x16x64xf32, #tpu.memory_space<vmem>>, vector<1x16x64xf32>
    %148 = vector.shape_cast %147 : vector<1x16x64xf32> to vector<16x64xf32>
    %149 = vector.shape_cast %146 : vector<16x64xf32> to vector<1x16x64xf32>
    tpu.vector_store %arg10[%c3_68, %c0_69, %c0_70], %149 {strides = array<i32>} : memref<8x16x64xf32, #tpu.memory_space<vmem>>, vector<1x16x64xf32>,
    %c4 = arith.constant 4 : index
    %c0_71 = arith.constant 0 : index
    %c0_72 = arith.constant 0 : index
    %150 = vector.load %arg8[%c4, %c0_71, %c0_72] : memref<8x16x64xf32, #tpu.memory_space<vmem>>, vector<1x16x64xf32>
    %151 = vector.shape_cast %150 : vector<1x16x64xf32> to vector<16x64xf32>
    %152 = arith.mulf %151, %146 : vector<16x64xf32>
    %c4_73 = arith.constant 4 : index
    %c0_74 = arith.constant 0 : index
    %c0_75 = arith.constant 0 : index
    %153 = vector.load %arg9[%c4_73, %c0_74, %c0_75] : memref<8x16x64xf32, #tpu.memory_space<vmem>>, vector<1x16x64xf32>
    %154 = vector.shape_cast %153 : vector<1x16x64xf32> to vector<16x64xf32>
    %155 = arith.addf %152, %154 : vector<16x64xf32>
    %c4_76 = arith.constant 4 : index
    %c0_77 = arith.constant 0 : index
    %c0_78 = arith.constant 0 : index
    %156 = vector.load %arg10[%c4_76, %c0_77, %c0_78] : memref<8x16x64xf32, #tpu.memory_space<vmem>>, vector<1x16x64xf32>
    %157 = vector.shape_cast %156 : vector<1x16x64xf32> to vector<16x64xf32>
    %158 = vector.shape_cast %155 : vector<16x64xf32> to vector<1x16x64xf32>
    tpu.vector_store %arg10[%c4_76, %c0_77, %c0_78], %158 {strides = array<i32>} : memref<8x16x64xf32, #tpu.memory_space<vmem>>, vector<1x16x64xf32>,
    %c5 = arith.constant 5 : index
    %c0_79 = arith.constant 0 : index
    %c0_80 = arith.constant 0 : index
    %159 = vector.load %arg8[%c5, %c0_79, %c0_80] : memref<8x16x64xf32, #tpu.memory_space<vmem>>, vector<1x16x64xf32>
    %160 = vector.shape_cast %159 : vector<1x16x64xf32> to vector<16x64xf32>
    %161 = arith.mulf %160, %155 : vector<16x64xf32>
    %c5_81 = arith.constant 5 : index
    %c0_82 = arith.constant 0 : index
    %c0_83 = arith.constant 0 : index
    %162 = vector.load %arg9[%c5_81, %c0_82, %c0_83] : memref<8x16x64xf32, #tpu.memory_space<vmem>>, vector<1x16x64xf32>
    %163 = vector.shape_cast %162 : vector<1x16x64xf32> to vector<16x64xf32>
    %164 = arith.addf %161, %163 : vector<16x64xf32>
    %c5_84 = arith.constant 5 : index
    %c0_85 = arith.constant 0 : index
    %c0_86 = arith.constant 0 : index
    %165 = vector.load %arg10[%c5_84, %c0_85, %c0_86] : memref<8x16x64xf32, #tpu.memory_space<vmem>>, vector<1x16x64xf32>
    %166 = vector.shape_cast %165 : vector<1x16x64xf32> to vector<16x64xf32>
    %167 = vector.shape_cast %164 : vector<16x64xf32> to vector<1x16x64xf32>
    tpu.vector_store %arg10[%c5_84, %c0_85, %c0_86], %167 {strides = array<i32>} : memref<8x16x64xf32, #tpu.memory_space<vmem>>, vector<1x16x64xf32>,
    %c6 = arith.constant 6 : index
    %c0_87 = arith.constant 0 : index
    %c0_88 = arith.constant 0 : index
    %168 = vector.load %arg8[%c6, %c0_87, %c0_88] : memref<8x16x64xf32, #tpu.memory_space<vmem>>, vector<1x16x64xf32>
    %169 = vector.shape_cast %168 : vector<1x16x64xf32> to vector<16x64xf32>
    %170 = arith.mulf %169, %164 : vector<16x64xf32>
    %c6_89 = arith.constant 6 : index
    %c0_90 = arith.constant 0 : index
    %c0_91 = arith.constant 0 : index
    %171 = vector.load %arg9[%c6_89, %c0_90, %c0_91] : memref<8x16x64xf32, #tpu.memory_space<vmem>>, vector<1x16x64xf32>
    %172 = vector.shape_cast %171 : vector<1x16x64xf32> to vector<16x64xf32>
    %173 = arith.addf %170, %172 : vector<16x64xf32>
    %c6_92 = arith.constant 6 : index
    %c0_93 = arith.constant 0 : index
    %c0_94 = arith.constant 0 : index
    %174 = vector.load %arg10[%c6_92, %c0_93, %c0_94] : memref<8x16x64xf32, #tpu.memory_space<vmem>>, vector<1x16x64xf32>
    %175 = vector.shape_cast %174 : vector<1x16x64xf32> to vector<16x64xf32>
    %176 = vector.shape_cast %173 : vector<16x64xf32> to vector<1x16x64xf32>
    tpu.vector_store %arg10[%c6_92, %c0_93, %c0_94], %176 {strides = array<i32>} : memref<8x16x64xf32, #tpu.memory_space<vmem>>, vector<1x16x64xf32>,
    %c7 = arith.constant 7 : index
    %c0_95 = arith.constant 0 : index
    %c0_96 = arith.constant 0 : index
    %177 = vector.load %arg8[%c7, %c0_95, %c0_96] : memref<8x16x64xf32, #tpu.memory_space<vmem>>, vector<1x16x64xf32>
    %178 = vector.shape_cast %177 : vector<1x16x64xf32> to vector<16x64xf32>
    %179 = arith.mulf %178, %173 : vector<16x64xf32>
    %c7_97 = arith.constant 7 : index
    %c0_98 = arith.constant 0 : index
    %c0_99 = arith.constant 0 : index
    %180 = vector.load %arg9[%c7_97, %c0_98, %c0_99] : memref<8x16x64xf32, #tpu.memory_space<vmem>>, vector<1x16x64xf32>
    %181 = vector.shape_cast %180 : vector<1x16x64xf32> to vector<16x64xf32>
    %182 = arith.addf %179, %181 : vector<16x64xf32>
    %c7_100 = arith.constant 7 : index
    %c0_101 = arith.constant 0 : index
    %c0_102 = arith.constant 0 : index
    %183 = vector.load %arg10[%c7_100, %c0_101, %c0_102] : memref<8x16x64xf32, #tpu.memory_space<vmem>>, vector<1x16x64xf32>
    %184 = vector.shape_cast %183 : vector<1x16x64xf32> to vector<16x64xf32>
    %185 = vector.shape_cast %182 : vector<16x64xf32> to vector<1x16x64xf32>
    tpu.vector_store %arg10[%c7_100, %c0_101, %c0_102], %185 {strides = array<i32>} : memref<8x16x64xf32, #tpu.memory_space<vmem>>, vector<1x16x64xf32>,
    %c0_103 = arith.constant 0 : index
    %c0_104 = arith.constant 0 : index
    %c0_105 = arith.constant 0 : index
    %186 = vector.load %arg10[%c0_103, %c0_104, %c0_105] : memref<8x16x64xf32, #tpu.memory_space<vmem>>, vector<8x16x64xf32>
    %187 = vector.extract_strided_slice %186 {offsets = [0, 0, 0], sizes = [8, 8, 64], strides = [1, 1, 1]} : vector<8x16x64xf32> to vector<8x8x64xf32>
    %188 = vector.extract_strided_slice %186 {offsets = [0, 8, 0], sizes = [8, 8, 64], strides = [1, 1, 1]} : vector<8x16x64xf32> to vector<8x8x64xf32>
    %189 = tpu.concatenate %187, %188 in 0 : vector<8x8x64xf32>, vector<8x8x64xf32> -> vector<16x8x64xf32>
    %190 = vector.extract_strided_slice %4 {offsets = [5, 0], sizes = [1, 64], strides = [1, 1]} : vector<32x128xf32> to vector<1x64xf32>
    %191 = vector.broadcast %190 : vector<1x64xf32> to vector<16x64xf32>
    %192 = arith.mulf %71, %191 : vector<16x64xf32>
    %193 = vector.shape_cast %91 : vector<16x8xf32> to vector<16x8x1xf32>
    %194 = vector.broadcast %193 : vector<16x8x1xf32> to vector<16x8x64xf32>
    %195 = arith.mulf %194, %189 : vector<16x8x64xf32>
    %cst_106 = arith.constant dense<0.000000e+00> : vector<16x64xf32>
    %196 = vector.multi_reduction <add>, %195, %cst_106 [1] : vector<16x8x64xf32> to vector<16x64xf32>
    %197 = arith.addf %192, %196 : vector<16x64xf32>
    %cst_107 = arith.constant 0.000000e+00 : f32
    %198 = vector.broadcast %cst_107 : f32 to vector<16x64xf32>
    %199 = arith.subf %198, %37 : vector<16x64xf32>
    %200 = math.exp %199 : vector<16x64xf32>
    %cst_108 = arith.constant 1.000000e+00 : f32
    %201 = vector.broadcast %cst_108 : f32 to vector<16x64xf32>
    %202 = arith.addf %201, %200 : vector<16x64xf32>
    %cst_109 = arith.constant 1.000000e+00 : f32
    %203 = vector.broadcast %cst_109 : f32 to vector<16x64xf32>
    %204 = arith.divf %203, %202 : vector<16x64xf32>
    %205 = arith.mulf %204, %197 : vector<16x64xf32>
    %c0_110 = arith.constant 0 : index
    %c96 = arith.constant 96 : index
    %c0_111 = arith.constant 0 : index
    %206 = vector.load %arg4[%c0_110, %c96, %c0_111] : memref<2x160x128xbf16, #tpu.memory_space<vmem>>, vector<1x64x32xbf16>
    %207 = vector.shape_cast %206 : vector<1x64x32xbf16> to vector<64x32xbf16>
    %208 = arith.truncf %205 : vector<16x64xf32> to vector<16x64xbf16>
    %cst_112 = arith.constant dense<0.000000e+00> : vector<16x32xf32>
    %209 = tpu.matmul %208, %207, %cst_112 {dimension_numbers = #tpu.dot_dimension_numbers<[1], [0], [0], [1], [0, 0, 1, 1], [], []>} : vector<16x64xbf16>, vector<64x32xbf16>, vector<16x32xf32> -> vector<16x32xf32>
    %210 = vector.extract_strided_slice %4 {offsets = [6, 0], sizes = [1, 32], strides = [1, 1]} : vector<32x128xf32> to vector<1x32xf32>
    %211 = vector.broadcast %210 : vector<1x32xf32> to vector<16x32xf32>
    %212 = arith.addf %209, %211 : vector<16x32xf32>
    %213 = arith.addf %212, %0 : vector<16x32xf32>
    %214 = vector.extract_strided_slice %4 {offsets = [20, 0], sizes = [1, 32], strides = [1, 1]} : vector<32x128xf32> to vector<1x32xf32>
    %215 = vector.extract_strided_slice %4 {offsets = [22, 0], sizes = [1, 32], strides = [1, 1]} : vector<32x128xf32> to vector<1x32xf32>
    %cst_113 = arith.constant dense<0.000000e+00> : vector<16xf32>
    %216 = vector.multi_reduction <add>, %213, %cst_113 [1] : vector<16x32xf32> to vector<16xf32>
    %217 = vector.shape_cast %216 : vector<16xf32> to vector<16x1xf32>
    %cst_114 = arith.constant 3.200000e+01 : f32
    %218 = vector.broadcast %cst_114 : f32 to vector<16x1xf32>
    %219 = arith.divf %217, %218 : vector<16x1xf32>
    %220 = vector.broadcast %219 : vector<16x1xf32> to vector<16x32xf32>
    %221 = arith.subf %213, %220 : vector<16x32xf32>
    %222 = arith.mulf %221, %221 : vector<16x32xf32>
    %cst_115 = arith.constant dense<0.000000e+00> : vector<16xf32>
    %223 = vector.multi_reduction <add>, %222, %cst_115 [1] : vector<16x32xf32> to vector<16xf32>
    %224 = vector.shape_cast %223 : vector<16xf32> to vector<16x1xf32>
    %cst_116 = arith.constant 3.200000e+01 : f32
    %225 = vector.broadcast %cst_116 : f32 to vector<16x1xf32>
    %226 = arith.divf %224, %225 : vector<16x1xf32>
    %227 = vector.broadcast %219 : vector<16x1xf32> to vector<16x32xf32>
    %228 = arith.subf %213, %227 : vector<16x32xf32>
    %cst_117 = arith.constant 9.99999974E-6 : f32
    %229 = vector.broadcast %cst_117 : f32 to vector<16x1xf32>
    %230 = arith.addf %226, %229 : vector<16x1xf32>
    %231 = math.rsqrt %230 : vector<16x1xf32>
    %232 = vector.broadcast %231 : vector<16x1xf32> to vector<16x32xf32>
    %233 = arith.mulf %228, %232 : vector<16x32xf32>
    %234 = vector.broadcast %214 : vector<1x32xf32> to vector<16x32xf32>
    %235 = arith.mulf %233, %234 : vector<16x32xf32>
    %236 = vector.broadcast %215 : vector<1x32xf32> to vector<16x32xf32>
    %237 = arith.addf %235, %236 : vector<16x32xf32>
    %c0_118 = arith.constant 0 : index
    %c96_119 = arith.constant 96 : index
    %c64 = arith.constant 64 : index
    %238 = vector.load %arg4[%c0_118, %c96_119, %c64] : memref<2x160x128xbf16, #tpu.memory_space<vmem>>, vector<1x32x32xbf16>
    %239 = vector.shape_cast %238 : vector<1x32x32xbf16> to vector<32x32xbf16>
    %240 = arith.truncf %237 : vector<16x32xf32> to vector<16x32xbf16>
    %cst_120 = arith.constant dense<0.000000e+00> : vector<16x32xf32>
    %241 = tpu.matmul %240, %239, %cst_120 {dimension_numbers = #tpu.dot_dimension_numbers<[1], [0], [0], [1], [0, 0, 1, 1], [], []>} : vector<16x32xbf16>, vector<32x32xbf16>, vector<16x32xf32> -> vector<16x32xf32>
    %242 = vector.extract_strided_slice %4 {offsets = [24, 0], sizes = [1, 32], strides = [1, 1]} : vector<32x128xf32> to vector<1x32xf32>
    %243 = vector.broadcast %242 : vector<1x32xf32> to vector<16x32xf32>
    %244 = arith.addf %241, %243 : vector<16x32xf32>
    %245 = math.tanh %244 : vector<16x32xf32>
    %cst_121 = arith.constant 0.833333313 : f32
    %246 = vector.broadcast %cst_121 : f32 to vector<16x32xf32>
    %247 = arith.mulf %246, %245 : vector<16x32xf32>
    %248 = arith.addf %213, %247 : vector<16x32xf32>
    %249 = vector.extract_strided_slice %4 {offsets = [21, 0], sizes = [1, 32], strides = [1, 1]} : vector<32x128xf32> to vector<1x32xf32>
    %250 = vector.extract_strided_slice %4 {offsets = [23, 0], sizes = [1, 32], strides = [1, 1]} : vector<32x128xf32> to vector<1x32xf32>
    %cst_122 = arith.constant dense<0.000000e+00> : vector<16xf32>
    %251 = vector.multi_reduction <add>, %248, %cst_122 [1] : vector<16x32xf32> to vector<16xf32>
    %252 = vector.shape_cast %251 : vector<16xf32> to vector<16x1xf32>
    %cst_123 = arith.constant 3.200000e+01 : f32
    %253 = vector.broadcast %cst_123 : f32 to vector<16x1xf32>
    %254 = arith.divf %252, %253 : vector<16x1xf32>
    %255 = vector.broadcast %254 : vector<16x1xf32> to vector<16x32xf32>
    %256 = arith.subf %248, %255 : vector<16x32xf32>
    %257 = arith.mulf %256, %256 : vector<16x32xf32>
    %cst_124 = arith.constant dense<0.000000e+00> : vector<16xf32>
    %258 = vector.multi_reduction <add>, %257, %cst_124 [1] : vector<16x32xf32> to vector<16xf32>
    %259 = vector.shape_cast %258 : vector<16xf32> to vector<16x1xf32>
    %cst_125 = arith.constant 3.200000e+01 : f32
    %260 = vector.broadcast %cst_125 : f32 to vector<16x1xf32>
    %261 = arith.divf %259, %260 : vector<16x1xf32>
    %262 = vector.broadcast %254 : vector<16x1xf32> to vector<16x32xf32>
    %263 = arith.subf %248, %262 : vector<16x32xf32>
    %cst_126 = arith.constant 9.99999974E-6 : f32
    %264 = vector.broadcast %cst_126 : f32 to vector<16x1xf32>
    %265 = arith.addf %261, %264 : vector<16x1xf32>
    %266 = math.rsqrt %265 : vector<16x1xf32>
    %267 = vector.broadcast %266 : vector<16x1xf32> to vector<16x32xf32>
    %268 = arith.mulf %263, %267 : vector<16x32xf32>
    %269 = vector.broadcast %249 : vector<1x32xf32> to vector<16x32xf32>
    %270 = arith.mulf %268, %269 : vector<16x32xf32>
    %271 = vector.broadcast %250 : vector<1x32xf32> to vector<16x32xf32>
    %272 = arith.addf %270, %271 : vector<16x32xf32>
    %c0_127 = arith.constant 0 : index
    %c128 = arith.constant 128 : index
    %c64_128 = arith.constant 64 : index
    %273 = vector.load %arg4[%c0_127, %c128, %c64_128] : memref<2x160x128xbf16, #tpu.memory_space<vmem>>, vector<1x32x32xbf16>
    %274 = vector.shape_cast %273 : vector<1x32x32xbf16> to vector<32x32xbf16>
    %275 = arith.truncf %272 : vector<16x32xf32> to vector<16x32xbf16>
    %cst_129 = arith.constant dense<0.000000e+00> : vector<16x32xf32>
    %276 = tpu.matmul %275, %274, %cst_129 {dimension_numbers = #tpu.dot_dimension_numbers<[1], [0], [0], [1], [0, 0, 1, 1], [], []>} : vector<16x32xbf16>, vector<32x32xbf16>, vector<16x32xf32> -> vector<16x32xf32>
    %277 = vector.extract_strided_slice %4 {offsets = [25, 0], sizes = [1, 32], strides = [1, 1]} : vector<32x128xf32> to vector<1x32xf32>
    %278 = vector.broadcast %277 : vector<1x32xf32> to vector<16x32xf32>
    %279 = arith.addf %276, %278 : vector<16x32xf32>
    %280 = math.tanh %279 : vector<16x32xf32>
    %cst_130 = arith.constant 0.416666657 : f32
    %281 = vector.broadcast %cst_130 : f32 to vector<16x32xf32>
    %282 = arith.mulf %281, %280 : vector<16x32xf32>
    %283 = arith.addf %248, %282 : vector<16x32xf32>
    %c1_131 = arith.constant 1 : index
    %c0_132 = arith.constant 0 : index
    %c0_133 = arith.constant 0 : index
    %284 = vector.load %arg5[%c1_131, %c0_132, %c0_133] : memref<2x32x128xf32, #tpu.memory_space<vmem>>, vector<1x32x128xf32>
    %285 = vector.shape_cast %284 : vector<1x32x128xf32> to vector<32x128xf32>
    %286 = vector.extract_strided_slice %285 {offsets = [0, 0], sizes = [1, 32], strides = [1, 1]} : vector<32x128xf32> to vector<1x32xf32>
    %287 = vector.extract_strided_slice %285 {offsets = [1, 0], sizes = [1, 32], strides = [1, 1]} : vector<32x128xf32> to vector<1x32xf32>
    %cst_134 = arith.constant dense<0.000000e+00> : vector<16xf32>
    %288 = vector.multi_reduction <add>, %283, %cst_134 [1] : vector<16x32xf32> to vector<16xf32>
    %289 = vector.shape_cast %288 : vector<16xf32> to vector<16x1xf32>
    %cst_135 = arith.constant 3.200000e+01 : f32
    %290 = vector.broadcast %cst_135 : f32 to vector<16x1xf32>
    %291 = arith.divf %289, %290 : vector<16x1xf32>
    %292 = vector.broadcast %291 : vector<16x1xf32> to vector<16x32xf32>
    %293 = arith.subf %283, %292 : vector<16x32xf32>
    %294 = arith.mulf %293, %293 : vector<16x32xf32>
    %cst_136 = arith.constant dense<0.000000e+00> : vector<16xf32>
    %295 = vector.multi_reduction <add>, %294, %cst_136 [1] : vector<16x32xf32> to vector<16xf32>
    %296 = vector.shape_cast %295 : vector<16xf32> to vector<16x1xf32>
    %cst_137 = arith.constant 3.200000e+01 : f32
    %297 = vector.broadcast %cst_137 : f32 to vector<16x1xf32>
    %298 = arith.divf %296, %297 : vector<16x1xf32>
    %299 = vector.broadcast %291 : vector<16x1xf32> to vector<16x32xf32>
    %300 = arith.subf %283, %299 : vector<16x32xf32>
    %cst_138 = arith.constant 9.99999974E-6 : f32
    %301 = vector.broadcast %cst_138 : f32 to vector<16x1xf32>
    %302 = arith.addf %298, %301 : vector<16x1xf32>
    %303 = math.rsqrt %302 : vector<16x1xf32>
    %304 = vector.broadcast %303 : vector<16x1xf32> to vector<16x32xf32>
    %305 = arith.mulf %300, %304 : vector<16x32xf32>
    %306 = vector.broadcast %286 : vector<1x32xf32> to vector<16x32xf32>
    %307 = arith.mulf %305, %306 : vector<16x32xf32>
    %308 = vector.broadcast %287 : vector<1x32xf32> to vector<16x32xf32>
    %309 = arith.addf %307, %308 : vector<16x32xf32>
    %c1_139 = arith.constant 1 : index
    %c0_140 = arith.constant 0 : index
    %c0_141 = arith.constant 0 : index
    %310 = vector.load %arg4[%c1_139, %c0_140, %c0_141] : memref<2x160x128xbf16, #tpu.memory_space<vmem>>, vector<1x32x128xbf16>
    %311 = vector.shape_cast %310 : vector<1x32x128xbf16> to vector<32x128xbf16>
    %312 = arith.truncf %309 : vector<16x32xf32> to vector<16x32xbf16>
    %cst_142 = arith.constant dense<0.000000e+00> : vector<16x128xf32>
    %313 = tpu.matmul %312, %311, %cst_142 {dimension_numbers = #tpu.dot_dimension_numbers<[1], [0], [0], [1], [0, 0, 1, 1], [], []>} : vector<16x32xbf16>, vector<32x128xbf16>, vector<16x128xf32> -> vector<16x128xf32>
    %314 = vector.extract_strided_slice %285 {offsets = [2, 0], sizes = [1, 128], strides = [1, 1]} : vector<32x128xf32> to vector<1x128xf32>
    %315 = vector.broadcast %314 : vector<1x128xf32> to vector<16x128xf32>
    %316 = arith.addf %313, %315 : vector<16x128xf32>
    %317 = vector.extract_strided_slice %316 {offsets = [0, 0], sizes = [16, 64], strides = [1, 1]} : vector<16x128xf32> to vector<16x64xf32>
    %318 = vector.extract_strided_slice %316 {offsets = [0, 64], sizes = [16, 64], strides = [1, 1]} : vector<16x128xf32> to vector<16x64xf32>
    %319 = arith.truncf %317 : vector<16x64xf32> to vector<16x64xbf16>
    %cst_143 = arith.constant dense<0.000000e+00> : vector<64x64xf32>
    %320 = tpu.matmul %2, %319, %cst_143 {dimension_numbers = #tpu.dot_dimension_numbers<[1], [0], [0], [1], [0, 0, 1, 1], [], []>} : vector<64x16xbf16>, vector<16x64xbf16>, vector<64x64xf32> -> vector<64x64xf32>
    %321 = vector.extract_strided_slice %285 {offsets = [4, 0], sizes = [1, 64], strides = [1, 1]} : vector<32x128xf32> to vector<1x64xf32>
    %322 = vector.extract_strided_slice %285 {offsets = [11, 0], sizes = [1, 64], strides = [1, 1]} : vector<32x128xf32> to vector<1x64xf32>
    %323 = vector.extract_strided_slice %320 {offsets = [0, 0], sizes = [16, 64], strides = [1, 1]} : vector<64x64xf32> to vector<16x64xf32>
    %324 = vector.broadcast %322 : vector<1x64xf32> to vector<16x64xf32>
    %325 = arith.mulf %324, %323 : vector<16x64xf32>
    %326 = vector.broadcast %321 : vector<1x64xf32> to vector<16x64xf32>
    %327 = arith.addf %326, %325 : vector<16x64xf32>
    %328 = vector.extract_strided_slice %285 {offsets = [10, 0], sizes = [1, 64], strides = [1, 1]} : vector<32x128xf32> to vector<1x64xf32>
    %329 = vector.extract_strided_slice %320 {offsets = [16, 0], sizes = [16, 64], strides = [1, 1]} : vector<64x64xf32> to vector<16x64xf32>
    %330 = vector.broadcast %328 : vector<1x64xf32> to vector<16x64xf32>
    %331 = arith.mulf %330, %329 : vector<16x64xf32>
    %332 = arith.addf %327, %331 : vector<16x64xf32>
    %333 = vector.extract_strided_slice %285 {offsets = [9, 0], sizes = [1, 64], strides = [1, 1]} : vector<32x128xf32> to vector<1x64xf32>
    %334 = vector.extract_strided_slice %320 {offsets = [32, 0], sizes = [16, 64], strides = [1, 1]} : vector<64x64xf32> to vector<16x64xf32>
    %335 = vector.broadcast %333 : vector<1x64xf32> to vector<16x64xf32>
    %336 = arith.mulf %335, %334 : vector<16x64xf32>
    %337 = arith.addf %332, %336 : vector<16x64xf32>
    %338 = vector.extract_strided_slice %285 {offsets = [8, 0], sizes = [1, 64], strides = [1, 1]} : vector<32x128xf32> to vector<1x64xf32>
    %339 = vector.extract_strided_slice %320 {offsets = [48, 0], sizes = [16, 64], strides = [1, 1]} : vector<64x64xf32> to vector<16x64xf32>
    %340 = vector.broadcast %338 : vector<1x64xf32> to vector<16x64xf32>
    %341 = arith.mulf %340, %339 : vector<16x64xf32>
    %342 = arith.addf %337, %341 : vector<16x64xf32>
    %cst_144 = arith.constant 0.000000e+00 : f32
    %343 = vector.broadcast %cst_144 : f32 to vector<16x64xf32>
    %344 = arith.subf %343, %342 : vector<16x64xf32>
    %345 = math.exp %344 : vector<16x64xf32>
    %cst_145 = arith.constant 1.000000e+00 : f32
    %346 = vector.broadcast %cst_145 : f32 to vector<16x64xf32>
    %347 = arith.addf %346, %345 : vector<16x64xf32>
    %cst_146 = arith.constant 1.000000e+00 : f32
    %348 = vector.broadcast %cst_146 : f32 to vector<16x64xf32>
    %349 = arith.divf %348, %347 : vector<16x64xf32>
    %350 = arith.mulf %342, %349 : vector<16x64xf32>
    %351 = vector.broadcast %1 : vector<16x1xf32> to vector<16x64xf32>
    %352 = arith.mulf %350, %351 : vector<16x64xf32>
    %c1_147 = arith.constant 1 : index
    %c32_148 = arith.constant 32 : index
    %c0_149 = arith.constant 0 : index
    %353 = vector.load %arg4[%c1_147, %c32_148, %c0_149] : memref<2x160x128xbf16, #tpu.memory_space<vmem>>, vector<1x64x128xbf16>
    %354 = vector.shape_cast %353 : vector<1x64x128xbf16> to vector<64x128xbf16>
    %355 = arith.truncf %352 : vector<16x64xf32> to vector<16x64xbf16>
    %cst_150 = arith.constant dense<0.000000e+00> : vector<16x128xf32>
    %356 = tpu.matmul %355, %354, %cst_150 {dimension_numbers = #tpu.dot_dimension_numbers<[1], [0], [0], [1], [0, 0, 1, 1], [], []>} : vector<16x64xbf16>, vector<64x128xbf16>, vector<16x128xf32> -> vector<16x128xf32>
    %357 = vector.extract_strided_slice %285 {offsets = [3, 0], sizes = [1, 128], strides = [1, 1]} : vector<32x128xf32> to vector<1x128xf32>
    %358 = vector.broadcast %357 : vector<1x128xf32> to vector<16x128xf32>
    %359 = arith.addf %356, %358 : vector<16x128xf32>
    %360 = vector.extract_strided_slice %359 {offsets = [0, 0], sizes = [16, 64], strides = [1, 1]} : vector<16x128xf32> to vector<16x64xf32>
    %cst_151 = arith.constant 0.000000e+00 : f32
    %361 = vector.broadcast %cst_151 : f32 to vector<16x64xf32>
    %362 = arith.maximumf %360, %361 : vector<16x64xf32>
    %363 = math.absf %360 : vector<16x64xf32>
    %cst_152 = arith.constant 0.000000e+00 : f32
    %364 = vector.broadcast %cst_152 : f32 to vector<16x64xf32>
    %365 = arith.subf %364, %363 : vector<16x64xf32>
    %366 = math.exp %365 : vector<16x64xf32>
    %cst_153 = arith.constant 1.000000e+00 : f32
    %367 = vector.broadcast %cst_153 : f32 to vector<16x64xf32>
    %368 = arith.addf %367, %366 : vector<16x64xf32>
    %369 = math.log %368 : vector<16x64xf32>
    %370 = arith.addf %362, %369 : vector<16x64xf32>
    %371 = vector.extract_strided_slice %359 {offsets = [0, 64], sizes = [16, 8], strides = [1, 1]} : vector<16x128xf32> to vector<16x8xf32>
    %372 = vector.extract_strided_slice %359 {offsets = [0, 72], sizes = [16, 8], strides = [1, 1]} : vector<16x128xf32> to vector<16x8xf32>
    %373 = vector.extract_strided_slice %285 {offsets = [12, 0], sizes = [8, 64], strides = [1, 1]} : vector<32x128xf32> to vector<8x64xf32>
    %374 = vector.shape_cast %370 : vector<16x64xf32> to vector<16x1x64xf32>
    %375 = vector.shape_cast %373 : vector<8x64xf32> to vector<1x8x64xf32>
    %376 = vector.broadcast %374 : vector<16x1x64xf32> to vector<16x8x64xf32>
    %377 = vector.broadcast %375 : vector<1x8x64xf32> to vector<16x8x64xf32>
    %378 = arith.mulf %376, %377 : vector<16x8x64xf32>
    %379 = math.exp %378 : vector<16x8x64xf32>
    %380 = arith.mulf %370, %352 : vector<16x64xf32>
    %381 = vector.shape_cast %380 : vector<16x64xf32> to vector<16x1x64xf32>
    %382 = vector.shape_cast %371 : vector<16x8xf32> to vector<16x8x1xf32>
    %383 = vector.broadcast %381 : vector<16x1x64xf32> to vector<16x8x64xf32>
    %384 = vector.broadcast %382 : vector<16x8x1xf32> to vector<16x8x64xf32>
    %385 = arith.mulf %383, %384 : vector<16x8x64xf32>
    %386 = vector.extract_strided_slice %379 {offsets = [0, 0, 0], sizes = [8, 8, 64], strides = [1, 1, 1]} : vector<16x8x64xf32> to vector<8x8x64xf32>
    %c0_154 = arith.constant 0 : index
    %c0_155 = arith.constant 0 : index
    %c0_156 = arith.constant 0 : index
    %387 = vector.load %arg8[%c0_154, %c0_155, %c0_156] : memref<8x16x64xf32, #tpu.memory_space<vmem>>, vector<8x8x64xf32>
    tpu.vector_store %arg8[%c0_154, %c0_155, %c0_156], %386 {strides = array<i32>} : memref<8x16x64xf32, #tpu.memory_space<vmem>>, vector<8x8x64xf32>,
    %388 = vector.extract_strided_slice %379 {offsets = [8, 0, 0], sizes = [8, 8, 64], strides = [1, 1, 1]} : vector<16x8x64xf32> to vector<8x8x64xf32>
    %c0_157 = arith.constant 0 : index
    %c8_158 = arith.constant 8 : index
    %c0_159 = arith.constant 0 : index
    %389 = vector.load %arg8[%c0_157, %c8_158, %c0_159] : memref<8x16x64xf32, #tpu.memory_space<vmem>>, vector<8x8x64xf32>
    tpu.vector_store %arg8[%c0_157, %c8_158, %c0_159], %388 {strides = array<i32>} : memref<8x16x64xf32, #tpu.memory_space<vmem>>, vector<8x8x64xf32>,
    %390 = vector.extract_strided_slice %385 {offsets = [0, 0, 0], sizes = [8, 8, 64], strides = [1, 1, 1]} : vector<16x8x64xf32> to vector<8x8x64xf32>
    %c0_160 = arith.constant 0 : index
    %c0_161 = arith.constant 0 : index
    %c0_162 = arith.constant 0 : index
    %391 = vector.load %arg9[%c0_160, %c0_161, %c0_162] : memref<8x16x64xf32, #tpu.memory_space<vmem>>, vector<8x8x64xf32>
    tpu.vector_store %arg9[%c0_160, %c0_161, %c0_162], %390 {strides = array<i32>} : memref<8x16x64xf32, #tpu.memory_space<vmem>>, vector<8x8x64xf32>,
    %392 = vector.extract_strided_slice %385 {offsets = [8, 0, 0], sizes = [8, 8, 64], strides = [1, 1, 1]} : vector<16x8x64xf32> to vector<8x8x64xf32>
    %c0_163 = arith.constant 0 : index
    %c8_164 = arith.constant 8 : index
    %c0_165 = arith.constant 0 : index
    %393 = vector.load %arg9[%c0_163, %c8_164, %c0_165] : memref<8x16x64xf32, #tpu.memory_space<vmem>>, vector<8x8x64xf32>
    tpu.vector_store %arg9[%c0_163, %c8_164, %c0_165], %392 {strides = array<i32>} : memref<8x16x64xf32, #tpu.memory_space<vmem>>, vector<8x8x64xf32>,
    %cst_166 = arith.constant 0.000000e+00 : f32
    %394 = vector.broadcast %cst_166 : f32 to vector<16x64xf32>
    %c0_167 = arith.constant 0 : index
    %c0_168 = arith.constant 0 : index
    %c0_169 = arith.constant 0 : index
    %395 = vector.load %arg8[%c0_167, %c0_168, %c0_169] : memref<8x16x64xf32, #tpu.memory_space<vmem>>, vector<1x16x64xf32>
    %396 = vector.shape_cast %395 : vector<1x16x64xf32> to vector<16x64xf32>
    %397 = arith.mulf %396, %394 : vector<16x64xf32>
    %c0_170 = arith.constant 0 : index
    %c0_171 = arith.constant 0 : index
    %c0_172 = arith.constant 0 : index
    %398 = vector.load %arg9[%c0_170, %c0_171, %c0_172] : memref<8x16x64xf32, #tpu.memory_space<vmem>>, vector<1x16x64xf32>
    %399 = vector.shape_cast %398 : vector<1x16x64xf32> to vector<16x64xf32>
    %400 = arith.addf %397, %399 : vector<16x64xf32>
    %c0_173 = arith.constant 0 : index
    %c0_174 = arith.constant 0 : index
    %c0_175 = arith.constant 0 : index
    %401 = vector.load %arg10[%c0_173, %c0_174, %c0_175] : memref<8x16x64xf32, #tpu.memory_space<vmem>>, vector<1x16x64xf32>
    %402 = vector.shape_cast %401 : vector<1x16x64xf32> to vector<16x64xf32>
    %403 = vector.shape_cast %400 : vector<16x64xf32> to vector<1x16x64xf32>
    tpu.vector_store %arg10[%c0_173, %c0_174, %c0_175], %403 {strides = array<i32>} : memref<8x16x64xf32, #tpu.memory_space<vmem>>, vector<1x16x64xf32>,
    %c1_176 = arith.constant 1 : index
    %c0_177 = arith.constant 0 : index
    %c0_178 = arith.constant 0 : index
    %404 = vector.load %arg8[%c1_176, %c0_177, %c0_178] : memref<8x16x64xf32, #tpu.memory_space<vmem>>, vector<1x16x64xf32>
    %405 = vector.shape_cast %404 : vector<1x16x64xf32> to vector<16x64xf32>
    %406 = arith.mulf %405, %400 : vector<16x64xf32>
    %c1_179 = arith.constant 1 : index
    %c0_180 = arith.constant 0 : index
    %c0_181 = arith.constant 0 : index
    %407 = vector.load %arg9[%c1_179, %c0_180, %c0_181] : memref<8x16x64xf32, #tpu.memory_space<vmem>>, vector<1x16x64xf32>
    %408 = vector.shape_cast %407 : vector<1x16x64xf32> to vector<16x64xf32>
    %409 = arith.addf %406, %408 : vector<16x64xf32>
    %c1_182 = arith.constant 1 : index
    %c0_183 = arith.constant 0 : index
    %c0_184 = arith.constant 0 : index
    %410 = vector.load %arg10[%c1_182, %c0_183, %c0_184] : memref<8x16x64xf32, #tpu.memory_space<vmem>>, vector<1x16x64xf32>
    %411 = vector.shape_cast %410 : vector<1x16x64xf32> to vector<16x64xf32>
    %412 = vector.shape_cast %409 : vector<16x64xf32> to vector<1x16x64xf32>
    tpu.vector_store %arg10[%c1_182, %c0_183, %c0_184], %412 {strides = array<i32>} : memref<8x16x64xf32, #tpu.memory_space<vmem>>, vector<1x16x64xf32>,
    %c2_185 = arith.constant 2 : index
    %c0_186 = arith.constant 0 : index
    %c0_187 = arith.constant 0 : index
    %413 = vector.load %arg8[%c2_185, %c0_186, %c0_187] : memref<8x16x64xf32, #tpu.memory_space<vmem>>, vector<1x16x64xf32>
    %414 = vector.shape_cast %413 : vector<1x16x64xf32> to vector<16x64xf32>
    %415 = arith.mulf %414, %409 : vector<16x64xf32>
    %c2_188 = arith.constant 2 : index
    %c0_189 = arith.constant 0 : index
    %c0_190 = arith.constant 0 : index
    %416 = vector.load %arg9[%c2_188, %c0_189, %c0_190] : memref<8x16x64xf32, #tpu.memory_space<vmem>>, vector<1x16x64xf32>
    %417 = vector.shape_cast %416 : vector<1x16x64xf32> to vector<16x64xf32>
    %418 = arith.addf %415, %417 : vector<16x64xf32>
    %c2_191 = arith.constant 2 : index
    %c0_192 = arith.constant 0 : index
    %c0_193 = arith.constant 0 : index
    %419 = vector.load %arg10[%c2_191, %c0_192, %c0_193] : memref<8x16x64xf32, #tpu.memory_space<vmem>>, vector<1x16x64xf32>
    %420 = vector.shape_cast %419 : vector<1x16x64xf32> to vector<16x64xf32>
    %421 = vector.shape_cast %418 : vector<16x64xf32> to vector<1x16x64xf32>
    tpu.vector_store %arg10[%c2_191, %c0_192, %c0_193], %421 {strides = array<i32>} : memref<8x16x64xf32, #tpu.memory_space<vmem>>, vector<1x16x64xf32>,
    %c3_194 = arith.constant 3 : index
    %c0_195 = arith.constant 0 : index
    %c0_196 = arith.constant 0 : index
    %422 = vector.load %arg8[%c3_194, %c0_195, %c0_196] : memref<8x16x64xf32, #tpu.memory_space<vmem>>, vector<1x16x64xf32>
    %423 = vector.shape_cast %422 : vector<1x16x64xf32> to vector<16x64xf32>
    %424 = arith.mulf %423, %418 : vector<16x64xf32>
    %c3_197 = arith.constant 3 : index
    %c0_198 = arith.constant 0 : index
    %c0_199 = arith.constant 0 : index
    %425 = vector.load %arg9[%c3_197, %c0_198, %c0_199] : memref<8x16x64xf32, #tpu.memory_space<vmem>>, vector<1x16x64xf32>
    %426 = vector.shape_cast %425 : vector<1x16x64xf32> to vector<16x64xf32>
    %427 = arith.addf %424, %426 : vector<16x64xf32>
    %c3_200 = arith.constant 3 : index
    %c0_201 = arith.constant 0 : index
    %c0_202 = arith.constant 0 : index
    %428 = vector.load %arg10[%c3_200, %c0_201, %c0_202] : memref<8x16x64xf32, #tpu.memory_space<vmem>>, vector<1x16x64xf32>
    %429 = vector.shape_cast %428 : vector<1x16x64xf32> to vector<16x64xf32>
    %430 = vector.shape_cast %427 : vector<16x64xf32> to vector<1x16x64xf32>
    tpu.vector_store %arg10[%c3_200, %c0_201, %c0_202], %430 {strides = array<i32>} : memref<8x16x64xf32, #tpu.memory_space<vmem>>, vector<1x16x64xf32>,
    %c4_203 = arith.constant 4 : index
    %c0_204 = arith.constant 0 : index
    %c0_205 = arith.constant 0 : index
    %431 = vector.load %arg8[%c4_203, %c0_204, %c0_205] : memref<8x16x64xf32, #tpu.memory_space<vmem>>, vector<1x16x64xf32>
    %432 = vector.shape_cast %431 : vector<1x16x64xf32> to vector<16x64xf32>
    %433 = arith.mulf %432, %427 : vector<16x64xf32>
    %c4_206 = arith.constant 4 : index
    %c0_207 = arith.constant 0 : index
    %c0_208 = arith.constant 0 : index
    %434 = vector.load %arg9[%c4_206, %c0_207, %c0_208] : memref<8x16x64xf32, #tpu.memory_space<vmem>>, vector<1x16x64xf32>
    %435 = vector.shape_cast %434 : vector<1x16x64xf32> to vector<16x64xf32>
    %436 = arith.addf %433, %435 : vector<16x64xf32>
    %c4_209 = arith.constant 4 : index
    %c0_210 = arith.constant 0 : index
    %c0_211 = arith.constant 0 : index
    %437 = vector.load %arg10[%c4_209, %c0_210, %c0_211] : memref<8x16x64xf32, #tpu.memory_space<vmem>>, vector<1x16x64xf32>
    %438 = vector.shape_cast %437 : vector<1x16x64xf32> to vector<16x64xf32>
    %439 = vector.shape_cast %436 : vector<16x64xf32> to vector<1x16x64xf32>
    tpu.vector_store %arg10[%c4_209, %c0_210, %c0_211], %439 {strides = array<i32>} : memref<8x16x64xf32, #tpu.memory_space<vmem>>, vector<1x16x64xf32>,
    %c5_212 = arith.constant 5 : index
    %c0_213 = arith.constant 0 : index
    %c0_214 = arith.constant 0 : index
    %440 = vector.load %arg8[%c5_212, %c0_213, %c0_214] : memref<8x16x64xf32, #tpu.memory_space<vmem>>, vector<1x16x64xf32>
    %441 = vector.shape_cast %440 : vector<1x16x64xf32> to vector<16x64xf32>
    %442 = arith.mulf %441, %436 : vector<16x64xf32>
    %c5_215 = arith.constant 5 : index
    %c0_216 = arith.constant 0 : index
    %c0_217 = arith.constant 0 : index
    %443 = vector.load %arg9[%c5_215, %c0_216, %c0_217] : memref<8x16x64xf32, #tpu.memory_space<vmem>>, vector<1x16x64xf32>
    %444 = vector.shape_cast %443 : vector<1x16x64xf32> to vector<16x64xf32>
    %445 = arith.addf %442, %444 : vector<16x64xf32>
    %c5_218 = arith.constant 5 : index
    %c0_219 = arith.constant 0 : index
    %c0_220 = arith.constant 0 : index
    %446 = vector.load %arg10[%c5_218, %c0_219, %c0_220] : memref<8x16x64xf32, #tpu.memory_space<vmem>>, vector<1x16x64xf32>
    %447 = vector.shape_cast %446 : vector<1x16x64xf32> to vector<16x64xf32>
    %448 = vector.shape_cast %445 : vector<16x64xf32> to vector<1x16x64xf32>
    tpu.vector_store %arg10[%c5_218, %c0_219, %c0_220], %448 {strides = array<i32>} : memref<8x16x64xf32, #tpu.memory_space<vmem>>, vector<1x16x64xf32>,
    %c6_221 = arith.constant 6 : index
    %c0_222 = arith.constant 0 : index
    %c0_223 = arith.constant 0 : index
    %449 = vector.load %arg8[%c6_221, %c0_222, %c0_223] : memref<8x16x64xf32, #tpu.memory_space<vmem>>, vector<1x16x64xf32>
    %450 = vector.shape_cast %449 : vector<1x16x64xf32> to vector<16x64xf32>
    %451 = arith.mulf %450, %445 : vector<16x64xf32>
    %c6_224 = arith.constant 6 : index
    %c0_225 = arith.constant 0 : index
    %c0_226 = arith.constant 0 : index
    %452 = vector.load %arg9[%c6_224, %c0_225, %c0_226] : memref<8x16x64xf32, #tpu.memory_space<vmem>>, vector<1x16x64xf32>
    %453 = vector.shape_cast %452 : vector<1x16x64xf32> to vector<16x64xf32>
    %454 = arith.addf %451, %453 : vector<16x64xf32>
    %c6_227 = arith.constant 6 : index
    %c0_228 = arith.constant 0 : index
    %c0_229 = arith.constant 0 : index
    %455 = vector.load %arg10[%c6_227, %c0_228, %c0_229] : memref<8x16x64xf32, #tpu.memory_space<vmem>>, vector<1x16x64xf32>
    %456 = vector.shape_cast %455 : vector<1x16x64xf32> to vector<16x64xf32>
    %457 = vector.shape_cast %454 : vector<16x64xf32> to vector<1x16x64xf32>
    tpu.vector_store %arg10[%c6_227, %c0_228, %c0_229], %457 {strides = array<i32>} : memref<8x16x64xf32, #tpu.memory_space<vmem>>, vector<1x16x64xf32>,
    %c7_230 = arith.constant 7 : index
    %c0_231 = arith.constant 0 : index
    %c0_232 = arith.constant 0 : index
    %458 = vector.load %arg8[%c7_230, %c0_231, %c0_232] : memref<8x16x64xf32, #tpu.memory_space<vmem>>, vector<1x16x64xf32>
    %459 = vector.shape_cast %458 : vector<1x16x64xf32> to vector<16x64xf32>
    %460 = arith.mulf %459, %454 : vector<16x64xf32>
    %c7_233 = arith.constant 7 : index
    %c0_234 = arith.constant 0 : index
    %c0_235 = arith.constant 0 : index
    %461 = vector.load %arg9[%c7_233, %c0_234, %c0_235] : memref<8x16x64xf32, #tpu.memory_space<vmem>>, vector<1x16x64xf32>
    %462 = vector.shape_cast %461 : vector<1x16x64xf32> to vector<16x64xf32>
    %463 = arith.addf %460, %462 : vector<16x64xf32>
    %c7_236 = arith.constant 7 : index
    %c0_237 = arith.constant 0 : index
    %c0_238 = arith.constant 0 : index
    %464 = vector.load %arg10[%c7_236, %c0_237, %c0_238] : memref<8x16x64xf32, #tpu.memory_space<vmem>>, vector<1x16x64xf32>
    %465 = vector.shape_cast %464 : vector<1x16x64xf32> to vector<16x64xf32>
    %466 = vector.shape_cast %463 : vector<16x64xf32> to vector<1x16x64xf32>
    tpu.vector_store %arg10[%c7_236, %c0_237, %c0_238], %466 {strides = array<i32>} : memref<8x16x64xf32, #tpu.memory_space<vmem>>, vector<1x16x64xf32>,
    %c0_239 = arith.constant 0 : index
    %c0_240 = arith.constant 0 : index
    %c0_241 = arith.constant 0 : index
    %467 = vector.load %arg10[%c0_239, %c0_240, %c0_241] : memref<8x16x64xf32, #tpu.memory_space<vmem>>, vector<8x16x64xf32>
    %468 = vector.extract_strided_slice %467 {offsets = [0, 0, 0], sizes = [8, 8, 64], strides = [1, 1, 1]} : vector<8x16x64xf32> to vector<8x8x64xf32>
    %469 = vector.extract_strided_slice %467 {offsets = [0, 8, 0], sizes = [8, 8, 64], strides = [1, 1, 1]} : vector<8x16x64xf32> to vector<8x8x64xf32>
    %470 = tpu.concatenate %468, %469 in 0 : vector<8x8x64xf32>, vector<8x8x64xf32> -> vector<16x8x64xf32>
    %471 = vector.extract_strided_slice %285 {offsets = [5, 0], sizes = [1, 64], strides = [1, 1]} : vector<32x128xf32> to vector<1x64xf32>
    %472 = vector.broadcast %471 : vector<1x64xf32> to vector<16x64xf32>
    %473 = arith.mulf %352, %472 : vector<16x64xf32>
    %474 = vector.shape_cast %372 : vector<16x8xf32> to vector<16x8x1xf32>
    %475 = vector.broadcast %474 : vector<16x8x1xf32> to vector<16x8x64xf32>
    %476 = arith.mulf %475, %470 : vector<16x8x64xf32>
    %cst_242 = arith.constant dense<0.000000e+00> : vector<16x64xf32>
    %477 = vector.multi_reduction <add>, %476, %cst_242 [1] : vector<16x8x64xf32> to vector<16x64xf32>
    %478 = arith.addf %473, %477 : vector<16x64xf32>
    %cst_243 = arith.constant 0.000000e+00 : f32
    %479 = vector.broadcast %cst_243 : f32 to vector<16x64xf32>
    %480 = arith.subf %479, %318 : vector<16x64xf32>
    %481 = math.exp %480 : vector<16x64xf32>
    %cst_244 = arith.constant 1.000000e+00 : f32
    %482 = vector.broadcast %cst_244 : f32 to vector<16x64xf32>
    %483 = arith.addf %482, %481 : vector<16x64xf32>
    %cst_245 = arith.constant 1.000000e+00 : f32
    %484 = vector.broadcast %cst_245 : f32 to vector<16x64xf32>
    %485 = arith.divf %484, %483 : vector<16x64xf32>
    %486 = arith.mulf %485, %478 : vector<16x64xf32>
    %c1_246 = arith.constant 1 : index
    %c96_247 = arith.constant 96 : index
    %c0_248 = arith.constant 0 : index
    %487 = vector.load %arg4[%c1_246, %c96_247, %c0_248] : memref<2x160x128xbf16, #tpu.memory_space<vmem>>, vector<1x64x32xbf16>
    %488 = vector.shape_cast %487 : vector<1x64x32xbf16> to vector<64x32xbf16>
    %489 = arith.truncf %486 : vector<16x64xf32> to vector<16x64xbf16>
    %cst_249 = arith.constant dense<0.000000e+00> : vector<16x32xf32>
    %490 = tpu.matmul %489, %488, %cst_249 {dimension_numbers = #tpu.dot_dimension_numbers<[1], [0], [0], [1], [0, 0, 1, 1], [], []>} : vector<16x64xbf16>, vector<64x32xbf16>, vector<16x32xf32> -> vector<16x32xf32>
    %491 = vector.extract_strided_slice %285 {offsets = [6, 0], sizes = [1, 32], strides = [1, 1]} : vector<32x128xf32> to vector<1x32xf32>
    %492 = vector.broadcast %491 : vector<1x32xf32> to vector<16x32xf32>
    %493 = arith.addf %490, %492 : vector<16x32xf32>
    %494 = arith.addf %493, %283 : vector<16x32xf32>
    %495 = vector.extract_strided_slice %285 {offsets = [20, 0], sizes = [1, 32], strides = [1, 1]} : vector<32x128xf32> to vector<1x32xf32>
    %496 = vector.extract_strided_slice %285 {offsets = [22, 0], sizes = [1, 32], strides = [1, 1]} : vector<32x128xf32> to vector<1x32xf32>
    %cst_250 = arith.constant dense<0.000000e+00> : vector<16xf32>
    %497 = vector.multi_reduction <add>, %494, %cst_250 [1] : vector<16x32xf32> to vector<16xf32>
    %498 = vector.shape_cast %497 : vector<16xf32> to vector<16x1xf32>
    %cst_251 = arith.constant 3.200000e+01 : f32
    %499 = vector.broadcast %cst_251 : f32 to vector<16x1xf32>
    %500 = arith.divf %498, %499 : vector<16x1xf32>
    %501 = vector.broadcast %500 : vector<16x1xf32> to vector<16x32xf32>
    %502 = arith.subf %494, %501 : vector<16x32xf32>
    %503 = arith.mulf %502, %502 : vector<16x32xf32>
    %cst_252 = arith.constant dense<0.000000e+00> : vector<16xf32>
    %504 = vector.multi_reduction <add>, %503, %cst_252 [1] : vector<16x32xf32> to vector<16xf32>
    %505 = vector.shape_cast %504 : vector<16xf32> to vector<16x1xf32>
    %cst_253 = arith.constant 3.200000e+01 : f32
    %506 = vector.broadcast %cst_253 : f32 to vector<16x1xf32>
    %507 = arith.divf %505, %506 : vector<16x1xf32>
    %508 = vector.broadcast %500 : vector<16x1xf32> to vector<16x32xf32>
    %509 = arith.subf %494, %508 : vector<16x32xf32>
    %cst_254 = arith.constant 9.99999974E-6 : f32
    %510 = vector.broadcast %cst_254 : f32 to vector<16x1xf32>
    %511 = arith.addf %507, %510 : vector<16x1xf32>
    %512 = math.rsqrt %511 : vector<16x1xf32>
    %513 = vector.broadcast %512 : vector<16x1xf32> to vector<16x32xf32>
    %514 = arith.mulf %509, %513 : vector<16x32xf32>
    %515 = vector.broadcast %495 : vector<1x32xf32> to vector<16x32xf32>
    %516 = arith.mulf %514, %515 : vector<16x32xf32>
    %517 = vector.broadcast %496 : vector<1x32xf32> to vector<16x32xf32>
    %518 = arith.addf %516, %517 : vector<16x32xf32>
    %c1_255 = arith.constant 1 : index
    %c96_256 = arith.constant 96 : index
    %c64_257 = arith.constant 64 : index
    %519 = vector.load %arg4[%c1_255, %c96_256, %c64_257] : memref<2x160x128xbf16, #tpu.memory_space<vmem>>, vector<1x32x32xbf16>
    %520 = vector.shape_cast %519 : vector<1x32x32xbf16> to vector<32x32xbf16>
    %521 = arith.truncf %518 : vector<16x32xf32> to vector<16x32xbf16>
    %cst_258 = arith.constant dense<0.000000e+00> : vector<16x32xf32>
    %522 = tpu.matmul %521, %520, %cst_258 {dimension_numbers = #tpu.dot_dimension_numbers<[1], [0], [0], [1], [0, 0, 1, 1], [], []>} : vector<16x32xbf16>, vector<32x32xbf16>, vector<16x32xf32> -> vector<16x32xf32>
    %523 = vector.extract_strided_slice %285 {offsets = [24, 0], sizes = [1, 32], strides = [1, 1]} : vector<32x128xf32> to vector<1x32xf32>
    %524 = vector.broadcast %523 : vector<1x32xf32> to vector<16x32xf32>
    %525 = arith.addf %522, %524 : vector<16x32xf32>
    %526 = math.tanh %525 : vector<16x32xf32>
    %cst_259 = arith.constant 0.833333313 : f32
    %527 = vector.broadcast %cst_259 : f32 to vector<16x32xf32>
    %528 = arith.mulf %527, %526 : vector<16x32xf32>
    %529 = arith.addf %494, %528 : vector<16x32xf32>
    %530 = vector.extract_strided_slice %285 {offsets = [21, 0], sizes = [1, 32], strides = [1, 1]} : vector<32x128xf32> to vector<1x32xf32>
    %531 = vector.extract_strided_slice %285 {offsets = [23, 0], sizes = [1, 32], strides = [1, 1]} : vector<32x128xf32> to vector<1x32xf32>
    %cst_260 = arith.constant dense<0.000000e+00> : vector<16xf32>
    %532 = vector.multi_reduction <add>, %529, %cst_260 [1] : vector<16x32xf32> to vector<16xf32>
    %533 = vector.shape_cast %532 : vector<16xf32> to vector<16x1xf32>
    %cst_261 = arith.constant 3.200000e+01 : f32
    %534 = vector.broadcast %cst_261 : f32 to vector<16x1xf32>
    %535 = arith.divf %533, %534 : vector<16x1xf32>
    %536 = vector.broadcast %535 : vector<16x1xf32> to vector<16x32xf32>
    %537 = arith.subf %529, %536 : vector<16x32xf32>
    %538 = arith.mulf %537, %537 : vector<16x32xf32>
    %cst_262 = arith.constant dense<0.000000e+00> : vector<16xf32>
    %539 = vector.multi_reduction <add>, %538, %cst_262 [1] : vector<16x32xf32> to vector<16xf32>
    %540 = vector.shape_cast %539 : vector<16xf32> to vector<16x1xf32>
    %cst_263 = arith.constant 3.200000e+01 : f32
    %541 = vector.broadcast %cst_263 : f32 to vector<16x1xf32>
    %542 = arith.divf %540, %541 : vector<16x1xf32>
    %543 = vector.broadcast %535 : vector<16x1xf32> to vector<16x32xf32>
    %544 = arith.subf %529, %543 : vector<16x32xf32>
    %cst_264 = arith.constant 9.99999974E-6 : f32
    %545 = vector.broadcast %cst_264 : f32 to vector<16x1xf32>
    %546 = arith.addf %542, %545 : vector<16x1xf32>
    %547 = math.rsqrt %546 : vector<16x1xf32>
    %548 = vector.broadcast %547 : vector<16x1xf32> to vector<16x32xf32>
    %549 = arith.mulf %544, %548 : vector<16x32xf32>
    %550 = vector.broadcast %530 : vector<1x32xf32> to vector<16x32xf32>
    %551 = arith.mulf %549, %550 : vector<16x32xf32>
    %552 = vector.broadcast %531 : vector<1x32xf32> to vector<16x32xf32>
    %553 = arith.addf %551, %552 : vector<16x32xf32>
    %c1_265 = arith.constant 1 : index
    %c128_266 = arith.constant 128 : index
    %c64_267 = arith.constant 64 : index
    %554 = vector.load %arg4[%c1_265, %c128_266, %c64_267] : memref<2x160x128xbf16, #tpu.memory_space<vmem>>, vector<1x32x32xbf16>
    %555 = vector.shape_cast %554 : vector<1x32x32xbf16> to vector<32x32xbf16>
    %556 = arith.truncf %553 : vector<16x32xf32> to vector<16x32xbf16>
    %cst_268 = arith.constant dense<0.000000e+00> : vector<16x32xf32>
    %557 = tpu.matmul %556, %555, %cst_268 {dimension_numbers = #tpu.dot_dimension_numbers<[1], [0], [0], [1], [0, 0, 1, 1], [], []>} : vector<16x32xbf16>, vector<32x32xbf16>, vector<16x32xf32> -> vector<16x32xf32>
    %558 = vector.extract_strided_slice %285 {offsets = [25, 0], sizes = [1, 32], strides = [1, 1]} : vector<32x128xf32> to vector<1x32xf32>
    %559 = vector.broadcast %558 : vector<1x32xf32> to vector<16x32xf32>
    %560 = arith.addf %557, %559 : vector<16x32xf32>
    %561 = math.tanh %560 : vector<16x32xf32>
    %cst_269 = arith.constant 0.416666657 : f32
    %562 = vector.broadcast %cst_269 : f32 to vector<16x32xf32>
    %563 = arith.mulf %562, %561 : vector<16x32xf32>
    %564 = arith.addf %529, %563 : vector<16x32xf32>
    %c0_270 = arith.constant 0 : index
    %c0_271 = arith.constant 0 : index
    %565 = vector.load %arg6[%c0_270, %c0_271] : memref<2x32xf32, #tpu.memory_space<vmem>>, vector<1x32xf32>
    %c1_272 = arith.constant 1 : index
    %c0_273 = arith.constant 0 : index
    %566 = vector.load %arg6[%c1_272, %c0_273] : memref<2x32xf32, #tpu.memory_space<vmem>>, vector<1x32xf32>
    %cst_274 = arith.constant dense<0.000000e+00> : vector<16xf32>
    %567 = vector.multi_reduction <add>, %564, %cst_274 [1] : vector<16x32xf32> to vector<16xf32>
    %568 = vector.shape_cast %567 : vector<16xf32> to vector<16x1xf32>
    %cst_275 = arith.constant 3.200000e+01 : f32
    %569 = vector.broadcast %cst_275 : f32 to vector<16x1xf32>
    %570 = arith.divf %568, %569 : vector<16x1xf32>
    %571 = vector.broadcast %570 : vector<16x1xf32> to vector<16x32xf32>
    %572 = arith.subf %564, %571 : vector<16x32xf32>
    %573 = arith.mulf %572, %572 : vector<16x32xf32>
    %cst_276 = arith.constant dense<0.000000e+00> : vector<16xf32>
    %574 = vector.multi_reduction <add>, %573, %cst_276 [1] : vector<16x32xf32> to vector<16xf32>
    %575 = vector.shape_cast %574 : vector<16xf32> to vector<16x1xf32>
    %cst_277 = arith.constant 3.200000e+01 : f32
    %576 = vector.broadcast %cst_277 : f32 to vector<16x1xf32>
    %577 = arith.divf %575, %576 : vector<16x1xf32>
    %578 = vector.broadcast %570 : vector<16x1xf32> to vector<16x32xf32>
    %579 = arith.subf %564, %578 : vector<16x32xf32>
    %cst_278 = arith.constant 9.99999974E-6 : f32
    %580 = vector.broadcast %cst_278 : f32 to vector<16x1xf32>
    %581 = arith.addf %577, %580 : vector<16x1xf32>
    %582 = math.rsqrt %581 : vector<16x1xf32>
    %583 = vector.broadcast %582 : vector<16x1xf32> to vector<16x32xf32>
    %584 = arith.mulf %579, %583 : vector<16x32xf32>
    %585 = vector.broadcast %565 : vector<1x32xf32> to vector<16x32xf32>
    %586 = arith.mulf %584, %585 : vector<16x32xf32>
    %587 = vector.broadcast %566 : vector<1x32xf32> to vector<16x32xf32>
    %588 = arith.addf %586, %587 : vector<16x32xf32>
    %c0_279 = arith.constant 0 : index
    %c0_280 = arith.constant 0 : index
    %589 = vector.load %arg7[%c0_279, %c0_280] : memref<16x32xf32, #tpu.memory_space<vmem>>, vector<16x32xf32>
    tpu.vector_store %arg7[%c0_279, %c0_280], %588 {strides = array<i32>} : memref<16x32xf32, #tpu.memory_space<vmem>>, vector<16x32xf32>,
    return
  }
  func.func @transform_0(%arg0: i32) -> (i32, i32) {
    %c0_i32 = arith.constant 0 : i32
    %c0_i32_0 = arith.constant 0 : i32
    %c0_i32_1 = arith.constant 0 : i32
    return %c0_i32, %c0_i32_0 : i32, i32
  }
  func.func @transform_1(%arg0: i32) -> (i32, i32) {
    %c0_i32 = arith.constant 0 : i32
    %c0_i32_0 = arith.constant 0 : i32
    %c0_i32_1 = arith.constant 0 : i32
    return %c0_i32, %c0_i32_0 : i32, i32
  }
  func.func @transform_2(%arg0: i32) -> (i32, i32) {
    %c0_i32 = arith.constant 0 : i32
    %c0_i32_0 = arith.constant 0 : i32
    %c0_i32_1 = arith.constant 0 : i32
    return %c0_i32, %c0_i32_0 : i32, i32
  }
  func.func @transform_3(%arg0: i32) -> (i32, i32, i32) {
    %c0_i32 = arith.constant 0 : i32
    %c0_i32_0 = arith.constant 0 : i32
    %c0_i32_1 = arith.constant 0 : i32
    %c0_i32_2 = arith.constant 0 : i32
    return %c0_i32, %c0_i32_0, %c0_i32_1 : i32, i32, i32
  }
  func.func @transform_4(%arg0: i32) -> (i32, i32, i32) {
    %c0_i32 = arith.constant 0 : i32
    %c0_i32_0 = arith.constant 0 : i32
    %c0_i32_1 = arith.constant 0 : i32
    %c0_i32_2 = arith.constant 0 : i32
    return %c0_i32, %c0_i32_0, %c0_i32_1 : i32, i32, i32
  }
  func.func @transform_5(%arg0: i32) -> (i32, i32) {
    %c0_i32 = arith.constant 0 : i32
    %c0_i32_0 = arith.constant 0 : i32
    %c0_i32_1 = arith.constant 0 : i32
    return %c0_i32, %c0_i32_0 : i32, i32
  }
  func.func @transform_6(%arg0: i32) -> (i32, i32) {
    %c0_i32 = arith.constant 0 : i32
    %c0_i32_0 = arith.constant 0 : i32
    %c0_i32_1 = arith.constant 0 : i32
    return %c0_i32, %c0_i32_0 : i32, i32
  }
}

</mosaic_0001>

<llo_original>
// kernel: fractal_mamba_forward.1
$region0: #{fractal_mamba_forward.1}
  #allocation0 [shape = 'u32[]', space=smem, size = 0x4, offset = 0x4, fixed_abs, tag = 'smem constant byte address 0x4 - core index']
  #allocation1 [shape = 'u32[144,128]{1,0:T(1,128)}', space=vmem, size = 0x12000, scoped, tag = 'internal scratch']
  #allocation2 [shape = 'f32[8,16,64]{2,1,0:T(8,128)}', space=vmem, size = 0x10000, scoped, tag = 'scratch operand']
  #allocation3 [shape = 'f32[8,16,64]{2,1,0:T(8,128)}', space=vmem, size = 0x10000, scoped, tag = 'scratch operand']
  #allocation4 [shape = 'f32[8,16,64]{2,1,0:T(8,128)}', space=vmem, size = 0x10000, scoped, tag = 'scratch operand']
  %s0 = inlined_call_operand.vmem [shape: f32[16,32], index: 0, kind: input, shape index: {}]
  %s1 = inlined_call_operand.vmem [shape: f32[16,1], index: 1, kind: input, shape index: {}]
  %s2 = inlined_call_operand.vmem [shape: bf16[64,16], index: 2, kind: input, shape index: {}]
  %s3 = inlined_call_operand.vmem [shape: bf16[2,160,128], index: 3, kind: input, shape index: {}]
  %s4 = inlined_call_operand.vmem [shape: f32[2,32,128], index: 4, kind: input, shape index: {}]
  %s5 = inlined_call_operand.vmem [shape: f32[2,32], index: 5, kind: input, shape index: {}]
  %s6 = inlined_call_operand.hbm [shape: f32[16,32], index: 6, kind: output, shape index: {}]
  %s7 = sld [smem:[#allocation0]]
  $region34: #{fractal_mamba_forward.1} parent=0
    _
  %s9 = ssub.s32 1, %s7
  %s10 = scalar_select 0, %s9, %s7
  $region1: #{fractal_mamba_forward.1} parent=0
    #allocation5 [shape = 'u8[8192]{0}', space=vmem, size = 0x2000, scoped, tag = 'output window, operand 0, single buffered']
    #allocation6 [shape = 's32[1]{0}', space=sflag, size = 0x4, scoped, tag = 'scoped memory for fractal_mamba_forward.1']
    %11 = vsyncpa [#allocation6], 0
    // Predicated region
    $region2: #{fractal_mamba_forward.1} parent=1 // pred_check
      _
    $region3: #{fractal_mamba_forward.1} parent=1 // pred_check_branch
      %13 = sbr.rel (0) target = $region5
    $region4: #{fractal_mamba_forward.1} parent=1 // pred_region
      _
    $region5: #{fractal_mamba_forward.1} parent=1 // pred_fallthru
      _
    // Predicated region
    $region6: #{fractal_mamba_forward.1} parent=1 // pred_check
      _
    $region7: #{fractal_mamba_forward.1} parent=1 // pred_check_branch
      %15 = sbr.rel (0) target = $region9
    $region8: #{fractal_mamba_forward.1} parent=1 // pred_region
      _
    $region9: #{fractal_mamba_forward.1} parent=1 // pred_fallthru
      _
    // Predicated region
    $region10: #{fractal_mamba_forward.1} parent=1 // pred_check
      _
    $region11: #{fractal_mamba_forward.1} parent=1 // pred_check_branch
      %17 = sbr.rel (0) target = $region13
    $region12: #{fractal_mamba_forward.1} parent=1 // pred_region
      _
    $region13: #{fractal_mamba_forward.1} parent=1 // pred_fallthru
      _
    // Predicated region
    $region14: #{fractal_mamba_forward.1} parent=1 // pred_check
      _
    $region15: #{fractal_mamba_forward.1} parent=1 // pred_check_branch
      %19 = sbr.rel (0) target = $region17
    $region16: #{fractal_mamba_forward.1} parent=1 // pred_region
      _
    $region17: #{fractal_mamba_forward.1} parent=1 // pred_fallthru
      _
    // Predicated region
    $region18: #{fractal_mamba_forward.1} parent=1 // pred_check
      _
    $region19: #{fractal_mamba_forward.1} parent=1 // pred_check_branch
      %21 = sbr.rel (0) target = $region21
    $region20: #{fractal_mamba_forward.1} parent=1 // pred_region
      _
    $region21: #{fractal_mamba_forward.1} parent=1 // pred_fallthru
      _
    // Predicated region
    $region22: #{fractal_mamba_forward.1} parent=1 // pred_check
      _
    $region23: #{fractal_mamba_forward.1} parent=1 // pred_check_branch
      %23 = sbr.rel (0) target = $region25
    $region24: #{fractal_mamba_forward.1} parent=1 // pred_region
      _
    $region25: #{fractal_mamba_forward.1} parent=1 // pred_fallthru
      _
    %v25 = vld [vmem:[%s0] sm:$0xff]
    %v26 = vld [vmem:[%s0 + $0x8] sm:$0xff]
    %v27 = vld [vmem:[%s1] sm:$0xff]
    %v28 = vld [vmem:[%s1 + $0x8] sm:$0xff]
    %v29 = vld [vmem:[%s2] sm:$0xf]
    %v30 = vld [vmem:[%s2 + $0x4] sm:$0xf]
    %v31 = vld [vmem:[%s2 + $0x8] sm:$0xf]
    %v32 = vld [vmem:[%s2 + $0xc] sm:$0xf]
    %v33 = vld [vmem:[%s2 + $0x10] sm:$0xf]
    %v34 = vld [vmem:[%s2 + $0x14] sm:$0xf]
    %v35 = vld [vmem:[%s2 + $0x18] sm:$0xf]
    %v36 = vld [vmem:[%s2 + $0x1c] sm:$0xf]
    %v37 = vld [vmem:[%s4] sm:$0xff]
    %v38 = vld [vmem:[%s4 + $0x8] sm:$0xff]
    %v39 = vld [vmem:[%s4 + $0x10] sm:$0xff]
    %v40 = vld [vmem:[%s4 + $0x18] sm:$0xff]
    %vm41 = vcmask 261120
    %v42 = vsel %vm41, %v25, 0.0
    %43 = vadd.xlane.f32.xlu0 %v42
    %v44 = vpop.xlane.xlu0 %43
    %v45 = vsel %vm41, %v26, 0.0
    %46 = vadd.xlane.f32.xlu0 %v45
    %v47 = vpop.xlane.xlu0 %46
    %v48 = vrcp.pop 32.0
    %v49 = vmul.f32 %v44, %v48
    %v50 = vmul.f32 %v47, %v48
    %v51 = vsub.f32 %v25, %v49
    %v52 = vsub.f32 %v26, %v50
    %v53 = vmul.f32 %v51, %v51
    %v54 = vmul.f32 %v52, %v52
    %v55 = vsel %vm41, %v53, 0.0
    %56 = vadd.xlane.f32.xlu0 %v55
    %v57 = vpop.xlane.xlu0 %56
    %v58 = vsel %vm41, %v54, 0.0
    %59 = vadd.xlane.f32.xlu0 %v58
    %v60 = vpop.xlane.xlu0 %59
    %v61 = vmul.f32 %v57, %v48
    %v62 = vmul.f32 %v60, %v48
    %v63 = vadd.f32 %v61, 1e-05
    %v64 = vadd.f32 %v62, 1e-05
    %v65 = vrsqrt.pop %v63
    %v66 = vrsqrt.pop %v64
    %v67 = vmul.f32 %v51, %v65
    %v68 = vmul.f32 %v52, %v66
    %v69 = vlaneseq
    %v70 = vshrl.u32 %v69, 7
    %v71 = vsub.s32 0, %v70
    %v72 = vrot.slane %v37, %v71
    %v73 = vmul.f32 %v67, %v72
    %v74 = vmul.f32 %v68, %v72
    %v75 = vlaneseq
    %v76 = vshrl.u32 %v75, 7
    %v77 = vsub.s32 1, %v76
    %v78 = vrot.slane %v37, %v77
    %v79 = vadd.f32 %v73, %v78
    %v80 = vadd.f32 %v74, %v78
    %v81 = vld [vmem:[%s3] sm:$0xf]
    %v82 = vld [vmem:[%s3 + $0x4] sm:$0xf]
    %v83 = vld [vmem:[%s3 + $0x8] sm:$0xf]
    %v84 = vld [vmem:[%s3 + $0xc] sm:$0xf]
    %v85 = vpack.c.bf16 %v80, %v79
    %v86 = vlaneseq
    %v87 = vshrl.u32 %v86, 7
    %v88 = vsub.s32 2, %v87
    %v89 = vrot.slane %v37, %v88
    %v94 = vunpack.c.l.b16 %v81
    %v95 = vunpack.c.l.b16 %v82
    %v96 = vunpack.c.l.b16 %v83
    %v97 = vunpack.c.l.b16 %v84
    %v98 = vpack.c.b16 %v95, %v94
    %v99 = vpack.c.b16 %v97, %v96
    %v103 = vsel %vm41, %v85, 0
    %105 = vmatprep.subr.bf16.mxu0 0
    %106 = vmatpush1.bf16.msra.mxu0 %v98
    %107 = vmatprep.subr.bf16.mxu0 0
    %108 = vmatpush1.bf16.msra.mxu0 %v99
    %109 = vmatprep.subr.bf16.mxu0 0
    %110 = vmatpush1.bf16.msra.mxu0 0
    %111 = vmatprep.subr.bf16.mxu0 0
    %112 = vmatpush1.bf16.msra.mxu0 0
    %113 = vmatprep.subr.bf16.mxu0 0
    %114 = vmatpush1.bf16.msra.mxu0 0
    %115 = vmatprep.subr.bf16.mxu0 0
    %116 = vmatpush1.bf16.msra.mxu0 0
    %117 = vmatprep.subr.bf16.mxu0 0
    %118 = vmatpush1.bf16.msra.mxu0 0
    %119 = vmatprep.subr.bf16.mxu0 0
    %120 = vmatpush1.bf16.msra.mxu0 0
    %121 = vmatprep.subr.bf16.mxu0 0
    %122 = vmatpush1.bf16.msra.mxu0 0
    %123 = vmatprep.subr.bf16.mxu0 0
    %124 = vmatpush1.bf16.msra.mxu0 0
    %125 = vmatprep.subr.bf16.mxu0 0
    %126 = vmatpush1.bf16.msra.mxu0 0
    %127 = vmatprep.subr.bf16.mxu0 0
    %128 = vmatpush1.bf16.msra.mxu0 0
    %129 = vmatprep.subr.bf16.mxu0 0
    %130 = vmatpush1.bf16.msra.mxu0 0
    %131 = vmatprep.subr.bf16.mxu0 0
    %132 = vmatpush1.bf16.msra.mxu0 0
    %133 = vmatprep.subr.bf16.mxu0 0
    %134 = vmatpush1.bf16.msra.mxu0 0
    %135 = vmatprep.subr.bf16.mxu0 0
    %136 = vmatpush1.bf16.msra.mxu0 0
    %137 = vmatprep.mubr.bf16.mxu0 0
    %138 = vmatmul.mubr.bf16.gmra.mrb[0].mxu0 %v103
    %v139 = vpop.f32.mrb[0].mxu0
    %v140 = vadd.f32 %v89, %v139
    %v141 = vpop.f32.mrb[0].mxu0
    %v142 = vpop.f32.mrb[0].mxu0
    %v143 = vadd.f32 %v89, %v142
    %v144 = vpop.f32.mrb[0].mxu0
    %145 = vdwg.mxu0
    %v146 = vpack.c.bf16 %v143, %v140
    %v155 = vunpack.c.l.b16 %v29
    %v156 = vunpack.c.l.b16 %v30
    %v157 = vunpack.c.l.b16 %v31
    %v158 = vunpack.c.l.b16 %v32
    %v159 = vunpack.c.l.b16 %v33
    %v160 = vunpack.c.l.b16 %v34
    %v161 = vunpack.c.l.b16 %v35
    %v162 = vunpack.c.l.b16 %v36
    %v163 = vpack.c.b16 %v156, %v155
    %v164 = vpack.c.b16 %v158, %v157
    %v165 = vpack.c.b16 %v160, %v159
    %v166 = vpack.c.b16 %v162, %v161
    %vm167 = vcmask 130048
    %v169 = vsel %vm167, %v163, 0
    %v172 = vsel %vm167, %v164, 0
    %v175 = vsel %vm167, %v165, 0
    %v178 = vsel %vm167, %v166, 0
    %180 = vmatprep.subr.bf16.mxu0 0
    %181 = vmatpush1.bf16.msra.mxu0 %v146
    %182 = vmatprep.subr.bf16.mxu0 0
    %183 = vmatpush1.bf16.msra.mxu0 0
    %184 = vmatprep.subr.bf16.mxu0 0
    %185 = vmatpush1.bf16.msra.mxu0 0
    %186 = vmatprep.subr.bf16.mxu0 0
    %187 = vmatpush1.bf16.msra.mxu0 0
    %188 = vmatprep.subr.bf16.mxu0 0
    %189 = vmatpush1.bf16.msra.mxu0 0
    %190 = vmatprep.subr.bf16.mxu0 0
    %191 = vmatpush1.bf16.msra.mxu0 0
    %192 = vmatprep.subr.bf16.mxu0 0
    %193 = vmatpush1.bf16.msra.mxu0 0
    %194 = vmatprep.subr.bf16.mxu0 0
    %195 = vmatpush1.bf16.msra.mxu0 0
    %196 = vmatprep.subr.bf16.mxu0 0
    %197 = vmatpush1.bf16.msra.mxu0 0
    %198 = vmatprep.subr.bf16.mxu0 0
    %199 = vmatpush1.bf16.msra.mxu0 0
    %200 = vmatprep.subr.bf16.mxu0 0
    %201 = vmatpush1.bf16.msra.mxu0 0
    %202 = vmatprep.subr.bf16.mxu0 0
    %203 = vmatpush1.bf16.msra.mxu0 0
    %204 = vmatprep.subr.bf16.mxu0 0
    %205 = vmatpush1.bf16.msra.mxu0 0
    %206 = vmatprep.subr.bf16.mxu0 0
    %207 = vmatpush1.bf16.msra.mxu0 0
    %208 = vmatprep.subr.bf16.mxu0 0
    %209 = vmatpush1.bf16.msra.mxu0 0
    %210 = vmatprep.subr.bf16.mxu0 0
    %211 = vmatpush1.bf16.msra.mxu0 0
    %212 = vmatprep.mubr.bf16.mxu0 0
    %213 = vmatmul.mubr.bf16.gmra.mrb[0].mxu0 %v169
    %v214 = vpop.f32.mrb[0].mxu0
    %v215 = vadd.f32 0.0, %v214
    %v216 = vpop.f32.mrb[0].mxu0
    %v217 = vpop.f32.mrb[0].mxu0
    %v218 = vadd.f32 0.0, %v217
    %v219 = vpop.f32.mrb[0].mxu0
    %220 = vmatprep.mubr.bf16.mxu0 0
    %221 = vmatmul.mubr.bf16.gmra.mrb[0].mxu0 %v172
    %v222 = vpop.f32.mrb[0].mxu0
    %v223 = vadd.f32 0.0, %v222
    %v224 = vpop.f32.mrb[0].mxu0
    %v225 = vpop.f32.mrb[0].mxu0
    %v226 = vadd.f32 0.0, %v225
    %v227 = vpop.f32.mrb[0].mxu0
    %228 = vmatprep.mubr.bf16.mxu0 0
    %229 = vmatmul.mubr.bf16.gmra.mrb[0].mxu0 %v175
    %v230 = vpop.f32.mrb[0].mxu0
    %v231 = vadd.f32 0.0, %v230
    %v232 = vpop.f32.mrb[0].mxu0
    %v233 = vpop.f32.mrb[0].mxu0
    %v234 = vadd.f32 0.0, %v233
    %v235 = vpop.f32.mrb[0].mxu0
    %236 = vmatprep.mubr.bf16.mxu0 0
    %237 = vmatmul.mubr.bf16.gmra.mrb[0].mxu0 %v178
    %v238 = vpop.f32.mrb[0].mxu0
    %v239 = vadd.f32 0.0, %v238
    %v240 = vpop.f32.mrb[0].mxu0
    %v241 = vpop.f32.mrb[0].mxu0
    %v242 = vadd.f32 0.0, %v241
    %v243 = vpop.f32.mrb[0].mxu0
    %244 = vdwg.mxu0
    %v245 = vlaneseq
    %v246 = vshrl.u32 %v245, 7
    %v247 = vsub.s32 3, %v246
    %v248 = vrot.slane %v38, %v247
    %v249 = vmul.f32 %v248, %v215
    %v250 = vmul.f32 %v248, %v218
    %v251 = vlaneseq
    %v252 = vshrl.u32 %v251, 7
    %v253 = vsub.s32 4, %v252
    %v254 = vrot.slane %v37, %v253
    %v255 = vadd.f32 %v254, %v249
    %v256 = vadd.f32 %v254, %v250
    %v257 = vlaneseq
    %v258 = vshrl.u32 %v257, 7
    %v259 = vsub.s32 2, %v258
    %v260 = vrot.slane %v38, %v259
    %v261 = vmul.f32 %v260, %v223
    %v262 = vmul.f32 %v260, %v226
    %v263 = vadd.f32 %v255, %v261
    %v264 = vadd.f32 %v256, %v262
    %v265 = vlaneseq
    %v266 = vshrl.u32 %v265, 7
    %v267 = vsub.s32 1, %v266
    %v268 = vrot.slane %v38, %v267
    %v269 = vmul.f32 %v268, %v231
    %v270 = vmul.f32 %v268, %v234
    %v271 = vadd.f32 %v263, %v269
    %v272 = vadd.f32 %v264, %v270
    %v273 = vlaneseq
    %v274 = vshrl.u32 %v273, 7
    %v275 = vsub.s32 0, %v274
    %v276 = vrot.slane %v38, %v275
    %v277 = vmul.f32 %v276, %v239
    %v278 = vmul.f32 %v276, %v242
    %v279 = vadd.f32 %v271, %v277
    %v280 = vadd.f32 %v272, %v278
    %v281 = vsub.f32 0.0, %v279
    %v282 = vsub.f32 0.0, %v280
    %v283 = vmul.f32 %v281, 1.442695
    %v284 = vpow.pop %v283
    %v285 = vmul.f32 %v282, 1.442695
    %v286 = vpow.pop %v285
    %v287 = vadd.f32 %v284, 1.0
    %v288 = vadd.f32 %v286, 1.0
    %v289 = vrcp.pop %v287
    %v290 = vmul.f32 1.0, %v289
    %v291 = vrcp.pop %v288
    %v292 = vmul.f32 1.0, %v291
    %v293 = vmul.f32 %v279, %v290
    %v294 = vmul.f32 %v280, %v292
    %296 = vset.pattern.permute.xlu0 0
    %297 = vperm.xlu0 %296, %v27
    %v298 = vpop.permute.xlu0 %297
    %301 = vset.pattern.permute.xlu0 0
    %302 = vperm.xlu0 %301, %v28
    %v303 = vpop.permute.xlu0 %302
    %v305 = vmul.f32 %v293, %v298
    %v306 = vmul.f32 %v294, %v303
    %v307 = vld [vmem:[%s3 + $0x10] sm:$0xf]
    %v308 = vld [vmem:[%s3 + $0x14] sm:$0xf]
    %v309 = vld [vmem:[%s3 + $0x18] sm:$0xf]
    %v310 = vld [vmem:[%s3 + $0x1c] sm:$0xf]
    %v311 = vld [vmem:[%s3 + $0x20] sm:$0xf]
    %v312 = vld [vmem:[%s3 + $0x24] sm:$0xf]
    %v313 = vld [vmem:[%s3 + $0x28] sm:$0xf]
    %v314 = vld [vmem:[%s3 + $0x2c] sm:$0xf]
    %v315 = vpack.c.bf16 %v306, %v305
    %v316 = vlaneseq
    %v317 = vshrl.u32 %v316, 7
    %v318 = vsub.s32 3, %v317
    %v319 = vrot.slane %v37, %v318
    %v328 = vunpack.c.l.b16 %v307
    %v329 = vunpack.c.l.b16 %v308
    %v330 = vunpack.c.l.b16 %v309
    %v331 = vunpack.c.l.b16 %v310
    %v332 = vunpack.c.l.b16 %v311
    %v333 = vunpack.c.l.b16 %v312
    %v334 = vunpack.c.l.b16 %v313
    %v335 = vunpack.c.l.b16 %v314
    %v336 = vpack.c.b16 %v329, %v328
    %v337 = vpack.c.b16 %v331, %v330
    %v338 = vpack.c.b16 %v333, %v332
    %v339 = vpack.c.b16 %v335, %v334
    %vm344 = vcmask 523264
    %v346 = vsel %vm344, %v315, 0
    %348 = vmatprep.subr.bf16.mxu0 0
    %349 = vmatpush1.bf16.msra.mxu0 %v336
    %350 = vmatprep.subr.bf16.mxu0 0
    %351 = vmatpush1.bf16.msra.mxu0 %v337
    %352 = vmatprep.subr.bf16.mxu0 0
    %353 = vmatpush1.bf16.msra.mxu0 %v338
    %354 = vmatprep.subr.bf16.mxu0 0
    %355 = vmatpush1.bf16.msra.mxu0 %v339
    %356 = vmatprep.subr.bf16.mxu0 0
    %357 = vmatpush1.bf16.msra.mxu0 0
    %358 = vmatprep.subr.bf16.mxu0 0
    %359 = vmatpush1.bf16.msra.mxu0 0
    %360 = vmatprep.subr.bf16.mxu0 0
    %361 = vmatpush1.bf16.msra.mxu0 0
    %362 = vmatprep.subr.bf16.mxu0 0
    %363 = vmatpush1.bf16.msra.mxu0 0
    %364 = vmatprep.subr.bf16.mxu0 0
    %365 = vmatpush1.bf16.msra.mxu0 0
    %366 = vmatprep.subr.bf16.mxu0 0
    %367 = vmatpush1.bf16.msra.mxu0 0
    %368 = vmatprep.subr.bf16.mxu0 0
    %369 = vmatpush1.bf16.msra.mxu0 0
    %370 = vmatprep.subr.bf16.mxu0 0
    %371 = vmatpush1.bf16.msra.mxu0 0
    %372 = vmatprep.subr.bf16.mxu0 0
    %373 = vmatpush1.bf16.msra.mxu0 0
    %374 = vmatprep.subr.bf16.mxu0 0
    %375 = vmatpush1.bf16.msra.mxu0 0
    %376 = vmatprep.subr.bf16.mxu0 0
    %377 = vmatpush1.bf16.msra.mxu0 0
    %378 = vmatprep.subr.bf16.mxu0 0
    %379 = vmatpush1.bf16.msra.mxu0 0
    %380 = vmatprep.mubr.bf16.mxu0 0
    %381 = vmatmul.mubr.bf16.gmra.mrb[0].mxu0 %v346
    %v382 = vpop.f32.mrb[0].mxu0
    %v383 = vadd.f32 %v319, %v382
    %v384 = vpop.f32.mrb[0].mxu0
    %v385 = vpop.f32.mrb[0].mxu0
    %v386 = vadd.f32 %v319, %v385
    %v387 = vpop.f32.mrb[0].mxu0
    %388 = vdwg.mxu0
    %v389 = vmax.f32 %v383, 0.0
    %v390 = vmax.f32 %v386, 0.0
    %v391 = vand.u32 2147483647, %v383
    %v392 = vand.u32 2147483647, %v386
    %v393 = vsub.f32 0.0, %v391
    %v394 = vsub.f32 0.0, %v392
    %v395 = vmul.f32 %v393, 1.442695
    %v396 = vpow.pop %v395
    %v397 = vmul.f32 %v394, 1.442695
    %v398 = vpow.pop %v397
    %v399 = vadd.f32 %v396, 1.0
    %v400 = vadd.f32 %v398, 1.0
    %v401 = vlog2.pop %v399
    %v402 = vmul.f32 %v401, 0.6931472
    %v403 = vlog2.pop %v400
    %v404 = vmul.f32 %v403, 0.6931472
    %v405 = vadd.f32 %v389, %v402
    %v406 = vadd.f32 %v390, %v404
    %v409 = vcombine.high %v405, %v405
    %v411 = vunpack.c.l.s4 1966171168
    %v412 = vunpack.c.0.s8 %v411
    %v413 = vlaneseq
    %v414 = vshrl.u32 %v413, 7
    %v415 = vsub.s32 %v412, %v414
    %v416 = vrot.slane %v405, %v415
    %v418 = vunpack.c.l.s4 1966171168
    %v419 = vunpack.c.0.s8 %v418
    %v420 = vlaneseq
    %v421 = vshrl.u32 %v420, 7
    %v422 = vsub.s32 %v419, %v421
    %v423 = vrot.slane %v409, %v422
    %v424 = vcombine.high %v416, %v416
    %v425 = vcombine.high %v423, %v423
    %v427 = vunpack.c.l.s4 1966171168
    %v428 = vunpack.c.0.s8 %v427
    %v429 = vlaneseq
    %v430 = vshrl.u32 %v429, 7
    %v431 = vsub.s32 %v428, %v430
    %v432 = vrot.slane %v416, %v431
    %v434 = vunpack.c.l.s4 1966171168
    %v435 = vunpack.c.0.s8 %v434
    %v436 = vlaneseq
    %v437 = vshrl.u32 %v436, 7
    %v438 = vsub.s32 %v435, %v437
    %v439 = vrot.slane %v423, %v438
    %v441 = vunpack.c.l.s4 1966171168
    %v442 = vunpack.c.0.s8 %v441
    %v443 = vlaneseq
    %v444 = vshrl.u32 %v443, 7
    %v445 = vsub.s32 %v442, %v444
    %v446 = vrot.slane %v424, %v445
    %v448 = vunpack.c.l.s4 1966171168
    %v449 = vunpack.c.0.s8 %v448
    %v450 = vlaneseq
    %v451 = vshrl.u32 %v450, 7
    %v452 = vsub.s32 %v449, %v451
    %v453 = vrot.slane %v425, %v452
    %v454 = vcombine.high %v432, %v432
    %v455 = vcombine.high %v439, %v439
    %v456 = vcombine.high %v446, %v446
    %v457 = vcombine.high %v453, %v453
    %v458 = vcombine.high %v406, %v406
    %v460 = vunpack.c.l.s4 1966171168
    %v461 = vunpack.c.0.s8 %v460
    %v462 = vlaneseq
    %v463 = vshrl.u32 %v462, 7
    %v464 = vsub.s32 %v461, %v463
    %v465 = vrot.slane %v406, %v464
    %v467 = vunpack.c.l.s4 1966171168
    %v468 = vunpack.c.0.s8 %v467
    %v469 = vlaneseq
    %v470 = vshrl.u32 %v469, 7
    %v471 = vsub.s32 %v468, %v470
    %v472 = vrot.slane %v458, %v471
    %v473 = vcombine.high %v465, %v465
    %v474 = vcombine.high %v472, %v472
    %v476 = vunpack.c.l.s4 1966171168
    %v477 = vunpack.c.0.s8 %v476
    %v478 = vlaneseq
    %v479 = vshrl.u32 %v478, 7
    %v480 = vsub.s32 %v477, %v479
    %v481 = vrot.slane %v465, %v480
    %v483 = vunpack.c.l.s4 1966171168
    %v484 = vunpack.c.0.s8 %v483
    %v485 = vlaneseq
    %v486 = vshrl.u32 %v485, 7
    %v487 = vsub.s32 %v484, %v486
    %v488 = vrot.slane %v472, %v487
    %v490 = vunpack.c.l.s4 1966171168
    %v491 = vunpack.c.0.s8 %v490
    %v492 = vlaneseq
    %v493 = vshrl.u32 %v492, 7
    %v494 = vsub.s32 %v491, %v493
    %v495 = vrot.slane %v473, %v494
    %v497 = vunpack.c.l.s4 1966171168
    %v498 = vunpack.c.0.s8 %v497
    %v499 = vlaneseq
    %v500 = vshrl.u32 %v499, 7
    %v501 = vsub.s32 %v498, %v500
    %v502 = vrot.slane %v474, %v501
    %v503 = vcombine.high %v481, %v481
    %v504 = vcombine.high %v488, %v488
    %v505 = vcombine.high %v495, %v495
    %v506 = vcombine.high %v502, %v502
    %v507 = vlaneseq
    %v508 = vshrl.u32 %v507, 7
    %v509 = vsub.s32 0, %v508
    %v510 = vrot.slane %v432, %v509
    %v511 = vlaneseq
    %v512 = vshrl.u32 %v511, 7
    %v513 = vsub.s32 0, %v512
    %v514 = vrot.slane %v446, %v513
    %v515 = vlaneseq
    %v516 = vshrl.u32 %v515, 7
    %v517 = vsub.s32 0, %v516
    %v518 = vrot.slane %v454, %v517
    %v519 = vlaneseq
    %v520 = vshrl.u32 %v519, 7
    %v521 = vsub.s32 0, %v520
    %v522 = vrot.slane %v456, %v521
    %v523 = vlaneseq
    %v524 = vshrl.u32 %v523, 7
    %v525 = vsub.s32 0, %v524
    %v526 = vrot.slane %v439, %v525
    %v527 = vlaneseq
    %v528 = vshrl.u32 %v527, 7
    %v529 = vsub.s32 0, %v528
    %v530 = vrot.slane %v453, %v529
    %v531 = vlaneseq
    %v532 = vshrl.u32 %v531, 7
    %v533 = vsub.s32 0, %v532
    %v534 = vrot.slane %v455, %v533
    %v535 = vlaneseq
    %v536 = vshrl.u32 %v535, 7
    %v537 = vsub.s32 0, %v536
    %v538 = vrot.slane %v457, %v537
    %v539 = vlaneseq
    %v540 = vshrl.u32 %v539, 7
    %v541 = vsub.s32 0, %v540
    %v542 = vrot.slane %v481, %v541
    %v543 = vlaneseq
    %v544 = vshrl.u32 %v543, 7
    %v545 = vsub.s32 0, %v544
    %v546 = vrot.slane %v495, %v545
    %v547 = vlaneseq
    %v548 = vshrl.u32 %v547, 7
    %v549 = vsub.s32 0, %v548
    %v550 = vrot.slane %v503, %v549
    %v551 = vlaneseq
    %v552 = vshrl.u32 %v551, 7
    %v553 = vsub.s32 0, %v552
    %v554 = vrot.slane %v505, %v553
    %v555 = vlaneseq
    %v556 = vshrl.u32 %v555, 7
    %v557 = vsub.s32 0, %v556
    %v558 = vrot.slane %v488, %v557
    %v559 = vlaneseq
    %v560 = vshrl.u32 %v559, 7
    %v561 = vsub.s32 0, %v560
    %v562 = vrot.slane %v502, %v561
    %v563 = vlaneseq
    %v564 = vshrl.u32 %v563, 7
    %v565 = vsub.s32 0, %v564
    %v566 = vrot.slane %v504, %v565
    %v567 = vlaneseq
    %v568 = vshrl.u32 %v567, 7
    %v569 = vsub.s32 0, %v568
    %v570 = vrot.slane %v506, %v569
    %v587 = vmul.f32 %v510, %v38
    %v588 = vmul.f32 %v510, %v39
    %v589 = vmul.f32 %v514, %v38
    %v590 = vmul.f32 %v514, %v39
    %v591 = vmul.f32 %v518, %v38
    %v592 = vmul.f32 %v518, %v39
    %v593 = vmul.f32 %v522, %v38
    %v594 = vmul.f32 %v522, %v39
    %v595 = vmul.f32 %v526, %v38
    %v596 = vmul.f32 %v526, %v39
    %v597 = vmul.f32 %v530, %v38
    %v598 = vmul.f32 %v530, %v39
    %v599 = vmul.f32 %v534, %v38
    %v600 = vmul.f32 %v534, %v39
    %v601 = vmul.f32 %v538, %v38
    %v602 = vmul.f32 %v538, %v39
    %v603 = vmul.f32 %v542, %v38
    %v604 = vmul.f32 %v542, %v39
    %v605 = vmul.f32 %v546, %v38
    %v606 = vmul.f32 %v546, %v39
    %v607 = vmul.f32 %v550, %v38
    %v608 = vmul.f32 %v550, %v39
    %v609 = vmul.f32 %v554, %v38
    %v610 = vmul.f32 %v554, %v39
    %v611 = vmul.f32 %v558, %v38
    %v612 = vmul.f32 %v558, %v39
    %v613 = vmul.f32 %v562, %v38
    %v614 = vmul.f32 %v562, %v39
    %v615 = vmul.f32 %v566, %v38
    %v616 = vmul.f32 %v566, %v39
    %v617 = vmul.f32 %v570, %v38
    %v618 = vmul.f32 %v570, %v39
    %v619 = vmul.f32 %v587, 1.442695
    %v620 = vpow.pop %v619
    %v621 = vmul.f32 %v588, 1.442695
    %v622 = vpow.pop %v621
    %v623 = vmul.f32 %v589, 1.442695
    %v624 = vpow.pop %v623
    %v625 = vmul.f32 %v590, 1.442695
    %v626 = vpow.pop %v625
    %v627 = vmul.f32 %v591, 1.442695
    %v628 = vpow.pop %v627
    %v629 = vmul.f32 %v592, 1.442695
    %v630 = vpow.pop %v629
    %v631 = vmul.f32 %v593, 1.442695
    %v632 = vpow.pop %v631
    %v633 = vmul.f32 %v594, 1.442695
    %v634 = vpow.pop %v633
    %v635 = vmul.f32 %v595, 1.442695
    %v636 = vpow.pop %v635
    %v637 = vmul.f32 %v596, 1.442695
    %v638 = vpow.pop %v637
    %v639 = vmul.f32 %v597, 1.442695
    %v640 = vpow.pop %v639
    %v641 = vmul.f32 %v598, 1.442695
    %v642 = vpow.pop %v641
    %v643 = vmul.f32 %v599, 1.442695
    %v644 = vpow.pop %v643
    %v645 = vmul.f32 %v600, 1.442695
    %v646 = vpow.pop %v645
    %v647 = vmul.f32 %v601, 1.442695
    %v648 = vpow.pop %v647
    %v649 = vmul.f32 %v602, 1.442695
    %v650 = vpow.pop %v649
    %v651 = vmul.f32 %v603, 1.442695
    %v652 = vpow.pop %v651
    %v653 = vmul.f32 %v604, 1.442695
    %v654 = vpow.pop %v653
    %v655 = vmul.f32 %v605, 1.442695
    %v656 = vpow.pop %v655
    %v657 = vmul.f32 %v606, 1.442695
    %v658 = vpow.pop %v657
    %v659 = vmul.f32 %v607, 1.442695
    %v660 = vpow.pop %v659
    %v661 = vmul.f32 %v608, 1.442695
    %v662 = vpow.pop %v661
    %v663 = vmul.f32 %v609, 1.442695
    %v664 = vpow.pop %v663
    %v665 = vmul.f32 %v610, 1.442695
    %v666 = vpow.pop %v665
    %v667 = vmul.f32 %v611, 1.442695
    %v668 = vpow.pop %v667
    %v669 = vmul.f32 %v612, 1.442695
    %v670 = vpow.pop %v669
    %v671 = vmul.f32 %v613, 1.442695
    %v672 = vpow.pop %v671
    %v673 = vmul.f32 %v614, 1.442695
    %v674 = vpow.pop %v673
    %v675 = vmul.f32 %v615, 1.442695
    %v676 = vpow.pop %v675
    %v677 = vmul.f32 %v616, 1.442695
    %v678 = vpow.pop %v677
    %v679 = vmul.f32 %v617, 1.442695
    %v680 = vpow.pop %v679
    %v681 = vmul.f32 %v618, 1.442695
    %v682 = vpow.pop %v681
    %v683 = vmul.f32 %v405, %v305
    %v684 = vmul.f32 %v406, %v306
    %v687 = vcombine.high %v683, %v683
    %v689 = vunpack.c.l.s4 1966171168
    %v690 = vunpack.c.0.s8 %v689
    %v691 = vlaneseq
    %v692 = vshrl.u32 %v691, 7
    %v693 = vsub.s32 %v690, %v692
    %v694 = vrot.slane %v683, %v693
    %v696 = vunpack.c.l.s4 1966171168
    %v697 = vunpack.c.0.s8 %v696
    %v698 = vlaneseq
    %v699 = vshrl.u32 %v698, 7
    %v700 = vsub.s32 %v697, %v699
    %v701 = vrot.slane %v687, %v700
    %v702 = vcombine.high %v694, %v694
    %v703 = vcombine.high %v701, %v701
    %v705 = vunpack.c.l.s4 1966171168
    %v706 = vunpack.c.0.s8 %v705
    %v707 = vlaneseq
    %v708 = vshrl.u32 %v707, 7
    %v709 = vsub.s32 %v706, %v708
    %v710 = vrot.slane %v694, %v709
    %v712 = vunpack.c.l.s4 1966171168
    %v713 = vunpack.c.0.s8 %v712
    %v714 = vlaneseq
    %v715 = vshrl.u32 %v714, 7
    %v716 = vsub.s32 %v713, %v715
    %v717 = vrot.slane %v701, %v716
    %v719 = vunpack.c.l.s4 1966171168
    %v720 = vunpack.c.0.s8 %v719
    %v721 = vlaneseq
    %v722 = vshrl.u32 %v721, 7
    %v723 = vsub.s32 %v720, %v722
    %v724 = vrot.slane %v702, %v723
    %v726 = vunpack.c.l.s4 1966171168
    %v727 = vunpack.c.0.s8 %v726
    %v728 = vlaneseq
    %v729 = vshrl.u32 %v728, 7
    %v730 = vsub.s32 %v727, %v729
    %v731 = vrot.slane %v703, %v730
    %v732 = vcombine.high %v710, %v710
    %v733 = vcombine.high %v717, %v717
    %v734 = vcombine.high %v724, %v724
    %v735 = vcombine.high %v731, %v731
    %v736 = vcombine.high %v684, %v684
    %v738 = vunpack.c.l.s4 1966171168
    %v739 = vunpack.c.0.s8 %v738
    %v740 = vlaneseq
    %v741 = vshrl.u32 %v740, 7
    %v742 = vsub.s32 %v739, %v741
    %v743 = vrot.slane %v684, %v742
    %v745 = vunpack.c.l.s4 1966171168
    %v746 = vunpack.c.0.s8 %v745
    %v747 = vlaneseq
    %v748 = vshrl.u32 %v747, 7
    %v749 = vsub.s32 %v746, %v748
    %v750 = vrot.slane %v736, %v749
    %v751 = vcombine.high %v743, %v743
    %v752 = vcombine.high %v750, %v750
    %v754 = vunpack.c.l.s4 1966171168
    %v755 = vunpack.c.0.s8 %v754
    %v756 = vlaneseq
    %v757 = vshrl.u32 %v756, 7
    %v758 = vsub.s32 %v755, %v757
    %v759 = vrot.slane %v743, %v758
    %v761 = vunpack.c.l.s4 1966171168
    %v762 = vunpack.c.0.s8 %v761
    %v763 = vlaneseq
    %v764 = vshrl.u32 %v763, 7
    %v765 = vsub.s32 %v762, %v764
    %v766 = vrot.slane %v750, %v765
    %v768 = vunpack.c.l.s4 1966171168
    %v769 = vunpack.c.0.s8 %v768
    %v770 = vlaneseq
    %v771 = vshrl.u32 %v770, 7
    %v772 = vsub.s32 %v769, %v771
    %v773 = vrot.slane %v751, %v772
    %v775 = vunpack.c.l.s4 1966171168
    %v776 = vunpack.c.0.s8 %v775
    %v777 = vlaneseq
    %v778 = vshrl.u32 %v777, 7
    %v779 = vsub.s32 %v776, %v778
    %v780 = vrot.slane %v752, %v779
    %v781 = vcombine.high %v759, %v759
    %v782 = vcombine.high %v766, %v766
    %v783 = vcombine.high %v773, %v773
    %v784 = vcombine.high %v780, %v780
    %v785 = vlaneseq
    %v786 = vshrl.u32 %v785, 7
    %v787 = vsub.s32 0, %v786
    %v788 = vrot.slane %v383, %v787
    %s790 = sor.u32 256, 64
    %791 = vbcast.lane.b32.xlu0 %v788, %s790
    %v792 = vpop.permute.xlu0 %791
    %v793 = vlaneseq
    %v794 = vshrl.u32 %v793, 7
    %v795 = vsub.s32 1, %v794
    %v796 = vrot.slane %v383, %v795
    %s798 = sor.u32 256, 64
    %799 = vbcast.lane.b32.xlu0 %v796, %s798
    %v800 = vpop.permute.xlu0 %799
    %v801 = vlaneseq
    %v802 = vshrl.u32 %v801, 7
    %v803 = vsub.s32 2, %v802
    %v804 = vrot.slane %v383, %v803
    %s806 = sor.u32 256, 64
    %807 = vbcast.lane.b32.xlu0 %v804, %s806
    %v808 = vpop.permute.xlu0 %807
    %v809 = vlaneseq
    %v810 = vshrl.u32 %v809, 7
    %v811 = vsub.s32 3, %v810
    %v812 = vrot.slane %v383, %v811
    %s814 = sor.u32 256, 64
    %815 = vbcast.lane.b32.xlu0 %v812, %s814
    %v816 = vpop.permute.xlu0 %815
    %v817 = vlaneseq
    %v818 = vshrl.u32 %v817, 7
    %v819 = vsub.s32 4, %v818
    %v820 = vrot.slane %v383, %v819
    %s822 = sor.u32 256, 64
    %823 = vbcast.lane.b32.xlu0 %v820, %s822
    %v824 = vpop.permute.xlu0 %823
    %v825 = vlaneseq
    %v826 = vshrl.u32 %v825, 7
    %v827 = vsub.s32 5, %v826
    %v828 = vrot.slane %v383, %v827
    %s830 = sor.u32 256, 64
    %831 = vbcast.lane.b32.xlu0 %v828, %s830
    %v832 = vpop.permute.xlu0 %831
    %v833 = vlaneseq
    %v834 = vshrl.u32 %v833, 7
    %v835 = vsub.s32 6, %v834
    %v836 = vrot.slane %v383, %v835
    %s838 = sor.u32 256, 64
    %839 = vbcast.lane.b32.xlu0 %v836, %s838
    %v840 = vpop.permute.xlu0 %839
    %v841 = vlaneseq
    %v842 = vshrl.u32 %v841, 7
    %v843 = vsub.s32 7, %v842
    %v844 = vrot.slane %v383, %v843
    %s846 = sor.u32 256, 64
    %847 = vbcast.lane.b32.xlu0 %v844, %s846
    %v848 = vpop.permute.xlu0 %847
    %v849 = vlaneseq
    %v850 = vshrl.u32 %v849, 7
    %v851 = vsub.s32 0, %v850
    %v852 = vrot.slane %v386, %v851
    %s854 = sor.u32 256, 64
    %855 = vbcast.lane.b32.xlu0 %v852, %s854
    %v856 = vpop.permute.xlu0 %855
    %v857 = vlaneseq
    %v858 = vshrl.u32 %v857, 7
    %v859 = vsub.s32 1, %v858
    %v860 = vrot.slane %v386, %v859
    %s862 = sor.u32 256, 64
    %863 = vbcast.lane.b32.xlu0 %v860, %s862
    %v864 = vpop.permute.xlu0 %863
    %v865 = vlaneseq
    %v866 = vshrl.u32 %v865, 7
    %v867 = vsub.s32 2, %v866
    %v868 = vrot.slane %v386, %v867
    %s870 = sor.u32 256, 64
    %871 = vbcast.lane.b32.xlu0 %v868, %s870
    %v872 = vpop.permute.xlu0 %871
    %v873 = vlaneseq
    %v874 = vshrl.u32 %v873, 7
    %v875 = vsub.s32 3, %v874
    %v876 = vrot.slane %v386, %v875
    %s878 = sor.u32 256, 64
    %879 = vbcast.lane.b32.xlu0 %v876, %s878
    %v880 = vpop.permute.xlu0 %879
    %v881 = vlaneseq
    %v882 = vshrl.u32 %v881, 7
    %v883 = vsub.s32 4, %v882
    %v884 = vrot.slane %v386, %v883
    %s886 = sor.u32 256, 64
    %887 = vbcast.lane.b32.xlu0 %v884, %s886
    %v888 = vpop.permute.xlu0 %887
    %v889 = vlaneseq
    %v890 = vshrl.u32 %v889, 7
    %v891 = vsub.s32 5, %v890
    %v892 = vrot.slane %v386, %v891
    %s894 = sor.u32 256, 64
    %895 = vbcast.lane.b32.xlu0 %v892, %s894
    %v896 = vpop.permute.xlu0 %895
    %v897 = vlaneseq
    %v898 = vshrl.u32 %v897, 7
    %v899 = vsub.s32 6, %v898
    %v900 = vrot.slane %v386, %v899
    %s902 = sor.u32 256, 64
    %903 = vbcast.lane.b32.xlu0 %v900, %s902
    %v904 = vpop.permute.xlu0 %903
    %v905 = vlaneseq
    %v906 = vshrl.u32 %v905, 7
    %v907 = vsub.s32 7, %v906
    %v908 = vrot.slane %v386, %v907
    %s910 = sor.u32 256, 64
    %911 = vbcast.lane.b32.xlu0 %v908, %s910
    %v912 = vpop.permute.xlu0 %911
    %v913 = vlaneseq
    %v914 = vshrl.u32 %v913, 7
    %v915 = vsub.s32 0, %v914
    %v916 = vrot.slane %v710, %v915
    %v917 = vlaneseq
    %v918 = vshrl.u32 %v917, 7
    %v919 = vsub.s32 0, %v918
    %v920 = vrot.slane %v724, %v919
    %v921 = vlaneseq
    %v922 = vshrl.u32 %v921, 7
    %v923 = vsub.s32 0, %v922
    %v924 = vrot.slane %v732, %v923
    %v925 = vlaneseq
    %v926 = vshrl.u32 %v925, 7
    %v927 = vsub.s32 0, %v926
    %v928 = vrot.slane %v734, %v927
    %v929 = vlaneseq
    %v930 = vshrl.u32 %v929, 7
    %v931 = vsub.s32 0, %v930
    %v932 = vrot.slane %v717, %v931
    %v933 = vlaneseq
    %v934 = vshrl.u32 %v933, 7
    %v935 = vsub.s32 0, %v934
    %v936 = vrot.slane %v731, %v935
    %v937 = vlaneseq
    %v938 = vshrl.u32 %v937, 7
    %v939 = vsub.s32 0, %v938
    %v940 = vrot.slane %v733, %v939
    %v941 = vlaneseq
    %v942 = vshrl.u32 %v941, 7
    %v943 = vsub.s32 0, %v942
    %v944 = vrot.slane %v735, %v943
    %v945 = vlaneseq
    %v946 = vshrl.u32 %v945, 7
    %v947 = vsub.s32 0, %v946
    %v948 = vrot.slane %v759, %v947
    %v949 = vlaneseq
    %v950 = vshrl.u32 %v949, 7
    %v951 = vsub.s32 0, %v950
    %v952 = vrot.slane %v773, %v951
    %v953 = vlaneseq
    %v954 = vshrl.u32 %v953, 7
    %v955 = vsub.s32 0, %v954
    %v956 = vrot.slane %v781, %v955
    %v957 = vlaneseq
    %v958 = vshrl.u32 %v957, 7
    %v959 = vsub.s32 0, %v958
    %v960 = vrot.slane %v783, %v959
    %v961 = vlaneseq
    %v962 = vshrl.u32 %v961, 7
    %v963 = vsub.s32 0, %v962
    %v964 = vrot.slane %v766, %v963
    %v965 = vlaneseq
    %v966 = vshrl.u32 %v965, 7
    %v967 = vsub.s32 0, %v966
    %v968 = vrot.slane %v780, %v967
    %v969 = vlaneseq
    %v970 = vshrl.u32 %v969, 7
    %v971 = vsub.s32 0, %v970
    %v972 = vrot.slane %v782, %v971
    %v973 = vlaneseq
    %v974 = vshrl.u32 %v973, 7
    %v975 = vsub.s32 0, %v974
    %v976 = vrot.slane %v784, %v975
    %v993 = vmul.f32 %v916, %v792
    %v994 = vmul.f32 %v920, %v800
    %v995 = vmul.f32 %v924, %v808
    %v996 = vmul.f32 %v928, %v816
    %v997 = vmul.f32 %v932, %v824
    %v998 = vmul.f32 %v936, %v832
    %v999 = vmul.f32 %v940, %v840
    %v1000 = vmul.f32 %v944, %v848
    %v1001 = vmul.f32 %v948, %v856
    %v1002 = vmul.f32 %v952, %v864
    %v1003 = vmul.f32 %v956, %v872
    %v1004 = vmul.f32 %v960, %v880
    %v1005 = vmul.f32 %v964, %v888
    %v1006 = vmul.f32 %v968, %v896
    %v1007 = vmul.f32 %v972, %v904
    %v1008 = vmul.f32 %v976, %v912
    %vm1009 = vcmask 523268
    %1010 = vst.msk [vmem:[#allocation2 - $0x4] sm:$0xf0] %vm1009, %v620
    %vm1011 = vcmask 519168
    %1012 = vst.msk [vmem:[#allocation2 + $0x4] sm:$0xf] %vm1011, %v622
    %1013 = vst.msk [vmem:[#allocation2 + $0xc] sm:$0xf0] %vm1009, %v624
    %1014 = vst.msk [vmem:[#allocation2 + $0x14] sm:$0xf] %vm1011, %v626
    %1015 = vst.msk [vmem:[#allocation2 + $0x1c] sm:$0xf0] %vm1009, %v628
    %1016 = vst.msk [vmem:[#allocation2 + $0x24] sm:$0xf] %vm1011, %v630
    %1017 = vst.msk [vmem:[#allocation2 + $0x2c] sm:$0xf0] %vm1009, %v632
    %1018 = vst.msk [vmem:[#allocation2 + $0x34] sm:$0xf] %vm1011, %v634
    %1019 = vst.msk [vmem:[#allocation2 + $0x3c] sm:$0xf0] %vm1009, %v636
    %1020 = vst.msk [vmem:[#allocation2 + $0x44] sm:$0xf] %vm1011, %v638
    %1021 = vst.msk [vmem:[#allocation2 + $0x4c] sm:$0xf0] %vm1009, %v640
    %1022 = vst.msk [vmem:[#allocation2 + $0x54] sm:$0xf] %vm1011, %v642
    %1023 = vst.msk [vmem:[#allocation2 + $0x5c] sm:$0xf0] %vm1009, %v644
    %1024 = vst.msk [vmem:[#allocation2 + $0x64] sm:$0xf] %vm1011, %v646
    %1025 = vst.msk [vmem:[#allocation2 + $0x6c] sm:$0xf0] %vm1009, %v648
    %1026 = vst.msk [vmem:[#allocation2 + $0x74] sm:$0xf] %vm1011, %v650
    %1027 = vst.msk [vmem:[#allocation2 + $0x4] sm:$0xf0] %vm1009, %v652
    %1028 = vst.msk [vmem:[#allocation2 + $0xc] sm:$0xf] %vm1011, %v654
    %1029 = vst.msk [vmem:[#allocation2 + $0x14] sm:$0xf0] %vm1009, %v656
    %1030 = vst.msk [vmem:[#allocation2 + $0x1c] sm:$0xf] %vm1011, %v658
    %1031 = vst.msk [vmem:[#allocation2 + $0x24] sm:$0xf0] %vm1009, %v660
    %1032 = vst.msk [vmem:[#allocation2 + $0x2c] sm:$0xf] %vm1011, %v662
    %1033 = vst.msk [vmem:[#allocation2 + $0x34] sm:$0xf0] %vm1009, %v664
    %1034 = vst.msk [vmem:[#allocation2 + $0x3c] sm:$0xf] %vm1011, %v666
    %1035 = vst.msk [vmem:[#allocation2 + $0x44] sm:$0xf0] %vm1009, %v668
    %1036 = vst.msk [vmem:[#allocation2 + $0x4c] sm:$0xf] %vm1011, %v670
    %1037 = vst.msk [vmem:[#allocation2 + $0x54] sm:$0xf0] %vm1009, %v672
    %1038 = vst.msk [vmem:[#allocation2 + $0x5c] sm:$0xf] %vm1011, %v674
    %1039 = vst.msk [vmem:[#allocation2 + $0x64] sm:$0xf0] %vm1009, %v676
    %1040 = vst.msk [vmem:[#allocation2 + $0x6c] sm:$0xf] %vm1011, %v678
    %1041 = vst.msk [vmem:[#allocation2 + $0x74] sm:$0xf0] %vm1009, %v680
    %1042 = vst.msk [vmem:[#allocation2 + $0x7c] sm:$0xf] %vm1011, %v682
    %1043 = vst.msk [vmem:[#allocation3] sm:$0xff] %vm344, %v993
    %1044 = vst.msk [vmem:[#allocation3 + $0x10] sm:$0xff] %vm344, %v994
    %1045 = vst.msk [vmem:[#allocation3 + $0x20] sm:$0xff] %vm344, %v995
    %1046 = vst.msk [vmem:[#allocation3 + $0x30] sm:$0xff] %vm344, %v996
    %1047 = vst.msk [vmem:[#allocation3 + $0x40] sm:$0xff] %vm344, %v997
    %1048 = vst.msk [vmem:[#allocation3 + $0x50] sm:$0xff] %vm344, %v998
    %1049 = vst.msk [vmem:[#allocation3 + $0x60] sm:$0xff] %vm344, %v999
    %1050 = vst.msk [vmem:[#allocation3 + $0x70] sm:$0xff] %vm344, %v1000
    %1051 = vst.msk [vmem:[#allocation3 + $0x8] sm:$0xff] %vm344, %v1001
    %1052 = vst.msk [vmem:[#allocation3 + $0x18] sm:$0xff] %vm344, %v1002
    %1053 = vst.msk [vmem:[#allocation3 + $0x28] sm:$0xff] %vm344, %v1003
    %1054 = vst.msk [vmem:[#allocation3 + $0x38] sm:$0xff] %vm344, %v1004
    %1055 = vst.msk [vmem:[#allocation3 + $0x48] sm:$0xff] %vm344, %v1005
    %1056 = vst.msk [vmem:[#allocation3 + $0x58] sm:$0xff] %vm344, %v1006
    %1057 = vst.msk [vmem:[#allocation3 + $0x68] sm:$0xff] %vm344, %v1007
    %1058 = vst.msk [vmem:[#allocation3 + $0x78] sm:$0xff] %vm344, %v1008
    %v1059 = vld [vmem:[#allocation2] sm:$0xff]
    %v1060 = vld [vmem:[#allocation2 + $0x8] sm:$0xff]
    %v1061 = vmul.f32 %v1059, 0.0
    %v1062 = vmul.f32 %v1060, 0.0
    %v1063 = vld [vmem:[#allocation3] sm:$0xff]
    %v1064 = vld [vmem:[#allocation3 + $0x8] sm:$0xff]
    %v1065 = vadd.f32 %v1061, %v1063
    %v1066 = vadd.f32 %v1062, %v1064
    %1067 = vst.msk [vmem:[#allocation4] sm:$0xff] %vm344, %v1065
    %1068 = vst.msk [vmem:[#allocation4 + $0x8] sm:$0xff] %vm344, %v1066
    %s1069 = scalar_lea.vmem [#allocation2], 16
    %v1070 = vld [vmem:[%s1069] sm:$0xff]
    %v1071 = vld [vmem:[%s1069 + $0x8] sm:$0xff]
    %v1072 = vmul.f32 %v1070, %v1065
    %v1073 = vmul.f32 %v1071, %v1066
    %s1074 = scalar_lea.vmem [#allocation3], 16
    %v1075 = vld [vmem:[%s1074] sm:$0xff]
    %v1076 = vld [vmem:[%s1074 + $0x8] sm:$0xff]
    %v1077 = vadd.f32 %v1072, %v1075
    %v1078 = vadd.f32 %v1073, %v1076
    %s1079 = scalar_lea.vmem [#allocation4], 16
    %1080 = vst.msk [vmem:[%s1079] sm:$0xff] %vm344, %v1077
    %1081 = vst.msk [vmem:[%s1079 + $0x8] sm:$0xff] %vm344, %v1078
    %s1082 = scalar_lea.vmem [#allocation2], 32
    %v1083 = vld [vmem:[%s1082] sm:$0xff]
    %v1084 = vld [vmem:[%s1082 + $0x8] sm:$0xff]
    %v1085 = vmul.f32 %v1083, %v1077
    %v1086 = vmul.f32 %v1084, %v1078
    %s1087 = scalar_lea.vmem [#allocation3], 32
    %v1088 = vld [vmem:[%s1087] sm:$0xff]
    %v1089 = vld [vmem:[%s1087 + $0x8] sm:$0xff]
    %v1090 = vadd.f32 %v1085, %v1088
    %v1091 = vadd.f32 %v1086, %v1089
    %s1092 = scalar_lea.vmem [#allocation4], 32
    %1093 = vst.msk [vmem:[%s1092] sm:$0xff] %vm344, %v1090
    %1094 = vst.msk [vmem:[%s1092 + $0x8] sm:$0xff] %vm344, %v1091
    %s1095 = scalar_lea.vmem [#allocation2], 48
    %v1096 = vld [vmem:[%s1095] sm:$0xff]
    %v1097 = vld [vmem:[%s1095 + $0x8] sm:$0xff]
    %v1098 = vmul.f32 %v1096, %v1090
    %v1099 = vmul.f32 %v1097, %v1091
    %s1100 = scalar_lea.vmem [#allocation3], 48
    %v1101 = vld [vmem:[%s1100] sm:$0xff]
    %v1102 = vld [vmem:[%s1100 + $0x8] sm:$0xff]
    %v1103 = vadd.f32 %v1098, %v1101
    %v1104 = vadd.f32 %v1099, %v1102
    %s1105 = scalar_lea.vmem [#allocation4], 48
    %1106 = vst.msk [vmem:[%s1105] sm:$0xff] %vm344, %v1103
    %1107 = vst.msk [vmem:[%s1105 + $0x8] sm:$0xff] %vm344, %v1104
    %s1108 = scalar_lea.vmem [#allocation2], 64
    %v1109 = vld [vmem:[%s1108] sm:$0xff]
    %v1110 = vld [vmem:[%s1108 + $0x8] sm:$0xff]
    %v1111 = vmul.f32 %v1109, %v1103
    %v1112 = vmul.f32 %v1110, %v1104
    %s1113 = scalar_lea.vmem [#allocation3], 64
    %v1114 = vld [vmem:[%s1113] sm:$0xff]
    %v1115 = vld [vmem:[%s1113 + $0x8] sm:$0xff]
    %v1116 = vadd.f32 %v1111, %v1114
    %v1117 = vadd.f32 %v1112, %v1115
    %s1118 = scalar_lea.vmem [#allocation4], 64
    %1119 = vst.msk [vmem:[%s1118] sm:$0xff] %vm344, %v1116
    %1120 = vst.msk [vmem:[%s1118 + $0x8] sm:$0xff] %vm344, %v1117
    %s1121 = scalar_lea.vmem [#allocation2], 80
    %v1122 = vld [vmem:[%s1121] sm:$0xff]
    %v1123 = vld [vmem:[%s1121 + $0x8] sm:$0xff]
    %v1124 = vmul.f32 %v1122, %v1116
    %v1125 = vmul.f32 %v1123, %v1117
    %s1126 = scalar_lea.vmem [#allocation3], 80
    %v1127 = vld [vmem:[%s1126] sm:$0xff]
    %v1128 = vld [vmem:[%s1126 + $0x8] sm:$0xff]
    %v1129 = vadd.f32 %v1124, %v1127
    %v1130 = vadd.f32 %v1125, %v1128
    %s1131 = scalar_lea.vmem [#allocation4], 80
    %1132 = vst.msk [vmem:[%s1131] sm:$0xff] %vm344, %v1129
    %1133 = vst.msk [vmem:[%s1131 + $0x8] sm:$0xff] %vm344, %v1130
    %s1134 = scalar_lea.vmem [#allocation2], 96
    %v1135 = vld [vmem:[%s1134] sm:$0xff]
    %v1136 = vld [vmem:[%s1134 + $0x8] sm:$0xff]
    %v1137 = vmul.f32 %v1135, %v1129
    %v1138 = vmul.f32 %v1136, %v1130
    %s1139 = scalar_lea.vmem [#allocation3], 96
    %v1140 = vld [vmem:[%s1139] sm:$0xff]
    %v1141 = vld [vmem:[%s1139 + $0x8] sm:$0xff]
    %v1142 = vadd.f32 %v1137, %v1140
    %v1143 = vadd.f32 %v1138, %v1141
    %s1144 = scalar_lea.vmem [#allocation4], 96
    %1145 = vst.msk [vmem:[%s1144] sm:$0xff] %vm344, %v1142
    %1146 = vst.msk [vmem:[%s1144 + $0x8] sm:$0xff] %vm344, %v1143
    %s1147 = scalar_lea.vmem [#allocation2], 112
    %v1148 = vld [vmem:[%s1147] sm:$0xff]
    %v1149 = vld [vmem:[%s1147 + $0x8] sm:$0xff]
    %v1150 = vmul.f32 %v1148, %v1142
    %v1151 = vmul.f32 %v1149, %v1143
    %s1152 = scalar_lea.vmem [#allocation3], 112
    %v1153 = vld [vmem:[%s1152] sm:$0xff]
    %v1154 = vld [vmem:[%s1152 + $0x8] sm:$0xff]
    %v1155 = vadd.f32 %v1150, %v1153
    %v1156 = vadd.f32 %v1151, %v1154
    %s1157 = scalar_lea.vmem [#allocation4], 112
    %1158 = vst.msk [vmem:[%s1157] sm:$0xff] %vm344, %v1155
    %1159 = vst.msk [vmem:[%s1157 + $0x8] sm:$0xff] %vm344, %v1156
    %v1160 = vld [vmem:[#allocation4] sm:$0xff]
    %v1161 = vld [vmem:[#allocation4 + $0x8] sm:$0xff]
    %v1162 = vld [vmem:[#allocation4 + $0x10] sm:$0xff]
    %v1163 = vld [vmem:[#allocation4 + $0x18] sm:$0xff]
    %v1164 = vld [vmem:[#allocation4 + $0x20] sm:$0xff]
    %v1165 = vld [vmem:[#allocation4 + $0x28] sm:$0xff]
    %v1166 = vld [vmem:[#allocation4 + $0x30] sm:$0xff]
    %v1167 = vld [vmem:[#allocation4 + $0x38] sm:$0xff]
    %v1168 = vld [vmem:[#allocation4 + $0x40] sm:$0xff]
    %v1169 = vld [vmem:[#allocation4 + $0x48] sm:$0xff]
    %v1170 = vld [vmem:[#allocation4 + $0x50] sm:$0xff]
    %v1171 = vld [vmem:[#allocation4 + $0x58] sm:$0xff]
    %v1172 = vld [vmem:[#allocation4 + $0x60] sm:$0xff]
    %v1173 = vld [vmem:[#allocation4 + $0x68] sm:$0xff]
    %v1174 = vld [vmem:[#allocation4 + $0x70] sm:$0xff]
    %v1175 = vld [vmem:[#allocation4 + $0x78] sm:$0xff]
    %v1176 = vlaneseq
    %v1177 = vshrl.u32 %v1176, 7
    %v1178 = vsub.s32 5, %v1177
    %v1179 = vrot.slane %v37, %v1178
    %v1180 = vmul.f32 %v305, %v1179
    %v1181 = vmul.f32 %v306, %v1179
    %s1183 = sor.u32 256, 72
    %1184 = vbcast.lane.b32.xlu0 %v788, %s1183
    %v1185 = vpop.permute.xlu0 %1184
    %s1187 = sor.u32 256, 72
    %1188 = vbcast.lane.b32.xlu0 %v796, %s1187
    %v1189 = vpop.permute.xlu0 %1188
    %s1191 = sor.u32 256, 72
    %1192 = vbcast.lane.b32.xlu0 %v804, %s1191
    %v1193 = vpop.permute.xlu0 %1192
    %s1195 = sor.u32 256, 72
    %1196 = vbcast.lane.b32.xlu0 %v812, %s1195
    %v1197 = vpop.permute.xlu0 %1196
    %s1199 = sor.u32 256, 72
    %1200 = vbcast.lane.b32.xlu0 %v820, %s1199
    %v1201 = vpop.permute.xlu0 %1200
    %s1203 = sor.u32 256, 72
    %1204 = vbcast.lane.b32.xlu0 %v828, %s1203
    %v1205 = vpop.permute.xlu0 %1204
    %s1207 = sor.u32 256, 72
    %1208 = vbcast.lane.b32.xlu0 %v836, %s1207
    %v1209 = vpop.permute.xlu0 %1208
    %s1211 = sor.u32 256, 72
    %1212 = vbcast.lane.b32.xlu0 %v844, %s1211
    %v1213 = vpop.permute.xlu0 %1212
    %s1215 = sor.u32 256, 72
    %1216 = vbcast.lane.b32.xlu0 %v852, %s1215
    %v1217 = vpop.permute.xlu0 %1216
    %s1219 = sor.u32 256, 72
    %1220 = vbcast.lane.b32.xlu0 %v860, %s1219
    %v1221 = vpop.permute.xlu0 %1220
    %s1223 = sor.u32 256, 72
    %1224 = vbcast.lane.b32.xlu0 %v868, %s1223
    %v1225 = vpop.permute.xlu0 %1224
    %s1227 = sor.u32 256, 72
    %1228 = vbcast.lane.b32.xlu0 %v876, %s1227
    %v1229 = vpop.permute.xlu0 %1228
    %s1231 = sor.u32 256, 72
    %1232 = vbcast.lane.b32.xlu0 %v884, %s1231
    %v1233 = vpop.permute.xlu0 %1232
    %s1235 = sor.u32 256, 72
    %1236 = vbcast.lane.b32.xlu0 %v892, %s1235
    %v1237 = vpop.permute.xlu0 %1236
    %s1239 = sor.u32 256, 72
    %1240 = vbcast.lane.b32.xlu0 %v900, %s1239
    %v1241 = vpop.permute.xlu0 %1240
    %s1243 = sor.u32 256, 72
    %1244 = vbcast.lane.b32.xlu0 %v908, %s1243
    %v1245 = vpop.permute.xlu0 %1244
    %v1246 = vmul.f32 %v1185, %v1160
    %v1247 = vmul.f32 %v1189, %v1162
    %v1248 = vmul.f32 %v1193, %v1164
    %v1249 = vmul.f32 %v1197, %v1166
    %v1250 = vmul.f32 %v1201, %v1168
    %v1251 = vmul.f32 %v1205, %v1170
    %v1252 = vmul.f32 %v1209, %v1172
    %v1253 = vmul.f32 %v1213, %v1174
    %v1254 = vmul.f32 %v1217, %v1161
    %v1255 = vmul.f32 %v1221, %v1163
    %v1256 = vmul.f32 %v1225, %v1165
    %v1257 = vmul.f32 %v1229, %v1167
    %v1258 = vmul.f32 %v1233, %v1169
    %v1259 = vmul.f32 %v1237, %v1171
    %v1260 = vmul.f32 %v1241, %v1173
    %v1261 = vmul.f32 %v1245, %v1175
    %v1262 = vsel %vm344, %v1246, 0.0
    %v1263 = vrot.slane %v1262, 4
    %v1264 = vadd.f32 %v1262, %v1263
    %v1265 = vrot.slane %v1264, 2
    %v1266 = vadd.f32 %v1264, %v1265
    %v1267 = vrot.slane %v1266, 1
    %v1268 = vadd.f32 %v1266, %v1267
    %v1269 = vsel %vm344, %v1247, 0.0
    %v1270 = vrot.slane %v1269, 4
    %v1271 = vadd.f32 %v1269, %v1270
    %v1272 = vrot.slane %v1271, 2
    %v1273 = vadd.f32 %v1271, %v1272
    %v1274 = vrot.slane %v1273, 1
    %v1275 = vadd.f32 %v1273, %v1274
    %v1276 = vsel %vm344, %v1248, 0.0
    %v1277 = vrot.slane %v1276, 4
    %v1278 = vadd.f32 %v1276, %v1277
    %v1279 = vrot.slane %v1278, 2
    %v1280 = vadd.f32 %v1278, %v1279
    %v1281 = vrot.slane %v1280, 1
    %v1282 = vadd.f32 %v1280, %v1281
    %v1283 = vsel %vm344, %v1249, 0.0
    %v1284 = vrot.slane %v1283, 4
    %v1285 = vadd.f32 %v1283, %v1284
    %v1286 = vrot.slane %v1285, 2
    %v1287 = vadd.f32 %v1285, %v1286
    %v1288 = vrot.slane %v1287, 1
    %v1289 = vadd.f32 %v1287, %v1288
    %v1290 = vsel %vm344, %v1250, 0.0
    %v1291 = vrot.slane %v1290, 4
    %v1292 = vadd.f32 %v1290, %v1291
    %v1293 = vrot.slane %v1292, 2
    %v1294 = vadd.f32 %v1292, %v1293
    %v1295 = vrot.slane %v1294, 1
    %v1296 = vadd.f32 %v1294, %v1295
    %v1297 = vsel %vm344, %v1251, 0.0
    %v1298 = vrot.slane %v1297, 4
    %v1299 = vadd.f32 %v1297, %v1298
    %v1300 = vrot.slane %v1299, 2
    %v1301 = vadd.f32 %v1299, %v1300
    %v1302 = vrot.slane %v1301, 1
    %v1303 = vadd.f32 %v1301, %v1302
    %v1304 = vsel %vm344, %v1252, 0.0
    %v1305 = vrot.slane %v1304, 4
    %v1306 = vadd.f32 %v1304, %v1305
    %v1307 = vrot.slane %v1306, 2
    %v1308 = vadd.f32 %v1306, %v1307
    %v1309 = vrot.slane %v1308, 1
    %v1310 = vadd.f32 %v1308, %v1309
    %v1311 = vsel %vm344, %v1253, 0.0
    %v1312 = vrot.slane %v1311, 4
    %v1313 = vadd.f32 %v1311, %v1312
    %v1314 = vrot.slane %v1313, 2
    %v1315 = vadd.f32 %v1313, %v1314
    %v1316 = vrot.slane %v1315, 1
    %v1317 = vadd.f32 %v1315, %v1316
    %v1318 = vsel %vm344, %v1254, 0.0
    %v1319 = vrot.slane %v1318, 4
    %v1320 = vadd.f32 %v1318, %v1319
    %v1321 = vrot.slane %v1320, 2
    %v1322 = vadd.f32 %v1320, %v1321
    %v1323 = vrot.slane %v1322, 1
    %v1324 = vadd.f32 %v1322, %v1323
    %v1325 = vsel %vm344, %v1255, 0.0
    %v1326 = vrot.slane %v1325, 4
    %v1327 = vadd.f32 %v1325, %v1326
    %v1328 = vrot.slane %v1327, 2
    %v1329 = vadd.f32 %v1327, %v1328
    %v1330 = vrot.slane %v1329, 1
    %v1331 = vadd.f32 %v1329, %v1330
    %v1332 = vsel %vm344, %v1256, 0.0
    %v1333 = vrot.slane %v1332, 4
    %v1334 = vadd.f32 %v1332, %v1333
    %v1335 = vrot.slane %v1334, 2
    %v1336 = vadd.f32 %v1334, %v1335
    %v1337 = vrot.slane %v1336, 1
    %v1338 = vadd.f32 %v1336, %v1337
    %v1339 = vsel %vm344, %v1257, 0.0
    %v1340 = vrot.slane %v1339, 4
    %v1341 = vadd.f32 %v1339, %v1340
    %v1342 = vrot.slane %v1341, 2
    %v1343 = vadd.f32 %v1341, %v1342
    %v1344 = vrot.slane %v1343, 1
    %v1345 = vadd.f32 %v1343, %v1344
    %v1346 = vsel %vm344, %v1258, 0.0
    %v1347 = vrot.slane %v1346, 4
    %v1348 = vadd.f32 %v1346, %v1347
    %v1349 = vrot.slane %v1348, 2
    %v1350 = vadd.f32 %v1348, %v1349
    %v1351 = vrot.slane %v1350, 1
    %v1352 = vadd.f32 %v1350, %v1351
    %v1353 = vsel %vm344, %v1259, 0.0
    %v1354 = vrot.slane %v1353, 4
    %v1355 = vadd.f32 %v1353, %v1354
    %v1356 = vrot.slane %v1355, 2
    %v1357 = vadd.f32 %v1355, %v1356
    %v1358 = vrot.slane %v1357, 1
    %v1359 = vadd.f32 %v1357, %v1358
    %v1360 = vsel %vm344, %v1260, 0.0
    %v1361 = vrot.slane %v1360, 4
    %v1362 = vadd.f32 %v1360, %v1361
    %v1363 = vrot.slane %v1362, 2
    %v1364 = vadd.f32 %v1362, %v1363
    %v1365 = vrot.slane %v1364, 1
    %v1366 = vadd.f32 %v1364, %v1365
    %v1367 = vsel %vm344, %v1261, 0.0
    %v1368 = vrot.slane %v1367, 4
    %v1369 = vadd.f32 %v1367, %v1368
    %v1370 = vrot.slane %v1369, 2
    %v1371 = vadd.f32 %v1369, %v1370
    %v1372 = vrot.slane %v1371, 1
    %v1373 = vadd.f32 %v1371, %v1372
    %vm1390 = vcmask 1041409
    %v1391 = vsel %vm1390, %v1275, %v1268
    %vm1392 = vcmask 1042434
    %v1393 = vsel %vm1392, %v1282, %v1391
    %vm1394 = vcmask 1043459
    %v1395 = vsel %vm1394, %v1289, %v1393
    %vm1396 = vcmask 1044484
    %v1397 = vsel %vm1396, %v1296, %v1395
    %vm1398 = vcmask 1045509
    %v1399 = vsel %vm1398, %v1303, %v1397
    %vm1400 = vcmask 1046534
    %v1401 = vsel %vm1400, %v1310, %v1399
    %vm1402 = vcmask 1047559
    %v1403 = vsel %vm1402, %v1317, %v1401
    %v1404 = vsel %vm1390, %v1331, %v1324
    %v1405 = vsel %vm1392, %v1338, %v1404
    %v1406 = vsel %vm1394, %v1345, %v1405
    %v1407 = vsel %vm1396, %v1352, %v1406
    %v1408 = vsel %vm1398, %v1359, %v1407
    %v1409 = vsel %vm1400, %v1366, %v1408
    %v1410 = vsel %vm1402, %v1373, %v1409
    %v1413 = vadd.f32 %v1180, %v1403
    %v1414 = vadd.f32 %v1181, %v1410
    %v1415 = vsub.f32 0.0, %v140
    %v1416 = vsub.f32 0.0, %v143
    %v1417 = vmul.f32 %v1415, 1.442695
    %v1418 = vpow.pop %v1417
    %v1419 = vmul.f32 %v1416, 1.442695
    %v1420 = vpow.pop %v1419
    %v1421 = vadd.f32 %v1418, 1.0
    %v1422 = vadd.f32 %v1420, 1.0
    %v1423 = vrcp.pop %v1421
    %v1424 = vmul.f32 1.0, %v1423
    %v1425 = vrcp.pop %v1422
    %v1426 = vmul.f32 1.0, %v1425
    %1429 = vrot.lane.b32.xlu0 %v1413, 64
    %v1430 = vpop.permute.xlu0 %1429
    %1431 = vrot.lane.b32.xlu0 %v1414, 64
    %v1432 = vpop.permute.xlu0 %1431
    %v1435 = vmul.f32 %v1424, %v1430
    %v1436 = vmul.f32 %v1426, %v1432
    %v1437 = vld [vmem:[%s3 + $0x30] sm:$0xf]
    %v1438 = vld [vmem:[%s3 + $0x34] sm:$0xf]
    %v1439 = vld [vmem:[%s3 + $0x38] sm:$0xf]
    %v1440 = vld [vmem:[%s3 + $0x3c] sm:$0xf]
    %v1441 = vld [vmem:[%s3 + $0x40] sm:$0xf]
    %v1442 = vld [vmem:[%s3 + $0x44] sm:$0xf]
    %v1443 = vld [vmem:[%s3 + $0x48] sm:$0xf]
    %v1444 = vld [vmem:[%s3 + $0x4c] sm:$0xf]
    %v1445 = vpack.c.bf16 %v1436, %v1435
    %v1446 = vlaneseq
    %v1447 = vshrl.u32 %v1446, 7
    %v1448 = vsub.s32 6, %v1447
    %v1449 = vrot.slane %v37, %v1448
    %1451 = vrot.lane.b32.xlu0 %v1445, 64
    %v1452 = vpop.permute.xlu0 %1451
    %v1461 = vunpack.c.l.b16 %v1437
    %v1462 = vunpack.c.l.b16 %v1438
    %v1463 = vunpack.c.l.b16 %v1439
    %v1464 = vunpack.c.l.b16 %v1440
    %v1465 = vunpack.c.l.b16 %v1441
    %v1466 = vunpack.c.l.b16 %v1442
    %v1467 = vunpack.c.l.b16 %v1443
    %v1468 = vunpack.c.l.b16 %v1444
    %v1469 = vpack.c.b16 %v1462, %v1461
    %v1470 = vpack.c.b16 %v1464, %v1463
    %v1471 = vpack.c.b16 %v1466, %v1465
    %v1472 = vpack.c.b16 %v1468, %v1467
    %v1478 = vsel %vm344, %v1452, 0
    %1480 = vmatprep.subr.bf16.mxu0 0
    %1481 = vmatpush1.bf16.msra.mxu0 %v1469
    %1482 = vmatprep.subr.bf16.mxu0 0
    %1483 = vmatpush1.bf16.msra.mxu0 %v1470
    %1484 = vmatprep.subr.bf16.mxu0 0
    %1485 = vmatpush1.bf16.msra.mxu0 %v1471
    %1486 = vmatprep.subr.bf16.mxu0 0
    %1487 = vmatpush1.bf16.msra.mxu0 %v1472
    %1488 = vmatprep.subr.bf16.mxu0 0
    %1489 = vmatpush1.bf16.msra.mxu0 0
    %1490 = vmatprep.subr.bf16.mxu0 0
    %1491 = vmatpush1.bf16.msra.mxu0 0
    %1492 = vmatprep.subr.bf16.mxu0 0
    %1493 = vmatpush1.bf16.msra.mxu0 0
    %1494 = vmatprep.subr.bf16.mxu0 0
    %1495 = vmatpush1.bf16.msra.mxu0 0
    %1496 = vmatprep.subr.bf16.mxu0 0
    %1497 = vmatpush1.bf16.msra.mxu0 0
    %1498 = vmatprep.subr.bf16.mxu0 0
    %1499 = vmatpush1.bf16.msra.mxu0 0
    %1500 = vmatprep.subr.bf16.mxu0 0
    %1501 = vmatpush1.bf16.msra.mxu0 0
    %1502 = vmatprep.subr.bf16.mxu0 0
    %1503 = vmatpush1.bf16.msra.mxu0 0
    %1504 = vmatprep.subr.bf16.mxu0 0
    %1505 = vmatpush1.bf16.msra.mxu0 0
    %1506 = vmatprep.subr.bf16.mxu0 0
    %1507 = vmatpush1.bf16.msra.mxu0 0
    %1508 = vmatprep.subr.bf16.mxu0 0
    %1509 = vmatpush1.bf16.msra.mxu0 0
    %1510 = vmatprep.subr.bf16.mxu0 0
    %1511 = vmatpush1.bf16.msra.mxu0 0
    %1512 = vmatprep.mubr.bf16.mxu0 0
    %1513 = vmatmul.mubr.bf16.gmra.mrb[0].mxu0 %v1478
    %v1514 = vpop.f32.mrb[0].mxu0
    %v1515 = vadd.f32 %v1449, %v1514
    %v1516 = vpop.f32.mrb[0].mxu0
    %v1517 = vpop.f32.mrb[0].mxu0
    %v1518 = vadd.f32 %v1449, %v1517
    %v1519 = vpop.f32.mrb[0].mxu0
    %1520 = vdwg.mxu0
    %v1521 = vadd.f32 %v1515, %v25
    %v1522 = vadd.f32 %v1518, %v26
    %v1523 = vsel %vm41, %v1521, 0.0
    %1524 = vadd.xlane.f32.xlu0 %v1523
    %v1525 = vpop.xlane.xlu0 %1524
    %v1526 = vsel %vm41, %v1522, 0.0
    %1527 = vadd.xlane.f32.xlu0 %v1526
    %v1528 = vpop.xlane.xlu0 %1527
    %v1529 = vmul.f32 %v1525, %v48
    %v1530 = vmul.f32 %v1528, %v48
    %v1531 = vsub.f32 %v1521, %v1529
    %v1532 = vsub.f32 %v1522, %v1530
    %v1533 = vmul.f32 %v1531, %v1531
    %v1534 = vmul.f32 %v1532, %v1532
    %v1535 = vsel %vm41, %v1533, 0.0
    %1536 = vadd.xlane.f32.xlu0 %v1535
    %v1537 = vpop.xlane.xlu0 %1536
    %v1538 = vsel %vm41, %v1534, 0.0
    %1539 = vadd.xlane.f32.xlu0 %v1538
    %v1540 = vpop.xlane.xlu0 %1539
    %v1541 = vmul.f32 %v1537, %v48
    %v1542 = vmul.f32 %v1540, %v48
    %v1543 = vadd.f32 %v1541, 1e-05
    %v1544 = vadd.f32 %v1542, 1e-05
    %v1545 = vrsqrt.pop %v1543
    %v1546 = vrsqrt.pop %v1544
    %v1547 = vmul.f32 %v1531, %v1545
    %v1548 = vmul.f32 %v1532, %v1546
    %v1549 = vlaneseq
    %v1550 = vshrl.u32 %v1549, 7
    %v1551 = vsub.s32 4, %v1550
    %v1552 = vrot.slane %v39, %v1551
    %v1553 = vmul.f32 %v1547, %v1552
    %v1554 = vmul.f32 %v1548, %v1552
    %v1555 = vlaneseq
    %v1556 = vshrl.u32 %v1555, 7
    %v1557 = vsub.s32 6, %v1556
    %v1558 = vrot.slane %v39, %v1557
    %v1559 = vadd.f32 %v1553, %v1558
    %v1560 = vadd.f32 %v1554, %v1558
    %v1561 = vld [vmem:[%s3 + $0x30] sm:$0xf]
    %v1562 = vld [vmem:[%s3 + $0x34] sm:$0xf]
    %v1563 = vld [vmem:[%s3 + $0x38] sm:$0xf]
    %v1564 = vld [vmem:[%s3 + $0x3c] sm:$0xf]
    %v1565 = vpack.c.bf16 %v1560, %v1559
    %v1566 = vlaneseq
    %v1567 = vshrl.u32 %v1566, 7
    %v1568 = vsub.s32 0, %v1567
    %v1569 = vrot.slane %v40, %v1568
    %v1574 = vunpack.c.l.b16 %v1561
    %v1575 = vunpack.c.l.b16 %v1562
    %v1576 = vunpack.c.l.b16 %v1563
    %v1577 = vunpack.c.l.b16 %v1564
    %v1578 = vpack.c.b16 %v1575, %v1574
    %v1579 = vpack.c.b16 %v1577, %v1576
    %1580 = vrot.lane.b32.xlu0 %v1578, 64
    %v1581 = vpop.permute.xlu0 %1580
    %1582 = vrot.lane.b32.xlu0 %v1579, 64
    %v1583 = vpop.permute.xlu0 %1582
    %v1587 = vsel %vm41, %v1565, 0
    %1589 = vmatprep.subr.bf16.mxu0 0
    %1590 = vmatpush1.bf16.msra.mxu0 %v1581
    %1591 = vmatprep.subr.bf16.mxu0 0
    %1592 = vmatpush1.bf16.msra.mxu0 %v1583
    %1593 = vmatprep.subr.bf16.mxu0 0
    %1594 = vmatpush1.bf16.msra.mxu0 0
    %1595 = vmatprep.subr.bf16.mxu0 0
    %1596 = vmatpush1.bf16.msra.mxu0 0
    %1597 = vmatprep.subr.bf16.mxu0 0
    %1598 = vmatpush1.bf16.msra.mxu0 0
    %1599 = vmatprep.subr.bf16.mxu0 0
    %1600 = vmatpush1.bf16.msra.mxu0 0
    %1601 = vmatprep.subr.bf16.mxu0 0
    %1602 = vmatpush1.bf16.msra.mxu0 0
    %1603 = vmatprep.subr.bf16.mxu0 0
    %1604 = vmatpush1.bf16.msra.mxu0 0
    %1605 = vmatprep.subr.bf16.mxu0 0
    %1606 = vmatpush1.bf16.msra.mxu0 0
    %1607 = vmatprep.subr.bf16.mxu0 0
    %1608 = vmatpush1.bf16.msra.mxu0 0
    %1609 = vmatprep.subr.bf16.mxu0 0
    %1610 = vmatpush1.bf16.msra.mxu0 0
    %1611 = vmatprep.subr.bf16.mxu0 0
    %1612 = vmatpush1.bf16.msra.mxu0 0
    %1613 = vmatprep.subr.bf16.mxu0 0
    %1614 = vmatpush1.bf16.msra.mxu0 0
    %1615 = vmatprep.subr.bf16.mxu0 0
    %1616 = vmatpush1.bf16.msra.mxu0 0
    %1617 = vmatprep.subr.bf16.mxu0 0
    %1618 = vmatpush1.bf16.msra.mxu0 0
    %1619 = vmatprep.subr.bf16.mxu0 0
    %1620 = vmatpush1.bf16.msra.mxu0 0
    %1621 = vmatprep.mubr.bf16.mxu0 0
    %1622 = vmatmul.mubr.bf16.gmra.mrb[0].mxu0 %v1587
    %v1623 = vpop.f32.mrb[0].mxu0
    %v1624 = vadd.f32 %v1569, %v1623
    %v1625 = vpop.f32.mrb[0].mxu0
    %v1626 = vpop.f32.mrb[0].mxu0
    %v1627 = vadd.f32 %v1569, %v1626
    %v1628 = vpop.f32.mrb[0].mxu0
    %1629 = vdwg.mxu0
    %v1630 = vtanh.pop %v1624
    %v1631 = vtanh.pop %v1627
    %v1632 = vmul.f32 %v1630, 0.8333333
    %v1633 = vmul.f32 %v1631, 0.8333333
    %v1634 = vadd.f32 %v1521, %v1632
    %v1635 = vadd.f32 %v1522, %v1633
    %v1636 = vsel %vm41, %v1634, 0.0
    %1637 = vadd.xlane.f32.xlu0 %v1636
    %v1638 = vpop.xlane.xlu0 %1637
    %v1639 = vsel %vm41, %v1635, 0.0
    %1640 = vadd.xlane.f32.xlu0 %v1639
    %v1641 = vpop.xlane.xlu0 %1640
    %v1642 = vmul.f32 %v1638, %v48
    %v1643 = vmul.f32 %v1641, %v48
    %v1644 = vsub.f32 %v1634, %v1642
    %v1645 = vsub.f32 %v1635, %v1643
    %v1646 = vmul.f32 %v1644, %v1644
    %v1647 = vmul.f32 %v1645, %v1645
    %v1648 = vsel %vm41, %v1646, 0.0
    %1649 = vadd.xlane.f32.xlu0 %v1648
    %v1650 = vpop.xlane.xlu0 %1649
    %v1651 = vsel %vm41, %v1647, 0.0
    %1652 = vadd.xlane.f32.xlu0 %v1651
    %v1653 = vpop.xlane.xlu0 %1652
    %v1654 = vmul.f32 %v1650, %v48
    %v1655 = vmul.f32 %v1653, %v48
    %v1656 = vadd.f32 %v1654, 1e-05
    %v1657 = vadd.f32 %v1655, 1e-05
    %v1658 = vrsqrt.pop %v1656
    %v1659 = vrsqrt.pop %v1657
    %v1660 = vmul.f32 %v1644, %v1658
    %v1661 = vmul.f32 %v1645, %v1659
    %v1662 = vlaneseq
    %v1663 = vshrl.u32 %v1662, 7
    %v1664 = vsub.s32 5, %v1663
    %v1665 = vrot.slane %v39, %v1664
    %v1666 = vmul.f32 %v1660, %v1665
    %v1667 = vmul.f32 %v1661, %v1665
    %v1668 = vlaneseq
    %v1669 = vshrl.u32 %v1668, 7
    %v1670 = vsub.s32 7, %v1669
    %v1671 = vrot.slane %v39, %v1670
    %v1672 = vadd.f32 %v1666, %v1671
    %v1673 = vadd.f32 %v1667, %v1671
    %v1674 = vpack.c.bf16 %v1673, %v1672
    %v1675 = vlaneseq
    %v1676 = vshrl.u32 %v1675, 7
    %v1677 = vsub.s32 1, %v1676
    %v1678 = vrot.slane %v40, %v1677
    %1679 = vrot.lane.b32.xlu0 %v1471, 64
    %v1680 = vpop.permute.xlu0 %1679
    %1681 = vrot.lane.b32.xlu0 %v1472, 64
    %v1682 = vpop.permute.xlu0 %1681
    %v1686 = vsel %vm41, %v1674, 0
    %1688 = vmatprep.subr.bf16.mxu0 0
    %1689 = vmatpush1.bf16.msra.mxu0 %v1680
    %1690 = vmatprep.subr.bf16.mxu0 0
    %1691 = vmatpush1.bf16.msra.mxu0 %v1682
    %1692 = vmatprep.subr.bf16.mxu0 0
    %1693 = vmatpush1.bf16.msra.mxu0 0
    %1694 = vmatprep.subr.bf16.mxu0 0
    %1695 = vmatpush1.bf16.msra.mxu0 0
    %1696 = vmatprep.subr.bf16.mxu0 0
    %1697 = vmatpush1.bf16.msra.mxu0 0
    %1698 = vmatprep.subr.bf16.mxu0 0
    %1699 = vmatpush1.bf16.msra.mxu0 0
    %1700 = vmatprep.subr.bf16.mxu0 0
    %1701 = vmatpush1.bf16.msra.mxu0 0
    %1702 = vmatprep.subr.bf16.mxu0 0
    %1703 = vmatpush1.bf16.msra.mxu0 0
    %1704 = vmatprep.subr.bf16.mxu0 0
    %1705 = vmatpush1.bf16.msra.mxu0 0
    %1706 = vmatprep.subr.bf16.mxu0 0
    %1707 = vmatpush1.bf16.msra.mxu0 0
    %1708 = vmatprep.subr.bf16.mxu0 0
    %1709 = vmatpush1.bf16.msra.mxu0 0
    %1710 = vmatprep.subr.bf16.mxu0 0
    %1711 = vmatpush1.bf16.msra.mxu0 0
    %1712 = vmatprep.subr.bf16.mxu0 0
    %1713 = vmatpush1.bf16.msra.mxu0 0
    %1714 = vmatprep.subr.bf16.mxu0 0
    %1715 = vmatpush1.bf16.msra.mxu0 0
    %1716 = vmatprep.subr.bf16.mxu0 0
    %1717 = vmatpush1.bf16.msra.mxu0 0
    %1718 = vmatprep.subr.bf16.mxu0 0
    %1719 = vmatpush1.bf16.msra.mxu0 0
    %1720 = vmatprep.mubr.bf16.mxu0 0
    %1721 = vmatmul.mubr.bf16.gmra.mrb[0].mxu0 %v1686
    %v1722 = vpop.f32.mrb[0].mxu0
    %v1723 = vadd.f32 %v1678, %v1722
    %v1724 = vpop.f32.mrb[0].mxu0
    %v1725 = vpop.f32.mrb[0].mxu0
    %v1726 = vadd.f32 %v1678, %v1725
    %v1727 = vpop.f32.mrb[0].mxu0
    %1728 = vdwg.mxu0
    %v1729 = vtanh.pop %v1723
    %v1730 = vtanh.pop %v1726
    %v1731 = vmul.f32 %v1729, 0.41666666
    %v1732 = vmul.f32 %v1730, 0.41666666
    %v1733 = vadd.f32 %v1634, %v1731
    %v1734 = vadd.f32 %v1635, %v1732
    %s1735 = scalar_lea.vmem %s4, 32
    %v1736 = vld [vmem:[%s1735] sm:$0xff]
    %v1737 = vld [vmem:[%s1735 + $0x8] sm:$0xff]
    %v1738 = vld [vmem:[%s1735 + $0x10] sm:$0xff]
    %v1739 = vld [vmem:[%s1735 + $0x18] sm:$0xff]
    %v1740 = vsel %vm41, %v1733, 0.0
    %1741 = vadd.xlane.f32.xlu0 %v1740
    %v1742 = vpop.xlane.xlu0 %1741
    %v1743 = vsel %vm41, %v1734, 0.0
    %1744 = vadd.xlane.f32.xlu0 %v1743
    %v1745 = vpop.xlane.xlu0 %1744
    %v1746 = vmul.f32 %v1742, %v48
    %v1747 = vmul.f32 %v1745, %v48
    %v1748 = vsub.f32 %v1733, %v1746
    %v1749 = vsub.f32 %v1734, %v1747
    %v1750 = vmul.f32 %v1748, %v1748
    %v1751 = vmul.f32 %v1749, %v1749
    %v1752 = vsel %vm41, %v1750, 0.0
    %1753 = vadd.xlane.f32.xlu0 %v1752
    %v1754 = vpop.xlane.xlu0 %1753
    %v1755 = vsel %vm41, %v1751, 0.0
    %1756 = vadd.xlane.f32.xlu0 %v1755
    %v1757 = vpop.xlane.xlu0 %1756
    %v1758 = vmul.f32 %v1754, %v48
    %v1759 = vmul.f32 %v1757, %v48
    %v1760 = vadd.f32 %v1758, 1e-05
    %v1761 = vadd.f32 %v1759, 1e-05
    %v1762 = vrsqrt.pop %v1760
    %v1763 = vrsqrt.pop %v1761
    %v1764 = vmul.f32 %v1748, %v1762
    %v1765 = vmul.f32 %v1749, %v1763
    %v1766 = vlaneseq
    %v1767 = vshrl.u32 %v1766, 7
    %v1768 = vsub.s32 0, %v1767
    %v1769 = vrot.slane %v1736, %v1768
    %v1770 = vmul.f32 %v1764, %v1769
    %v1771 = vmul.f32 %v1765, %v1769
    %v1772 = vlaneseq
    %v1773 = vshrl.u32 %v1772, 7
    %v1774 = vsub.s32 1, %v1773
    %v1775 = vrot.slane %v1736, %v1774
    %v1776 = vadd.f32 %v1770, %v1775
    %v1777 = vadd.f32 %v1771, %v1775
    %s1778 = scalar_lea.vmem %s3, 80
    %v1779 = vld [vmem:[%s1778] sm:$0xf]
    %v1780 = vld [vmem:[%s1778 + $0x4] sm:$0xf]
    %v1781 = vld [vmem:[%s1778 + $0x8] sm:$0xf]
    %v1782 = vld [vmem:[%s1778 + $0xc] sm:$0xf]
    %v1783 = vpack.c.bf16 %v1777, %v1776
    %v1784 = vlaneseq
    %v1785 = vshrl.u32 %v1784, 7
    %v1786 = vsub.s32 2, %v1785
    %v1787 = vrot.slane %v1736, %v1786
    %v1792 = vunpack.c.l.b16 %v1779
    %v1793 = vunpack.c.l.b16 %v1780
    %v1794 = vunpack.c.l.b16 %v1781
    %v1795 = vunpack.c.l.b16 %v1782
    %v1796 = vpack.c.b16 %v1793, %v1792
    %v1797 = vpack.c.b16 %v1795, %v1794
    %v1801 = vsel %vm41, %v1783, 0
    %1803 = vmatprep.subr.bf16.mxu0 0
    %1804 = vmatpush1.bf16.msra.mxu0 %v1796
    %1805 = vmatprep.subr.bf16.mxu0 0
    %1806 = vmatpush1.bf16.msra.mxu0 %v1797
    %1807 = vmatprep.subr.bf16.mxu0 0
    %1808 = vmatpush1.bf16.msra.mxu0 0
    %1809 = vmatprep.subr.bf16.mxu0 0
    %1810 = vmatpush1.bf16.msra.mxu0 0
    %1811 = vmatprep.subr.bf16.mxu0 0
    %1812 = vmatpush1.bf16.msra.mxu0 0
    %1813 = vmatprep.subr.bf16.mxu0 0
    %1814 = vmatpush1.bf16.msra.mxu0 0
    %1815 = vmatprep.subr.bf16.mxu0 0
    %1816 = vmatpush1.bf16.msra.mxu0 0
    %1817 = vmatprep.subr.bf16.mxu0 0
    %1818 = vmatpush1.bf16.msra.mxu0 0
    %1819 = vmatprep.subr.bf16.mxu0 0
    %1820 = vmatpush1.bf16.msra.mxu0 0
    %1821 = vmatprep.subr.bf16.mxu0 0
    %1822 = vmatpush1.bf16.msra.mxu0 0
    %1823 = vmatprep.subr.bf16.mxu0 0
    %1824 = vmatpush1.bf16.msra.mxu0 0
    %1825 = vmatprep.subr.bf16.mxu0 0
    %1826 = vmatpush1.bf16.msra.mxu0 0
    %1827 = vmatprep.subr.bf16.mxu0 0
    %1828 = vmatpush1.bf16.msra.mxu0 0
    %1829 = vmatprep.subr.bf16.mxu0 0
    %1830 = vmatpush1.bf16.msra.mxu0 0
    %1831 = vmatprep.subr.bf16.mxu0 0
    %1832 = vmatpush1.bf16.msra.mxu0 0
    %1833 = vmatprep.subr.bf16.mxu0 0
    %1834 = vmatpush1.bf16.msra.mxu0 0
    %1835 = vmatprep.mubr.bf16.mxu0 0
    %1836 = vmatmul.mubr.bf16.gmra.mrb[0].mxu0 %v1801
    %v1837 = vpop.f32.mrb[0].mxu0
    %v1838 = vadd.f32 %v1787, %v1837
    %v1839 = vpop.f32.mrb[0].mxu0
    %v1840 = vpop.f32.mrb[0].mxu0
    %v1841 = vadd.f32 %v1787, %v1840
    %v1842 = vpop.f32.mrb[0].mxu0
    %1843 = vdwg.mxu0
    %v1844 = vpack.c.bf16 %v1841, %v1838
    %1845 = vmatprep.subr.bf16.mxu0 0
    %1846 = vmatpush1.bf16.msra.mxu0 %v1844
    %1847 = vmatprep.subr.bf16.mxu0 0
    %1848 = vmatpush1.bf16.msra.mxu0 0
    %1849 = vmatprep.subr.bf16.mxu0 0
    %1850 = vmatpush1.bf16.msra.mxu0 0
    %1851 = vmatprep.subr.bf16.mxu0 0
    %1852 = vmatpush1.bf16.msra.mxu0 0
    %1853 = vmatprep.subr.bf16.mxu0 0
    %1854 = vmatpush1.bf16.msra.mxu0 0
    %1855 = vmatprep.subr.bf16.mxu0 0
    %1856 = vmatpush1.bf16.msra.mxu0 0
    %1857 = vmatprep.subr.bf16.mxu0 0
    %1858 = vmatpush1.bf16.msra.mxu0 0
    %1859 = vmatprep.subr.bf16.mxu0 0
    %1860 = vmatpush1.bf16.msra.mxu0 0
    %1861 = vmatprep.subr.bf16.mxu0 0
    %1862 = vmatpush1.bf16.msra.mxu0 0
    %1863 = vmatprep.subr.bf16.mxu0 0
    %1864 = vmatpush1.bf16.msra.mxu0 0
    %1865 = vmatprep.subr.bf16.mxu0 0
    %1866 = vmatpush1.bf16.msra.mxu0 0
    %1867 = vmatprep.subr.bf16.mxu0 0
    %1868 = vmatpush1.bf16.msra.mxu0 0
    %1869 = vmatprep.subr.bf16.mxu0 0
    %1870 = vmatpush1.bf16.msra.mxu0 0
    %1871 = vmatprep.subr.bf16.mxu0 0
    %1872 = vmatpush1.bf16.msra.mxu0 0
    %1873 = vmatprep.subr.bf16.mxu0 0
    %1874 = vmatpush1.bf16.msra.mxu0 0
    %1875 = vmatprep.subr.bf16.mxu0 0
    %1876 = vmatpush1.bf16.msra.mxu0 0
    %1877 = vmatprep.mubr.bf16.mxu0 0
    %1878 = vmatmul.mubr.bf16.gmra.mrb[0].mxu0 %v169
    %v1879 = vpop.f32.mrb[0].mxu0
    %v1880 = vadd.f32 0.0, %v1879
    %v1881 = vpop.f32.mrb[0].mxu0
    %v1882 = vpop.f32.mrb[0].mxu0
    %v1883 = vadd.f32 0.0, %v1882
    %v1884 = vpop.f32.mrb[0].mxu0
    %1885 = vmatprep.mubr.bf16.mxu0 0
    %1886 = vmatmul.mubr.bf16.gmra.mrb[0].mxu0 %v172
    %v1887 = vpop.f32.mrb[0].mxu0
    %v1888 = vadd.f32 0.0, %v1887
    %v1889 = vpop.f32.mrb[0].mxu0
    %v1890 = vpop.f32.mrb[0].mxu0
    %v1891 = vadd.f32 0.0, %v1890
    %v1892 = vpop.f32.mrb[0].mxu0
    %1893 = vmatprep.mubr.bf16.mxu0 0
    %1894 = vmatmul.mubr.bf16.gmra.mrb[0].mxu0 %v175
    %v1895 = vpop.f32.mrb[0].mxu0
    %v1896 = vadd.f32 0.0, %v1895
    %v1897 = vpop.f32.mrb[0].mxu0
    %v1898 = vpop.f32.mrb[0].mxu0
    %v1899 = vadd.f32 0.0, %v1898
    %v1900 = vpop.f32.mrb[0].mxu0
    %1901 = vmatprep.mubr.bf16.mxu0 0
    %1902 = vmatmul.mubr.bf16.gmra.mrb[0].mxu0 %v178
    %v1903 = vpop.f32.mrb[0].mxu0
    %v1904 = vadd.f32 0.0, %v1903
    %v1905 = vpop.f32.mrb[0].mxu0
    %v1906 = vpop.f32.mrb[0].mxu0
    %v1907 = vadd.f32 0.0, %v1906
    %v1908 = vpop.f32.mrb[0].mxu0
    %1909 = vdwg.mxu0
    %v1910 = vlaneseq
    %v1911 = vshrl.u32 %v1910, 7
    %v1912 = vsub.s32 3, %v1911
    %v1913 = vrot.slane %v1737, %v1912
    %v1914 = vmul.f32 %v1913, %v1880
    %v1915 = vmul.f32 %v1913, %v1883
    %v1916 = vlaneseq
    %v1917 = vshrl.u32 %v1916, 7
    %v1918 = vsub.s32 4, %v1917
    %v1919 = vrot.slane %v1736, %v1918
    %v1920 = vadd.f32 %v1919, %v1914
    %v1921 = vadd.f32 %v1919, %v1915
    %v1922 = vlaneseq
    %v1923 = vshrl.u32 %v1922, 7
    %v1924 = vsub.s32 2, %v1923
    %v1925 = vrot.slane %v1737, %v1924
    %v1926 = vmul.f32 %v1925, %v1888
    %v1927 = vmul.f32 %v1925, %v1891
    %v1928 = vadd.f32 %v1920, %v1926
    %v1929 = vadd.f32 %v1921, %v1927
    %v1930 = vlaneseq
    %v1931 = vshrl.u32 %v1930, 7
    %v1932 = vsub.s32 1, %v1931
    %v1933 = vrot.slane %v1737, %v1932
    %v1934 = vmul.f32 %v1933, %v1896
    %v1935 = vmul.f32 %v1933, %v1899
    %v1936 = vadd.f32 %v1928, %v1934
    %v1937 = vadd.f32 %v1929, %v1935
    %v1938 = vlaneseq
    %v1939 = vshrl.u32 %v1938, 7
    %v1940 = vsub.s32 0, %v1939
    %v1941 = vrot.slane %v1737, %v1940
    %v1942 = vmul.f32 %v1941, %v1904
    %v1943 = vmul.f32 %v1941, %v1907
    %v1944 = vadd.f32 %v1936, %v1942
    %v1945 = vadd.f32 %v1937, %v1943
    %v1946 = vsub.f32 0.0, %v1944
    %v1947 = vsub.f32 0.0, %v1945
    %v1948 = vmul.f32 %v1946, 1.442695
    %v1949 = vpow.pop %v1948
    %v1950 = vmul.f32 %v1947, 1.442695
    %v1951 = vpow.pop %v1950
    %v1952 = vadd.f32 %v1949, 1.0
    %v1953 = vadd.f32 %v1951, 1.0
    %v1954 = vrcp.pop %v1952
    %v1955 = vmul.f32 1.0, %v1954
    %v1956 = vrcp.pop %v1953
    %v1957 = vmul.f32 1.0, %v1956
    %v1958 = vmul.f32 %v1944, %v1955
    %v1959 = vmul.f32 %v1945, %v1957
    %v1960 = vmul.f32 %v1958, %v298
    %v1961 = vmul.f32 %v1959, %v303
    %v1962 = vld [vmem:[%s1778 + $0x10] sm:$0xf]
    %v1963 = vld [vmem:[%s1778 + $0x14] sm:$0xf]
    %v1964 = vld [vmem:[%s1778 + $0x18] sm:$0xf]
    %v1965 = vld [vmem:[%s1778 + $0x1c] sm:$0xf]
    %v1966 = vld [vmem:[%s1778 + $0x20] sm:$0xf]
    %v1967 = vld [vmem:[%s1778 + $0x24] sm:$0xf]
    %v1968 = vld [vmem:[%s1778 + $0x28] sm:$0xf]
    %v1969 = vld [vmem:[%s1778 + $0x2c] sm:$0xf]
    %v1970 = vpack.c.bf16 %v1961, %v1960
    %v1971 = vlaneseq
    %v1972 = vshrl.u32 %v1971, 7
    %v1973 = vsub.s32 3, %v1972
    %v1974 = vrot.slane %v1736, %v1973
    %v1983 = vunpack.c.l.b16 %v1962
    %v1984 = vunpack.c.l.b16 %v1963
    %v1985 = vunpack.c.l.b16 %v1964
    %v1986 = vunpack.c.l.b16 %v1965
    %v1987 = vunpack.c.l.b16 %v1966
    %v1988 = vunpack.c.l.b16 %v1967
    %v1989 = vunpack.c.l.b16 %v1968
    %v1990 = vunpack.c.l.b16 %v1969
    %v1991 = vpack.c.b16 %v1984, %v1983
    %v1992 = vpack.c.b16 %v1986, %v1985
    %v1993 = vpack.c.b16 %v1988, %v1987
    %v1994 = vpack.c.b16 %v1990, %v1989
    %v2000 = vsel %vm344, %v1970, 0
    %2002 = vmatprep.subr.bf16.mxu0 0
    %2003 = vmatpush1.bf16.msra.mxu0 %v1991
    %2004 = vmatprep.subr.bf16.mxu0 0
    %2005 = vmatpush1.bf16.msra.mxu0 %v1992
    %2006 = vmatprep.subr.bf16.mxu0 0
    %2007 = vmatpush1.bf16.msra.mxu0 %v1993
    %2008 = vmatprep.subr.bf16.mxu0 0
    %2009 = vmatpush1.bf16.msra.mxu0 %v1994
    %2010 = vmatprep.subr.bf16.mxu0 0
    %2011 = vmatpush1.bf16.msra.mxu0 0
    %2012 = vmatprep.subr.bf16.mxu0 0
    %2013 = vmatpush1.bf16.msra.mxu0 0
    %2014 = vmatprep.subr.bf16.mxu0 0
    %2015 = vmatpush1.bf16.msra.mxu0 0
    %2016 = vmatprep.subr.bf16.mxu0 0
    %2017 = vmatpush1.bf16.msra.mxu0 0
    %2018 = vmatprep.subr.bf16.mxu0 0
    %2019 = vmatpush1.bf16.msra.mxu0 0
    %2020 = vmatprep.subr.bf16.mxu0 0
    %2021 = vmatpush1.bf16.msra.mxu0 0
    %2022 = vmatprep.subr.bf16.mxu0 0
    %2023 = vmatpush1.bf16.msra.mxu0 0
    %2024 = vmatprep.subr.bf16.mxu0 0
    %2025 = vmatpush1.bf16.msra.mxu0 0
    %2026 = vmatprep.subr.bf16.mxu0 0
    %2027 = vmatpush1.bf16.msra.mxu0 0
    %2028 = vmatprep.subr.bf16.mxu0 0
    %2029 = vmatpush1.bf16.msra.mxu0 0
    %2030 = vmatprep.subr.bf16.mxu0 0
    %2031 = vmatpush1.bf16.msra.mxu0 0
    %2032 = vmatprep.subr.bf16.mxu0 0
    %2033 = vmatpush1.bf16.msra.mxu0 0
    %2034 = vmatprep.mubr.bf16.mxu0 0
    %2035 = vmatmul.mubr.bf16.gmra.mrb[0].mxu0 %v2000
    %v2036 = vpop.f32.mrb[0].mxu0
    %v2037 = vadd.f32 %v1974, %v2036
    %v2038 = vpop.f32.mrb[0].mxu0
    %v2039 = vpop.f32.mrb[0].mxu0
    %v2040 = vadd.f32 %v1974, %v2039
    %v2041 = vpop.f32.mrb[0].mxu0
    %2042 = vdwg.mxu0
    %v2043 = vmax.f32 %v2037, 0.0
    %v2044 = vmax.f32 %v2040, 0.0
    %v2045 = vand.u32 2147483647, %v2037
    %v2046 = vand.u32 2147483647, %v2040
    %v2047 = vsub.f32 0.0, %v2045
    %v2048 = vsub.f32 0.0, %v2046
    %v2049 = vmul.f32 %v2047, 1.442695
    %v2050 = vpow.pop %v2049
    %v2051 = vmul.f32 %v2048, 1.442695
    %v2052 = vpow.pop %v2051
    %v2053 = vadd.f32 %v2050, 1.0
    %v2054 = vadd.f32 %v2052, 1.0
    %v2055 = vlog2.pop %v2053
    %v2056 = vmul.f32 %v2055, 0.6931472
    %v2057 = vlog2.pop %v2054
    %v2058 = vmul.f32 %v2057, 0.6931472
    %v2059 = vadd.f32 %v2043, %v2056
    %v2060 = vadd.f32 %v2044, %v2058
    %v2063 = vcombine.high %v2059, %v2059
    %v2065 = vunpack.c.l.s4 1966171168
    %v2066 = vunpack.c.0.s8 %v2065
    %v2067 = vlaneseq
    %v2068 = vshrl.u32 %v2067, 7
    %v2069 = vsub.s32 %v2066, %v2068
    %v2070 = vrot.slane %v2059, %v2069
    %v2072 = vunpack.c.l.s4 1966171168
    %v2073 = vunpack.c.0.s8 %v2072
    %v2074 = vlaneseq
    %v2075 = vshrl.u32 %v2074, 7
    %v2076 = vsub.s32 %v2073, %v2075
    %v2077 = vrot.slane %v2063, %v2076
    %v2078 = vcombine.high %v2070, %v2070
    %v2079 = vcombine.high %v2077, %v2077
    %v2081 = vunpack.c.l.s4 1966171168
    %v2082 = vunpack.c.0.s8 %v2081
    %v2083 = vlaneseq
    %v2084 = vshrl.u32 %v2083, 7
    %v2085 = vsub.s32 %v2082, %v2084
    %v2086 = vrot.slane %v2070, %v2085
    %v2088 = vunpack.c.l.s4 1966171168
    %v2089 = vunpack.c.0.s8 %v2088
    %v2090 = vlaneseq
    %v2091 = vshrl.u32 %v2090, 7
    %v2092 = vsub.s32 %v2089, %v2091
    %v2093 = vrot.slane %v2077, %v2092
    %v2095 = vunpack.c.l.s4 1966171168
    %v2096 = vunpack.c.0.s8 %v2095
    %v2097 = vlaneseq
    %v2098 = vshrl.u32 %v2097, 7
    %v2099 = vsub.s32 %v2096, %v2098
    %v2100 = vrot.slane %v2078, %v2099
    %v2102 = vunpack.c.l.s4 1966171168
    %v2103 = vunpack.c.0.s8 %v2102
    %v2104 = vlaneseq
    %v2105 = vshrl.u32 %v2104, 7
    %v2106 = vsub.s32 %v2103, %v2105
    %v2107 = vrot.slane %v2079, %v2106
    %v2108 = vcombine.high %v2086, %v2086
    %v2109 = vcombine.high %v2093, %v2093
    %v2110 = vcombine.high %v2100, %v2100
    %v2111 = vcombine.high %v2107, %v2107
    %v2112 = vcombine.high %v2060, %v2060
    %v2114 = vunpack.c.l.s4 1966171168
    %v2115 = vunpack.c.0.s8 %v2114
    %v2116 = vlaneseq
    %v2117 = vshrl.u32 %v2116, 7
    %v2118 = vsub.s32 %v2115, %v2117
    %v2119 = vrot.slane %v2060, %v2118
    %v2121 = vunpack.c.l.s4 1966171168
    %v2122 = vunpack.c.0.s8 %v2121
    %v2123 = vlaneseq
    %v2124 = vshrl.u32 %v2123, 7
    %v2125 = vsub.s32 %v2122, %v2124
    %v2126 = vrot.slane %v2112, %v2125
    %v2127 = vcombine.high %v2119, %v2119
    %v2128 = vcombine.high %v2126, %v2126
    %v2130 = vunpack.c.l.s4 1966171168
    %v2131 = vunpack.c.0.s8 %v2130
    %v2132 = vlaneseq
    %v2133 = vshrl.u32 %v2132, 7
    %v2134 = vsub.s32 %v2131, %v2133
    %v2135 = vrot.slane %v2119, %v2134
    %v2137 = vunpack.c.l.s4 1966171168
    %v2138 = vunpack.c.0.s8 %v2137
    %v2139 = vlaneseq
    %v2140 = vshrl.u32 %v2139, 7
    %v2141 = vsub.s32 %v2138, %v2140
    %v2142 = vrot.slane %v2126, %v2141
    %v2144 = vunpack.c.l.s4 1966171168
    %v2145 = vunpack.c.0.s8 %v2144
    %v2146 = vlaneseq
    %v2147 = vshrl.u32 %v2146, 7
    %v2148 = vsub.s32 %v2145, %v2147
    %v2149 = vrot.slane %v2127, %v2148
    %v2151 = vunpack.c.l.s4 1966171168
    %v2152 = vunpack.c.0.s8 %v2151
    %v2153 = vlaneseq
    %v2154 = vshrl.u32 %v2153, 7
    %v2155 = vsub.s32 %v2152, %v2154
    %v2156 = vrot.slane %v2128, %v2155
    %v2157 = vcombine.high %v2135, %v2135
    %v2158 = vcombine.high %v2142, %v2142
    %v2159 = vcombine.high %v2149, %v2149
    %v2160 = vcombine.high %v2156, %v2156
    %v2161 = vlaneseq
    %v2162 = vshrl.u32 %v2161, 7
    %v2163 = vsub.s32 0, %v2162
    %v2164 = vrot.slane %v2086, %v2163
    %v2165 = vlaneseq
    %v2166 = vshrl.u32 %v2165, 7
    %v2167 = vsub.s32 0, %v2166
    %v2168 = vrot.slane %v2100, %v2167
    %v2169 = vlaneseq
    %v2170 = vshrl.u32 %v2169, 7
    %v2171 = vsub.s32 0, %v2170
    %v2172 = vrot.slane %v2108, %v2171
    %v2173 = vlaneseq
    %v2174 = vshrl.u32 %v2173, 7
    %v2175 = vsub.s32 0, %v2174
    %v2176 = vrot.slane %v2110, %v2175
    %v2177 = vlaneseq
    %v2178 = vshrl.u32 %v2177, 7
    %v2179 = vsub.s32 0, %v2178
    %v2180 = vrot.slane %v2093, %v2179
    %v2181 = vlaneseq
    %v2182 = vshrl.u32 %v2181, 7
    %v2183 = vsub.s32 0, %v2182
    %v2184 = vrot.slane %v2107, %v2183
    %v2185 = vlaneseq
    %v2186 = vshrl.u32 %v2185, 7
    %v2187 = vsub.s32 0, %v2186
    %v2188 = vrot.slane %v2109, %v2187
    %v2189 = vlaneseq
    %v2190 = vshrl.u32 %v2189, 7
    %v2191 = vsub.s32 0, %v2190
    %v2192 = vrot.slane %v2111, %v2191
    %v2193 = vlaneseq
    %v2194 = vshrl.u32 %v2193, 7
    %v2195 = vsub.s32 0, %v2194
    %v2196 = vrot.slane %v2135, %v2195
    %v2197 = vlaneseq
    %v2198 = vshrl.u32 %v2197, 7
    %v2199 = vsub.s32 0, %v2198
    %v2200 = vrot.slane %v2149, %v2199
    %v2201 = vlaneseq
    %v2202 = vshrl.u32 %v2201, 7
    %v2203 = vsub.s32 0, %v2202
    %v2204 = vrot.slane %v2157, %v2203
    %v2205 = vlaneseq
    %v2206 = vshrl.u32 %v2205, 7
    %v2207 = vsub.s32 0, %v2206
    %v2208 = vrot.slane %v2159, %v2207
    %v2209 = vlaneseq
    %v2210 = vshrl.u32 %v2209, 7
    %v2211 = vsub.s32 0, %v2210
    %v2212 = vrot.slane %v2142, %v2211
    %v2213 = vlaneseq
    %v2214 = vshrl.u32 %v2213, 7
    %v2215 = vsub.s32 0, %v2214
    %v2216 = vrot.slane %v2156, %v2215
    %v2217 = vlaneseq
    %v2218 = vshrl.u32 %v2217, 7
    %v2219 = vsub.s32 0, %v2218
    %v2220 = vrot.slane %v2158, %v2219
    %v2221 = vlaneseq
    %v2222 = vshrl.u32 %v2221, 7
    %v2223 = vsub.s32 0, %v2222
    %v2224 = vrot.slane %v2160, %v2223
    %v2241 = vmul.f32 %v2164, %v1737
    %v2242 = vmul.f32 %v2164, %v1738
    %v2243 = vmul.f32 %v2168, %v1737
    %v2244 = vmul.f32 %v2168, %v1738
    %v2245 = vmul.f32 %v2172, %v1737
    %v2246 = vmul.f32 %v2172, %v1738
    %v2247 = vmul.f32 %v2176, %v1737
    %v2248 = vmul.f32 %v2176, %v1738
    %v2249 = vmul.f32 %v2180, %v1737
    %v2250 = vmul.f32 %v2180, %v1738
    %v2251 = vmul.f32 %v2184, %v1737
    %v2252 = vmul.f32 %v2184, %v1738
    %v2253 = vmul.f32 %v2188, %v1737
    %v2254 = vmul.f32 %v2188, %v1738
    %v2255 = vmul.f32 %v2192, %v1737
    %v2256 = vmul.f32 %v2192, %v1738
    %v2257 = vmul.f32 %v2196, %v1737
    %v2258 = vmul.f32 %v2196, %v1738
    %v2259 = vmul.f32 %v2200, %v1737
    %v2260 = vmul.f32 %v2200, %v1738
    %v2261 = vmul.f32 %v2204, %v1737
    %v2262 = vmul.f32 %v2204, %v1738
    %v2263 = vmul.f32 %v2208, %v1737
    %v2264 = vmul.f32 %v2208, %v1738
    %v2265 = vmul.f32 %v2212, %v1737
    %v2266 = vmul.f32 %v2212, %v1738
    %v2267 = vmul.f32 %v2216, %v1737
    %v2268 = vmul.f32 %v2216, %v1738
    %v2269 = vmul.f32 %v2220, %v1737
    %v2270 = vmul.f32 %v2220, %v1738
    %v2271 = vmul.f32 %v2224, %v1737
    %v2272 = vmul.f32 %v2224, %v1738
    %v2273 = vmul.f32 %v2241, 1.442695
    %v2274 = vpow.pop %v2273
    %v2275 = vmul.f32 %v2242, 1.442695
    %v2276 = vpow.pop %v2275
    %v2277 = vmul.f32 %v2243, 1.442695
    %v2278 = vpow.pop %v2277
    %v2279 = vmul.f32 %v2244, 1.442695
    %v2280 = vpow.pop %v2279
    %v2281 = vmul.f32 %v2245, 1.442695
    %v2282 = vpow.pop %v2281
    %v2283 = vmul.f32 %v2246, 1.442695
    %v2284 = vpow.pop %v2283
    %v2285 = vmul.f32 %v2247, 1.442695
    %v2286 = vpow.pop %v2285
    %v2287 = vmul.f32 %v2248, 1.442695
    %v2288 = vpow.pop %v2287
    %v2289 = vmul.f32 %v2249, 1.442695
    %v2290 = vpow.pop %v2289
    %v2291 = vmul.f32 %v2250, 1.442695
    %v2292 = vpow.pop %v2291
    %v2293 = vmul.f32 %v2251, 1.442695
    %v2294 = vpow.pop %v2293
    %v2295 = vmul.f32 %v2252, 1.442695
    %v2296 = vpow.pop %v2295
    %v2297 = vmul.f32 %v2253, 1.442695
    %v2298 = vpow.pop %v2297
    %v2299 = vmul.f32 %v2254, 1.442695
    %v2300 = vpow.pop %v2299
    %v2301 = vmul.f32 %v2255, 1.442695
    %v2302 = vpow.pop %v2301
    %v2303 = vmul.f32 %v2256, 1.442695
    %v2304 = vpow.pop %v2303
    %v2305 = vmul.f32 %v2257, 1.442695
    %v2306 = vpow.pop %v2305
    %v2307 = vmul.f32 %v2258, 1.442695
    %v2308 = vpow.pop %v2307
    %v2309 = vmul.f32 %v2259, 1.442695
    %v2310 = vpow.pop %v2309
    %v2311 = vmul.f32 %v2260, 1.442695
    %v2312 = vpow.pop %v2311
    %v2313 = vmul.f32 %v2261, 1.442695
    %v2314 = vpow.pop %v2313
    %v2315 = vmul.f32 %v2262, 1.442695
    %v2316 = vpow.pop %v2315
    %v2317 = vmul.f32 %v2263, 1.442695
    %v2318 = vpow.pop %v2317
    %v2319 = vmul.f32 %v2264, 1.442695
    %v2320 = vpow.pop %v2319
    %v2321 = vmul.f32 %v2265, 1.442695
    %v2322 = vpow.pop %v2321
    %v2323 = vmul.f32 %v2266, 1.442695
    %v2324 = vpow.pop %v2323
    %v2325 = vmul.f32 %v2267, 1.442695
    %v2326 = vpow.pop %v2325
    %v2327 = vmul.f32 %v2268, 1.442695
    %v2328 = vpow.pop %v2327
    %v2329 = vmul.f32 %v2269, 1.442695
    %v2330 = vpow.pop %v2329
    %v2331 = vmul.f32 %v2270, 1.442695
    %v2332 = vpow.pop %v2331
    %v2333 = vmul.f32 %v2271, 1.442695
    %v2334 = vpow.pop %v2333
    %v2335 = vmul.f32 %v2272, 1.442695
    %v2336 = vpow.pop %v2335
    %v2337 = vmul.f32 %v2059, %v1960
    %v2338 = vmul.f32 %v2060, %v1961
    %v2341 = vcombine.high %v2337, %v2337
    %v2343 = vunpack.c.l.s4 1966171168
    %v2344 = vunpack.c.0.s8 %v2343
    %v2345 = vlaneseq
    %v2346 = vshrl.u32 %v2345, 7
    %v2347 = vsub.s32 %v2344, %v2346
    %v2348 = vrot.slane %v2337, %v2347
    %v2350 = vunpack.c.l.s4 1966171168
    %v2351 = vunpack.c.0.s8 %v2350
    %v2352 = vlaneseq
    %v2353 = vshrl.u32 %v2352, 7
    %v2354 = vsub.s32 %v2351, %v2353
    %v2355 = vrot.slane %v2341, %v2354
    %v2356 = vcombine.high %v2348, %v2348
    %v2357 = vcombine.high %v2355, %v2355
    %v2359 = vunpack.c.l.s4 1966171168
    %v2360 = vunpack.c.0.s8 %v2359
    %v2361 = vlaneseq
    %v2362 = vshrl.u32 %v2361, 7
    %v2363 = vsub.s32 %v2360, %v2362
    %v2364 = vrot.slane %v2348, %v2363
    %v2366 = vunpack.c.l.s4 1966171168
    %v2367 = vunpack.c.0.s8 %v2366
    %v2368 = vlaneseq
    %v2369 = vshrl.u32 %v2368, 7
    %v2370 = vsub.s32 %v2367, %v2369
    %v2371 = vrot.slane %v2355, %v2370
    %v2373 = vunpack.c.l.s4 1966171168
    %v2374 = vunpack.c.0.s8 %v2373
    %v2375 = vlaneseq
    %v2376 = vshrl.u32 %v2375, 7
    %v2377 = vsub.s32 %v2374, %v2376
    %v2378 = vrot.slane %v2356, %v2377
    %v2380 = vunpack.c.l.s4 1966171168
    %v2381 = vunpack.c.0.s8 %v2380
    %v2382 = vlaneseq
    %v2383 = vshrl.u32 %v2382, 7
    %v2384 = vsub.s32 %v2381, %v2383
    %v2385 = vrot.slane %v2357, %v2384
    %v2386 = vcombine.high %v2364, %v2364
    %v2387 = vcombine.high %v2371, %v2371
    %v2388 = vcombine.high %v2378, %v2378
    %v2389 = vcombine.high %v2385, %v2385
    %v2390 = vcombine.high %v2338, %v2338
    %v2392 = vunpack.c.l.s4 1966171168
    %v2393 = vunpack.c.0.s8 %v2392
    %v2394 = vlaneseq
    %v2395 = vshrl.u32 %v2394, 7
    %v2396 = vsub.s32 %v2393, %v2395
    %v2397 = vrot.slane %v2338, %v2396
    %v2399 = vunpack.c.l.s4 1966171168
    %v2400 = vunpack.c.0.s8 %v2399
    %v2401 = vlaneseq
    %v2402 = vshrl.u32 %v2401, 7
    %v2403 = vsub.s32 %v2400, %v2402
    %v2404 = vrot.slane %v2390, %v2403
    %v2405 = vcombine.high %v2397, %v2397
    %v2406 = vcombine.high %v2404, %v2404
    %v2408 = vunpack.c.l.s4 1966171168
    %v2409 = vunpack.c.0.s8 %v2408
    %v2410 = vlaneseq
    %v2411 = vshrl.u32 %v2410, 7
    %v2412 = vsub.s32 %v2409, %v2411
    %v2413 = vrot.slane %v2397, %v2412
    %v2415 = vunpack.c.l.s4 1966171168
    %v2416 = vunpack.c.0.s8 %v2415
    %v2417 = vlaneseq
    %v2418 = vshrl.u32 %v2417, 7
    %v2419 = vsub.s32 %v2416, %v2418
    %v2420 = vrot.slane %v2404, %v2419
    %v2422 = vunpack.c.l.s4 1966171168
    %v2423 = vunpack.c.0.s8 %v2422
    %v2424 = vlaneseq
    %v2425 = vshrl.u32 %v2424, 7
    %v2426 = vsub.s32 %v2423, %v2425
    %v2427 = vrot.slane %v2405, %v2426
    %v2429 = vunpack.c.l.s4 1966171168
    %v2430 = vunpack.c.0.s8 %v2429
    %v2431 = vlaneseq
    %v2432 = vshrl.u32 %v2431, 7
    %v2433 = vsub.s32 %v2430, %v2432
    %v2434 = vrot.slane %v2406, %v2433
    %v2435 = vcombine.high %v2413, %v2413
    %v2436 = vcombine.high %v2420, %v2420
    %v2437 = vcombine.high %v2427, %v2427
    %v2438 = vcombine.high %v2434, %v2434
    %v2439 = vlaneseq
    %v2440 = vshrl.u32 %v2439, 7
    %v2441 = vsub.s32 0, %v2440
    %v2442 = vrot.slane %v2037, %v2441
    %s2444 = sor.u32 256, 64
    %2445 = vbcast.lane.b32.xlu0 %v2442, %s2444
    %v2446 = vpop.permute.xlu0 %2445
    %v2447 = vlaneseq
    %v2448 = vshrl.u32 %v2447, 7
    %v2449 = vsub.s32 1, %v2448
    %v2450 = vrot.slane %v2037, %v2449
    %s2452 = sor.u32 256, 64
    %2453 = vbcast.lane.b32.xlu0 %v2450, %s2452
    %v2454 = vpop.permute.xlu0 %2453
    %v2455 = vlaneseq
    %v2456 = vshrl.u32 %v2455, 7
    %v2457 = vsub.s32 2, %v2456
    %v2458 = vrot.slane %v2037, %v2457
    %s2460 = sor.u32 256, 64
    %2461 = vbcast.lane.b32.xlu0 %v2458, %s2460
    %v2462 = vpop.permute.xlu0 %2461
    %v2463 = vlaneseq
    %v2464 = vshrl.u32 %v2463, 7
    %v2465 = vsub.s32 3, %v2464
    %v2466 = vrot.slane %v2037, %v2465
    %s2468 = sor.u32 256, 64
    %2469 = vbcast.lane.b32.xlu0 %v2466, %s2468
    %v2470 = vpop.permute.xlu0 %2469
    %v2471 = vlaneseq
    %v2472 = vshrl.u32 %v2471, 7
    %v2473 = vsub.s32 4, %v2472
    %v2474 = vrot.slane %v2037, %v2473
    %s2476 = sor.u32 256, 64
    %2477 = vbcast.lane.b32.xlu0 %v2474, %s2476
    %v2478 = vpop.permute.xlu0 %2477
    %v2479 = vlaneseq
    %v2480 = vshrl.u32 %v2479, 7
    %v2481 = vsub.s32 5, %v2480
    %v2482 = vrot.slane %v2037, %v2481
    %s2484 = sor.u32 256, 64
    %2485 = vbcast.lane.b32.xlu0 %v2482, %s2484
    %v2486 = vpop.permute.xlu0 %2485
    %v2487 = vlaneseq
    %v2488 = vshrl.u32 %v2487, 7
    %v2489 = vsub.s32 6, %v2488
    %v2490 = vrot.slane %v2037, %v2489
    %s2492 = sor.u32 256, 64
    %2493 = vbcast.lane.b32.xlu0 %v2490, %s2492
    %v2494 = vpop.permute.xlu0 %2493
    %v2495 = vlaneseq
    %v2496 = vshrl.u32 %v2495, 7
    %v2497 = vsub.s32 7, %v2496
    %v2498 = vrot.slane %v2037, %v2497
    %s2500 = sor.u32 256, 64
    %2501 = vbcast.lane.b32.xlu0 %v2498, %s2500
    %v2502 = vpop.permute.xlu0 %2501
    %v2503 = vlaneseq
    %v2504 = vshrl.u32 %v2503, 7
    %v2505 = vsub.s32 0, %v2504
    %v2506 = vrot.slane %v2040, %v2505
    %s2508 = sor.u32 256, 64
    %2509 = vbcast.lane.b32.xlu0 %v2506, %s2508
    %v2510 = vpop.permute.xlu0 %2509
    %v2511 = vlaneseq
    %v2512 = vshrl.u32 %v2511, 7
    %v2513 = vsub.s32 1, %v2512
    %v2514 = vrot.slane %v2040, %v2513
    %s2516 = sor.u32 256, 64
    %2517 = vbcast.lane.b32.xlu0 %v2514, %s2516
    %v2518 = vpop.permute.xlu0 %2517
    %v2519 = vlaneseq
    %v2520 = vshrl.u32 %v2519, 7
    %v2521 = vsub.s32 2, %v2520
    %v2522 = vrot.slane %v2040, %v2521
    %s2524 = sor.u32 256, 64
    %2525 = vbcast.lane.b32.xlu0 %v2522, %s2524
    %v2526 = vpop.permute.xlu0 %2525
    %v2527 = vlaneseq
    %v2528 = vshrl.u32 %v2527, 7
    %v2529 = vsub.s32 3, %v2528
    %v2530 = vrot.slane %v2040, %v2529
    %s2532 = sor.u32 256, 64
    %2533 = vbcast.lane.b32.xlu0 %v2530, %s2532
    %v2534 = vpop.permute.xlu0 %2533
    %v2535 = vlaneseq
    %v2536 = vshrl.u32 %v2535, 7
    %v2537 = vsub.s32 4, %v2536
    %v2538 = vrot.slane %v2040, %v2537
    %s2540 = sor.u32 256, 64
    %2541 = vbcast.lane.b32.xlu0 %v2538, %s2540
    %v2542 = vpop.permute.xlu0 %2541
    %v2543 = vlaneseq
    %v2544 = vshrl.u32 %v2543, 7
    %v2545 = vsub.s32 5, %v2544
    %v2546 = vrot.slane %v2040, %v2545
    %s2548 = sor.u32 256, 64
    %2549 = vbcast.lane.b32.xlu0 %v2546, %s2548
    %v2550 = vpop.permute.xlu0 %2549
    %v2551 = vlaneseq
    %v2552 = vshrl.u32 %v2551, 7
    %v2553 = vsub.s32 6, %v2552
    %v2554 = vrot.slane %v2040, %v2553
    %s2556 = sor.u32 256, 64
    %2557 = vbcast.lane.b32.xlu0 %v2554, %s2556
    %v2558 = vpop.permute.xlu0 %2557
    %v2559 = vlaneseq
    %v2560 = vshrl.u32 %v2559, 7
    %v2561 = vsub.s32 7, %v2560
    %v2562 = vrot.slane %v2040, %v2561
    %s2564 = sor.u32 256, 64
    %2565 = vbcast.lane.b32.xlu0 %v2562, %s2564
    %v2566 = vpop.permute.xlu0 %2565
    %v2567 = vlaneseq
    %v2568 = vshrl.u32 %v2567, 7
    %v2569 = vsub.s32 0, %v2568
    %v2570 = vrot.slane %v2364, %v2569
    %v2571 = vlaneseq
    %v2572 = vshrl.u32 %v2571, 7
    %v2573 = vsub.s32 0, %v2572
    %v2574 = vrot.slane %v2378, %v2573
    %v2575 = vlaneseq
    %v2576 = vshrl.u32 %v2575, 7
    %v2577 = vsub.s32 0, %v2576
    %v2578 = vrot.slane %v2386, %v2577
    %v2579 = vlaneseq
    %v2580 = vshrl.u32 %v2579, 7
    %v2581 = vsub.s32 0, %v2580
    %v2582 = vrot.slane %v2388, %v2581
    %v2583 = vlaneseq
    %v2584 = vshrl.u32 %v2583, 7
    %v2585 = vsub.s32 0, %v2584
    %v2586 = vrot.slane %v2371, %v2585
    %v2587 = vlaneseq
    %v2588 = vshrl.u32 %v2587, 7
    %v2589 = vsub.s32 0, %v2588
    %v2590 = vrot.slane %v2385, %v2589
    %v2591 = vlaneseq
    %v2592 = vshrl.u32 %v2591, 7
    %v2593 = vsub.s32 0, %v2592
    %v2594 = vrot.slane %v2387, %v2593
    %v2595 = vlaneseq
    %v2596 = vshrl.u32 %v2595, 7
    %v2597 = vsub.s32 0, %v2596
    %v2598 = vrot.slane %v2389, %v2597
    %v2599 = vlaneseq
    %v2600 = vshrl.u32 %v2599, 7
    %v2601 = vsub.s32 0, %v2600
    %v2602 = vrot.slane %v2413, %v2601
    %v2603 = vlaneseq
    %v2604 = vshrl.u32 %v2603, 7
    %v2605 = vsub.s32 0, %v2604
    %v2606 = vrot.slane %v2427, %v2605
    %v2607 = vlaneseq
    %v2608 = vshrl.u32 %v2607, 7
    %v2609 = vsub.s32 0, %v2608
    %v2610 = vrot.slane %v2435, %v2609
    %v2611 = vlaneseq
    %v2612 = vshrl.u32 %v2611, 7
    %v2613 = vsub.s32 0, %v2612
    %v2614 = vrot.slane %v2437, %v2613
    %v2615 = vlaneseq
    %v2616 = vshrl.u32 %v2615, 7
    %v2617 = vsub.s32 0, %v2616
    %v2618 = vrot.slane %v2420, %v2617
    %v2619 = vlaneseq
    %v2620 = vshrl.u32 %v2619, 7
    %v2621 = vsub.s32 0, %v2620
    %v2622 = vrot.slane %v2434, %v2621
    %v2623 = vlaneseq
    %v2624 = vshrl.u32 %v2623, 7
    %v2625 = vsub.s32 0, %v2624
    %v2626 = vrot.slane %v2436, %v2625
    %v2627 = vlaneseq
    %v2628 = vshrl.u32 %v2627, 7
    %v2629 = vsub.s32 0, %v2628
    %v2630 = vrot.slane %v2438, %v2629
    %v2647 = vmul.f32 %v2570, %v2446
    %v2648 = vmul.f32 %v2574, %v2454
    %v2649 = vmul.f32 %v2578, %v2462
    %v2650 = vmul.f32 %v2582, %v2470
    %v2651 = vmul.f32 %v2586, %v2478
    %v2652 = vmul.f32 %v2590, %v2486
    %v2653 = vmul.f32 %v2594, %v2494
    %v2654 = vmul.f32 %v2598, %v2502
    %v2655 = vmul.f32 %v2602, %v2510
    %v2656 = vmul.f32 %v2606, %v2518
    %v2657 = vmul.f32 %v2610, %v2526
    %v2658 = vmul.f32 %v2614, %v2534
    %v2659 = vmul.f32 %v2618, %v2542
    %v2660 = vmul.f32 %v2622, %v2550
    %v2661 = vmul.f32 %v2626, %v2558
    %v2662 = vmul.f32 %v2630, %v2566
    %2663 = vst.msk [vmem:[#allocation2 - $0x4] sm:$0xf0] %vm1009, %v2274
    %2664 = vst.msk [vmem:[#allocation2 + $0x4] sm:$0xf] %vm1011, %v2276
    %2665 = vst.msk [vmem:[#allocation2 + $0xc] sm:$0xf0] %vm1009, %v2278
    %2666 = vst.msk [vmem:[#allocation2 + $0x14] sm:$0xf] %vm1011, %v2280
    %2667 = vst.msk [vmem:[#allocation2 + $0x1c] sm:$0xf0] %vm1009, %v2282
    %2668 = vst.msk [vmem:[#allocation2 + $0x24] sm:$0xf] %vm1011, %v2284
    %2669 = vst.msk [vmem:[#allocation2 + $0x2c] sm:$0xf0] %vm1009, %v2286
    %2670 = vst.msk [vmem:[#allocation2 + $0x34] sm:$0xf] %vm1011, %v2288
    %2671 = vst.msk [vmem:[#allocation2 + $0x3c] sm:$0xf0] %vm1009, %v2290
    %2672 = vst.msk [vmem:[#allocation2 + $0x44] sm:$0xf] %vm1011, %v2292
    %2673 = vst.msk [vmem:[#allocation2 + $0x4c] sm:$0xf0] %vm1009, %v2294
    %2674 = vst.msk [vmem:[#allocation2 + $0x54] sm:$0xf] %vm1011, %v2296
    %2675 = vst.msk [vmem:[#allocation2 + $0x5c] sm:$0xf0] %vm1009, %v2298
    %2676 = vst.msk [vmem:[#allocation2 + $0x64] sm:$0xf] %vm1011, %v2300
    %2677 = vst.msk [vmem:[#allocation2 + $0x6c] sm:$0xf0] %vm1009, %v2302
    %2678 = vst.msk [vmem:[#allocation2 + $0x74] sm:$0xf] %vm1011, %v2304
    %2679 = vst.msk [vmem:[#allocation2 + $0x4] sm:$0xf0] %vm1009, %v2306
    %2680 = vst.msk [vmem:[#allocation2 + $0xc] sm:$0xf] %vm1011, %v2308
    %2681 = vst.msk [vmem:[#allocation2 + $0x14] sm:$0xf0] %vm1009, %v2310
    %2682 = vst.msk [vmem:[#allocation2 + $0x1c] sm:$0xf] %vm1011, %v2312
    %2683 = vst.msk [vmem:[#allocation2 + $0x24] sm:$0xf0] %vm1009, %v2314
    %2684 = vst.msk [vmem:[#allocation2 + $0x2c] sm:$0xf] %vm1011, %v2316
    %2685 = vst.msk [vmem:[#allocation2 + $0x34] sm:$0xf0] %vm1009, %v2318
    %2686 = vst.msk [vmem:[#allocation2 + $0x3c] sm:$0xf] %vm1011, %v2320
    %2687 = vst.msk [vmem:[#allocation2 + $0x44] sm:$0xf0] %vm1009, %v2322
    %2688 = vst.msk [vmem:[#allocation2 + $0x4c] sm:$0xf] %vm1011, %v2324
    %2689 = vst.msk [vmem:[#allocation2 + $0x54] sm:$0xf0] %vm1009, %v2326
    %2690 = vst.msk [vmem:[#allocation2 + $0x5c] sm:$0xf] %vm1011, %v2328
    %2691 = vst.msk [vmem:[#allocation2 + $0x64] sm:$0xf0] %vm1009, %v2330
    %2692 = vst.msk [vmem:[#allocation2 + $0x6c] sm:$0xf] %vm1011, %v2332
    %2693 = vst.msk [vmem:[#allocation2 + $0x74] sm:$0xf0] %vm1009, %v2334
    %2694 = vst.msk [vmem:[#allocation2 + $0x7c] sm:$0xf] %vm1011, %v2336
    %2695 = vst.msk [vmem:[#allocation3] sm:$0xff] %vm344, %v2647
    %2696 = vst.msk [vmem:[#allocation3 + $0x10] sm:$0xff] %vm344, %v2648
    %2697 = vst.msk [vmem:[#allocation3 + $0x20] sm:$0xff] %vm344, %v2649
    %2698 = vst.msk [vmem:[#allocation3 + $0x30] sm:$0xff] %vm344, %v2650
    %2699 = vst.msk [vmem:[#allocation3 + $0x40] sm:$0xff] %vm344, %v2651
    %2700 = vst.msk [vmem:[#allocation3 + $0x50] sm:$0xff] %vm344, %v2652
    %2701 = vst.msk [vmem:[#allocation3 + $0x60] sm:$0xff] %vm344, %v2653
    %2702 = vst.msk [vmem:[#allocation3 + $0x70] sm:$0xff] %vm344, %v2654
    %2703 = vst.msk [vmem:[#allocation3 + $0x8] sm:$0xff] %vm344, %v2655
    %2704 = vst.msk [vmem:[#allocation3 + $0x18] sm:$0xff] %vm344, %v2656
    %2705 = vst.msk [vmem:[#allocation3 + $0x28] sm:$0xff] %vm344, %v2657
    %2706 = vst.msk [vmem:[#allocation3 + $0x38] sm:$0xff] %vm344, %v2658
    %2707 = vst.msk [vmem:[#allocation3 + $0x48] sm:$0xff] %vm344, %v2659
    %2708 = vst.msk [vmem:[#allocation3 + $0x58] sm:$0xff] %vm344, %v2660
    %2709 = vst.msk [vmem:[#allocation3 + $0x68] sm:$0xff] %vm344, %v2661
    %2710 = vst.msk [vmem:[#allocation3 + $0x78] sm:$0xff] %vm344, %v2662
    %v2711 = vld [vmem:[#allocation2] sm:$0xff]
    %v2712 = vld [vmem:[#allocation2 + $0x8] sm:$0xff]
    %v2713 = vmul.f32 %v2711, 0.0
    %v2714 = vmul.f32 %v2712, 0.0
    %v2715 = vld [vmem:[#allocation3] sm:$0xff]
    %v2716 = vld [vmem:[#allocation3 + $0x8] sm:$0xff]
    %v2717 = vadd.f32 %v2713, %v2715
    %v2718 = vadd.f32 %v2714, %v2716
    %2719 = vst.msk [vmem:[#allocation4] sm:$0xff] %vm344, %v2717
    %2720 = vst.msk [vmem:[#allocation4 + $0x8] sm:$0xff] %vm344, %v2718
    %v2721 = vld [vmem:[%s1069] sm:$0xff]
    %v2722 = vld [vmem:[%s1069 + $0x8] sm:$0xff]
    %v2723 = vmul.f32 %v2721, %v2717
    %v2724 = vmul.f32 %v2722, %v2718
    %v2725 = vld [vmem:[%s1074] sm:$0xff]
    %v2726 = vld [vmem:[%s1074 + $0x8] sm:$0xff]
    %v2727 = vadd.f32 %v2723, %v2725
    %v2728 = vadd.f32 %v2724, %v2726
    %2729 = vst.msk [vmem:[%s1079] sm:$0xff] %vm344, %v2727
    %2730 = vst.msk [vmem:[%s1079 + $0x8] sm:$0xff] %vm344, %v2728
    %v2731 = vld [vmem:[%s1082] sm:$0xff]
    %v2732 = vld [vmem:[%s1082 + $0x8] sm:$0xff]
    %v2733 = vmul.f32 %v2731, %v2727
    %v2734 = vmul.f32 %v2732, %v2728
    %v2735 = vld [vmem:[%s1087] sm:$0xff]
    %v2736 = vld [vmem:[%s1087 + $0x8] sm:$0xff]
    %v2737 = vadd.f32 %v2733, %v2735
    %v2738 = vadd.f32 %v2734, %v2736
    %2739 = vst.msk [vmem:[%s1092] sm:$0xff] %vm344, %v2737
    %2740 = vst.msk [vmem:[%s1092 + $0x8] sm:$0xff] %vm344, %v2738
    %v2741 = vld [vmem:[%s1095] sm:$0xff]
    %v2742 = vld [vmem:[%s1095 + $0x8] sm:$0xff]
    %v2743 = vmul.f32 %v2741, %v2737
    %v2744 = vmul.f32 %v2742, %v2738
    %v2745 = vld [vmem:[%s1100] sm:$0xff]
    %v2746 = vld [vmem:[%s1100 + $0x8] sm:$0xff]
    %v2747 = vadd.f32 %v2743, %v2745
    %v2748 = vadd.f32 %v2744, %v2746
    %2749 = vst.msk [vmem:[%s1105] sm:$0xff] %vm344, %v2747
    %2750 = vst.msk [vmem:[%s1105 + $0x8] sm:$0xff] %vm344, %v2748
    %v2751 = vld [vmem:[%s1108] sm:$0xff]
    %v2752 = vld [vmem:[%s1108 + $0x8] sm:$0xff]
    %v2753 = vmul.f32 %v2751, %v2747
    %v2754 = vmul.f32 %v2752, %v2748
    %v2755 = vld [vmem:[%s1113] sm:$0xff]
    %v2756 = vld [vmem:[%s1113 + $0x8] sm:$0xff]
    %v2757 = vadd.f32 %v2753, %v2755
    %v2758 = vadd.f32 %v2754, %v2756
    %2759 = vst.msk [vmem:[%s1118] sm:$0xff] %vm344, %v2757
    %2760 = vst.msk [vmem:[%s1118 + $0x8] sm:$0xff] %vm344, %v2758
    %v2761 = vld [vmem:[%s1121] sm:$0xff]
    %v2762 = vld [vmem:[%s1121 + $0x8] sm:$0xff]
    %v2763 = vmul.f32 %v2761, %v2757
    %v2764 = vmul.f32 %v2762, %v2758
    %v2765 = vld [vmem:[%s1126] sm:$0xff]
    %v2766 = vld [vmem:[%s1126 + $0x8] sm:$0xff]
    %v2767 = vadd.f32 %v2763, %v2765
    %v2768 = vadd.f32 %v2764, %v2766
    %2769 = vst.msk [vmem:[%s1131] sm:$0xff] %vm344, %v2767
    %2770 = vst.msk [vmem:[%s1131 + $0x8] sm:$0xff] %vm344, %v2768
    %v2771 = vld [vmem:[%s1134] sm:$0xff]
    %v2772 = vld [vmem:[%s1134 + $0x8] sm:$0xff]
    %v2773 = vmul.f32 %v2771, %v2767
    %v2774 = vmul.f32 %v2772, %v2768
    %v2775 = vld [vmem:[%s1139] sm:$0xff]
    %v2776 = vld [vmem:[%s1139 + $0x8] sm:$0xff]
    %v2777 = vadd.f32 %v2773, %v2775
    %v2778 = vadd.f32 %v2774, %v2776
    %2779 = vst.msk [vmem:[%s1144] sm:$0xff] %vm344, %v2777
    %2780 = vst.msk [vmem:[%s1144 + $0x8] sm:$0xff] %vm344, %v2778
    %v2781 = vld [vmem:[%s1147] sm:$0xff]
    %v2782 = vld [vmem:[%s1147 + $0x8] sm:$0xff]
    %v2783 = vmul.f32 %v2781, %v2777
    %v2784 = vmul.f32 %v2782, %v2778
    %v2785 = vld [vmem:[%s1152] sm:$0xff]
    %v2786 = vld [vmem:[%s1152 + $0x8] sm:$0xff]
    %v2787 = vadd.f32 %v2783, %v2785
    %v2788 = vadd.f32 %v2784, %v2786
    %2789 = vst.msk [vmem:[%s1157] sm:$0xff] %vm344, %v2787
    %2790 = vst.msk [vmem:[%s1157 + $0x8] sm:$0xff] %vm344, %v2788
    %v2791 = vld [vmem:[#allocation4] sm:$0xff]
    %v2792 = vld [vmem:[#allocation4 + $0x8] sm:$0xff]
    %v2793 = vld [vmem:[#allocation4 + $0x10] sm:$0xff]
    %v2794 = vld [vmem:[#allocation4 + $0x18] sm:$0xff]
    %v2795 = vld [vmem:[#allocation4 + $0x20] sm:$0xff]
    %v2796 = vld [vmem:[#allocation4 + $0x28] sm:$0xff]
    %v2797 = vld [vmem:[#allocation4 + $0x30] sm:$0xff]
    %v2798 = vld [vmem:[#allocation4 + $0x38] sm:$0xff]
    %v2799 = vld [vmem:[#allocation4 + $0x40] sm:$0xff]
    %v2800 = vld [vmem:[#allocation4 + $0x48] sm:$0xff]
    %v2801 = vld [vmem:[#allocation4 + $0x50] sm:$0xff]
    %v2802 = vld [vmem:[#allocation4 + $0x58] sm:$0xff]
    %v2803 = vld [vmem:[#allocation4 + $0x60] sm:$0xff]
    %v2804 = vld [vmem:[#allocation4 + $0x68] sm:$0xff]
    %v2805 = vld [vmem:[#allocation4 + $0x70] sm:$0xff]
    %v2806 = vld [vmem:[#allocation4 + $0x78] sm:$0xff]
    %v2807 = vlaneseq
    %v2808 = vshrl.u32 %v2807, 7
    %v2809 = vsub.s32 5, %v2808
    %v2810 = vrot.slane %v1736, %v2809
    %v2811 = vmul.f32 %v1960, %v2810
    %v2812 = vmul.f32 %v1961, %v2810
    %s2814 = sor.u32 256, 72
    %2815 = vbcast.lane.b32.xlu0 %v2442, %s2814
    %v2816 = vpop.permute.xlu0 %2815
    %s2818 = sor.u32 256, 72
    %2819 = vbcast.lane.b32.xlu0 %v2450, %s2818
    %v2820 = vpop.permute.xlu0 %2819
    %s2822 = sor.u32 256, 72
    %2823 = vbcast.lane.b32.xlu0 %v2458, %s2822
    %v2824 = vpop.permute.xlu0 %2823
    %s2826 = sor.u32 256, 72
    %2827 = vbcast.lane.b32.xlu0 %v2466, %s2826
    %v2828 = vpop.permute.xlu0 %2827
    %s2830 = sor.u32 256, 72
    %2831 = vbcast.lane.b32.xlu0 %v2474, %s2830
    %v2832 = vpop.permute.xlu0 %2831
    %s2834 = sor.u32 256, 72
    %2835 = vbcast.lane.b32.xlu0 %v2482, %s2834
    %v2836 = vpop.permute.xlu0 %2835
    %s2838 = sor.u32 256, 72
    %2839 = vbcast.lane.b32.xlu0 %v2490, %s2838
    %v2840 = vpop.permute.xlu0 %2839
    %s2842 = sor.u32 256, 72
    %2843 = vbcast.lane.b32.xlu0 %v2498, %s2842
    %v2844 = vpop.permute.xlu0 %2843
    %s2846 = sor.u32 256, 72
    %2847 = vbcast.lane.b32.xlu0 %v2506, %s2846
    %v2848 = vpop.permute.xlu0 %2847
    %s2850 = sor.u32 256, 72
    %2851 = vbcast.lane.b32.xlu0 %v2514, %s2850
    %v2852 = vpop.permute.xlu0 %2851
    %s2854 = sor.u32 256, 72
    %2855 = vbcast.lane.b32.xlu0 %v2522, %s2854
    %v2856 = vpop.permute.xlu0 %2855
    %s2858 = sor.u32 256, 72
    %2859 = vbcast.lane.b32.xlu0 %v2530, %s2858
    %v2860 = vpop.permute.xlu0 %2859
    %s2862 = sor.u32 256, 72
    %2863 = vbcast.lane.b32.xlu0 %v2538, %s2862
    %v2864 = vpop.permute.xlu0 %2863
    %s2866 = sor.u32 256, 72
    %2867 = vbcast.lane.b32.xlu0 %v2546, %s2866
    %v2868 = vpop.permute.xlu0 %2867
    %s2870 = sor.u32 256, 72
    %2871 = vbcast.lane.b32.xlu0 %v2554, %s2870
    %v2872 = vpop.permute.xlu0 %2871
    %s2874 = sor.u32 256, 72
    %2875 = vbcast.lane.b32.xlu0 %v2562, %s2874
    %v2876 = vpop.permute.xlu0 %2875
    %v2877 = vmul.f32 %v2816, %v2791
    %v2878 = vmul.f32 %v2820, %v2793
    %v2879 = vmul.f32 %v2824, %v2795
    %v2880 = vmul.f32 %v2828, %v2797
    %v2881 = vmul.f32 %v2832, %v2799
    %v2882 = vmul.f32 %v2836, %v2801
    %v2883 = vmul.f32 %v2840, %v2803
    %v2884 = vmul.f32 %v2844, %v2805
    %v2885 = vmul.f32 %v2848, %v2792
    %v2886 = vmul.f32 %v2852, %v2794
    %v2887 = vmul.f32 %v2856, %v2796
    %v2888 = vmul.f32 %v2860, %v2798
    %v2889 = vmul.f32 %v2864, %v2800
    %v2890 = vmul.f32 %v2868, %v2802
    %v2891 = vmul.f32 %v2872, %v2804
    %v2892 = vmul.f32 %v2876, %v2806
    %v2893 = vsel %vm344, %v2877, 0.0
    %v2894 = vrot.slane %v2893, 4
    %v2895 = vadd.f32 %v2893, %v2894
    %v2896 = vrot.slane %v2895, 2
    %v2897 = vadd.f32 %v2895, %v2896
    %v2898 = vrot.slane %v2897, 1
    %v2899 = vadd.f32 %v2897, %v2898
    %v2900 = vsel %vm344, %v2878, 0.0
    %v2901 = vrot.slane %v2900, 4
    %v2902 = vadd.f32 %v2900, %v2901
    %v2903 = vrot.slane %v2902, 2
    %v2904 = vadd.f32 %v2902, %v2903
    %v2905 = vrot.slane %v2904, 1
    %v2906 = vadd.f32 %v2904, %v2905
    %v2907 = vsel %vm344, %v2879, 0.0
    %v2908 = vrot.slane %v2907, 4
    %v2909 = vadd.f32 %v2907, %v2908
    %v2910 = vrot.slane %v2909, 2
    %v2911 = vadd.f32 %v2909, %v2910
    %v2912 = vrot.slane %v2911, 1
    %v2913 = vadd.f32 %v2911, %v2912
    %v2914 = vsel %vm344, %v2880, 0.0
    %v2915 = vrot.slane %v2914, 4
    %v2916 = vadd.f32 %v2914, %v2915
    %v2917 = vrot.slane %v2916, 2
    %v2918 = vadd.f32 %v2916, %v2917
    %v2919 = vrot.slane %v2918, 1
    %v2920 = vadd.f32 %v2918, %v2919
    %v2921 = vsel %vm344, %v2881, 0.0
    %v2922 = vrot.slane %v2921, 4
    %v2923 = vadd.f32 %v2921, %v2922
    %v2924 = vrot.slane %v2923, 2
    %v2925 = vadd.f32 %v2923, %v2924
    %v2926 = vrot.slane %v2925, 1
    %v2927 = vadd.f32 %v2925, %v2926
    %v2928 = vsel %vm344, %v2882, 0.0
    %v2929 = vrot.slane %v2928, 4
    %v2930 = vadd.f32 %v2928, %v2929
    %v2931 = vrot.slane %v2930, 2
    %v2932 = vadd.f32 %v2930, %v2931
    %v2933 = vrot.slane %v2932, 1
    %v2934 = vadd.f32 %v2932, %v2933
    %v2935 = vsel %vm344, %v2883, 0.0
    %v2936 = vrot.slane %v2935, 4
    %v2937 = vadd.f32 %v2935, %v2936
    %v2938 = vrot.slane %v2937, 2
    %v2939 = vadd.f32 %v2937, %v2938
    %v2940 = vrot.slane %v2939, 1
    %v2941 = vadd.f32 %v2939, %v2940
    %v2942 = vsel %vm344, %v2884, 0.0
    %v2943 = vrot.slane %v2942, 4
    %v2944 = vadd.f32 %v2942, %v2943
    %v2945 = vrot.slane %v2944, 2
    %v2946 = vadd.f32 %v2944, %v2945
    %v2947 = vrot.slane %v2946, 1
    %v2948 = vadd.f32 %v2946, %v2947
    %v2949 = vsel %vm344, %v2885, 0.0
    %v2950 = vrot.slane %v2949, 4
    %v2951 = vadd.f32 %v2949, %v2950
    %v2952 = vrot.slane %v2951, 2
    %v2953 = vadd.f32 %v2951, %v2952
    %v2954 = vrot.slane %v2953, 1
    %v2955 = vadd.f32 %v2953, %v2954
    %v2956 = vsel %vm344, %v2886, 0.0
    %v2957 = vrot.slane %v2956, 4
    %v2958 = vadd.f32 %v2956, %v2957
    %v2959 = vrot.slane %v2958, 2
    %v2960 = vadd.f32 %v2958, %v2959
    %v2961 = vrot.slane %v2960, 1
    %v2962 = vadd.f32 %v2960, %v2961
    %v2963 = vsel %vm344, %v2887, 0.0
    %v2964 = vrot.slane %v2963, 4
    %v2965 = vadd.f32 %v2963, %v2964
    %v2966 = vrot.slane %v2965, 2
    %v2967 = vadd.f32 %v2965, %v2966
    %v2968 = vrot.slane %v2967, 1
    %v2969 = vadd.f32 %v2967, %v2968
    %v2970 = vsel %vm344, %v2888, 0.0
    %v2971 = vrot.slane %v2970, 4
    %v2972 = vadd.f32 %v2970, %v2971
    %v2973 = vrot.slane %v2972, 2
    %v2974 = vadd.f32 %v2972, %v2973
    %v2975 = vrot.slane %v2974, 1
    %v2976 = vadd.f32 %v2974, %v2975
    %v2977 = vsel %vm344, %v2889, 0.0
    %v2978 = vrot.slane %v2977, 4
    %v2979 = vadd.f32 %v2977, %v2978
    %v2980 = vrot.slane %v2979, 2
    %v2981 = vadd.f32 %v2979, %v2980
    %v2982 = vrot.slane %v2981, 1
    %v2983 = vadd.f32 %v2981, %v2982
    %v2984 = vsel %vm344, %v2890, 0.0
    %v2985 = vrot.slane %v2984, 4
    %v2986 = vadd.f32 %v2984, %v2985
    %v2987 = vrot.slane %v2986, 2
    %v2988 = vadd.f32 %v2986, %v2987
    %v2989 = vrot.slane %v2988, 1
    %v2990 = vadd.f32 %v2988, %v2989
    %v2991 = vsel %vm344, %v2891, 0.0
    %v2992 = vrot.slane %v2991, 4
    %v2993 = vadd.f32 %v2991, %v2992
    %v2994 = vrot.slane %v2993, 2
    %v2995 = vadd.f32 %v2993, %v2994
    %v2996 = vrot.slane %v2995, 1
    %v2997 = vadd.f32 %v2995, %v2996
    %v2998 = vsel %vm344, %v2892, 0.0
    %v2999 = vrot.slane %v2998, 4
    %v3000 = vadd.f32 %v2998, %v2999
    %v3001 = vrot.slane %v3000, 2
    %v3002 = vadd.f32 %v3000, %v3001
    %v3003 = vrot.slane %v3002, 1
    %v3004 = vadd.f32 %v3002, %v3003
    %v3021 = vsel %vm1390, %v2906, %v2899
    %v3022 = vsel %vm1392, %v2913, %v3021
    %v3023 = vsel %vm1394, %v2920, %v3022
    %v3024 = vsel %vm1396, %v2927, %v3023
    %v3025 = vsel %vm1398, %v2934, %v3024
    %v3026 = vsel %vm1400, %v2941, %v3025
    %v3027 = vsel %vm1402, %v2948, %v3026
    %v3028 = vsel %vm1390, %v2962, %v2955
    %v3029 = vsel %vm1392, %v2969, %v3028
    %v3030 = vsel %vm1394, %v2976, %v3029
    %v3031 = vsel %vm1396, %v2983, %v3030
    %v3032 = vsel %vm1398, %v2990, %v3031
    %v3033 = vsel %vm1400, %v2997, %v3032
    %v3034 = vsel %vm1402, %v3004, %v3033
    %v3037 = vadd.f32 %v2811, %v3027
    %v3038 = vadd.f32 %v2812, %v3034
    %v3039 = vsub.f32 0.0, %v1838
    %v3040 = vsub.f32 0.0, %v1841
    %v3041 = vmul.f32 %v3039, 1.442695
    %v3042 = vpow.pop %v3041
    %v3043 = vmul.f32 %v3040, 1.442695
    %v3044 = vpow.pop %v3043
    %v3045 = vadd.f32 %v3042, 1.0
    %v3046 = vadd.f32 %v3044, 1.0
    %v3047 = vrcp.pop %v3045
    %v3048 = vmul.f32 1.0, %v3047
    %v3049 = vrcp.pop %v3046
    %v3050 = vmul.f32 1.0, %v3049
    %3053 = vrot.lane.b32.xlu0 %v3037, 64
    %v3054 = vpop.permute.xlu0 %3053
    %3055 = vrot.lane.b32.xlu0 %v3038, 64
    %v3056 = vpop.permute.xlu0 %3055
    %v3059 = vmul.f32 %v3048, %v3054
    %v3060 = vmul.f32 %v3050, %v3056
    %v3061 = vld [vmem:[%s1778 + $0x30] sm:$0xf]
    %v3062 = vld [vmem:[%s1778 + $0x34] sm:$0xf]
    %v3063 = vld [vmem:[%s1778 + $0x38] sm:$0xf]
    %v3064 = vld [vmem:[%s1778 + $0x3c] sm:$0xf]
    %v3065 = vld [vmem:[%s1778 + $0x40] sm:$0xf]
    %v3066 = vld [vmem:[%s1778 + $0x44] sm:$0xf]
    %v3067 = vld [vmem:[%s1778 + $0x48] sm:$0xf]
    %v3068 = vld [vmem:[%s1778 + $0x4c] sm:$0xf]
    %v3069 = vpack.c.bf16 %v3060, %v3059
    %v3070 = vlaneseq
    %v3071 = vshrl.u32 %v3070, 7
    %v3072 = vsub.s32 6, %v3071
    %v3073 = vrot.slane %v1736, %v3072
    %3075 = vrot.lane.b32.xlu0 %v3069, 64
    %v3076 = vpop.permute.xlu0 %3075
    %v3085 = vunpack.c.l.b16 %v3061
    %v3086 = vunpack.c.l.b16 %v3062
    %v3087 = vunpack.c.l.b16 %v3063
    %v3088 = vunpack.c.l.b16 %v3064
    %v3089 = vunpack.c.l.b16 %v3065
    %v3090 = vunpack.c.l.b16 %v3066
    %v3091 = vunpack.c.l.b16 %v3067
    %v3092 = vunpack.c.l.b16 %v3068
    %v3093 = vpack.c.b16 %v3086, %v3085
    %v3094 = vpack.c.b16 %v3088, %v3087
    %v3095 = vpack.c.b16 %v3090, %v3089
    %v3096 = vpack.c.b16 %v3092, %v3091
    %v3102 = vsel %vm344, %v3076, 0
    %3104 = vmatprep.subr.bf16.mxu0 0
    %3105 = vmatpush1.bf16.msra.mxu0 %v3093
    %3106 = vmatprep.subr.bf16.mxu0 0
    %3107 = vmatpush1.bf16.msra.mxu0 %v3094
    %3108 = vmatprep.subr.bf16.mxu0 0
    %3109 = vmatpush1.bf16.msra.mxu0 %v3095
    %3110 = vmatprep.subr.bf16.mxu0 0
    %3111 = vmatpush1.bf16.msra.mxu0 %v3096
    %3112 = vmatprep.subr.bf16.mxu0 0
    %3113 = vmatpush1.bf16.msra.mxu0 0
    %3114 = vmatprep.subr.bf16.mxu0 0
    %3115 = vmatpush1.bf16.msra.mxu0 0
    %3116 = vmatprep.subr.bf16.mxu0 0
    %3117 = vmatpush1.bf16.msra.mxu0 0
    %3118 = vmatprep.subr.bf16.mxu0 0
    %3119 = vmatpush1.bf16.msra.mxu0 0
    %3120 = vmatprep.subr.bf16.mxu0 0
    %3121 = vmatpush1.bf16.msra.mxu0 0
    %3122 = vmatprep.subr.bf16.mxu0 0
    %3123 = vmatpush1.bf16.msra.mxu0 0
    %3124 = vmatprep.subr.bf16.mxu0 0
    %3125 = vmatpush1.bf16.msra.mxu0 0
    %3126 = vmatprep.subr.bf16.mxu0 0
    %3127 = vmatpush1.bf16.msra.mxu0 0
    %3128 = vmatprep.subr.bf16.mxu0 0
    %3129 = vmatpush1.bf16.msra.mxu0 0
    %3130 = vmatprep.subr.bf16.mxu0 0
    %3131 = vmatpush1.bf16.msra.mxu0 0
    %3132 = vmatprep.subr.bf16.mxu0 0
    %3133 = vmatpush1.bf16.msra.mxu0 0
    %3134 = vmatprep.subr.bf16.mxu0 0
    %3135 = vmatpush1.bf16.msra.mxu0 0
    %3136 = vmatprep.mubr.bf16.mxu0 0
    %3137 = vmatmul.mubr.bf16.gmra.mrb[0].mxu0 %v3102
    %v3138 = vpop.f32.mrb[0].mxu0
    %v3139 = vadd.f32 %v3073, %v3138
    %v3140 = vpop.f32.mrb[0].mxu0
    %v3141 = vpop.f32.mrb[0].mxu0
    %v3142 = vadd.f32 %v3073, %v3141
    %v3143 = vpop.f32.mrb[0].mxu0
    %3144 = vdwg.mxu0
    %v3145 = vadd.f32 %v3139, %v1733
    %v3146 = vadd.f32 %v3142, %v1734
    %v3147 = vsel %vm41, %v3145, 0.0
    %3148 = vadd.xlane.f32.xlu0 %v3147
    %v3149 = vpop.xlane.xlu0 %3148
    %v3150 = vsel %vm41, %v3146, 0.0
    %3151 = vadd.xlane.f32.xlu0 %v3150
    %v3152 = vpop.xlane.xlu0 %3151
    %v3153 = vmul.f32 %v3149, %v48
    %v3154 = vmul.f32 %v3152, %v48
    %v3155 = vsub.f32 %v3145, %v3153
    %v3156 = vsub.f32 %v3146, %v3154
    %v3157 = vmul.f32 %v3155, %v3155
    %v3158 = vmul.f32 %v3156, %v3156
    %v3159 = vsel %vm41, %v3157, 0.0
    %3160 = vadd.xlane.f32.xlu0 %v3159
    %v3161 = vpop.xlane.xlu0 %3160
    %v3162 = vsel %vm41, %v3158, 0.0
    %3163 = vadd.xlane.f32.xlu0 %v3162
    %v3164 = vpop.xlane.xlu0 %3163
    %v3165 = vmul.f32 %v3161, %v48
    %v3166 = vmul.f32 %v3164, %v48
    %v3167 = vadd.f32 %v3165, 1e-05
    %v3168 = vadd.f32 %v3166, 1e-05
    %v3169 = vrsqrt.pop %v3167
    %v3170 = vrsqrt.pop %v3168
    %v3171 = vmul.f32 %v3155, %v3169
    %v3172 = vmul.f32 %v3156, %v3170
    %v3173 = vlaneseq
    %v3174 = vshrl.u32 %v3173, 7
    %v3175 = vsub.s32 4, %v3174
    %v3176 = vrot.slane %v1738, %v3175
    %v3177 = vmul.f32 %v3171, %v3176
    %v3178 = vmul.f32 %v3172, %v3176
    %v3179 = vlaneseq
    %v3180 = vshrl.u32 %v3179, 7
    %v3181 = vsub.s32 6, %v3180
    %v3182 = vrot.slane %v1738, %v3181
    %v3183 = vadd.f32 %v3177, %v3182
    %v3184 = vadd.f32 %v3178, %v3182
    %v3185 = vld [vmem:[%s1778 + $0x30] sm:$0xf]
    %v3186 = vld [vmem:[%s1778 + $0x34] sm:$0xf]
    %v3187 = vld [vmem:[%s1778 + $0x38] sm:$0xf]
    %v3188 = vld [vmem:[%s1778 + $0x3c] sm:$0xf]
    %v3189 = vpack.c.bf16 %v3184, %v3183
    %v3190 = vlaneseq
    %v3191 = vshrl.u32 %v3190, 7
    %v3192 = vsub.s32 0, %v3191
    %v3193 = vrot.slane %v1739, %v3192
    %v3198 = vunpack.c.l.b16 %v3185
    %v3199 = vunpack.c.l.b16 %v3186
    %v3200 = vunpack.c.l.b16 %v3187
    %v3201 = vunpack.c.l.b16 %v3188
    %v3202 = vpack.c.b16 %v3199, %v3198
    %v3203 = vpack.c.b16 %v3201, %v3200
    %3204 = vrot.lane.b32.xlu0 %v3202, 64
    %v3205 = vpop.permute.xlu0 %3204
    %3206 = vrot.lane.b32.xlu0 %v3203, 64
    %v3207 = vpop.permute.xlu0 %3206
    %v3211 = vsel %vm41, %v3189, 0
    %3213 = vmatprep.subr.bf16.mxu0 0
    %3214 = vmatpush1.bf16.msra.mxu0 %v3205
    %3215 = vmatprep.subr.bf16.mxu0 0
    %3216 = vmatpush1.bf16.msra.mxu0 %v3207
    %3217 = vmatprep.subr.bf16.mxu0 0
    %3218 = vmatpush1.bf16.msra.mxu0 0
    %3219 = vmatprep.subr.bf16.mxu0 0
    %3220 = vmatpush1.bf16.msra.mxu0 0
    %3221 = vmatprep.subr.bf16.mxu0 0
    %3222 = vmatpush1.bf16.msra.mxu0 0
    %3223 = vmatprep.subr.bf16.mxu0 0
    %3224 = vmatpush1.bf16.msra.mxu0 0
    %3225 = vmatprep.subr.bf16.mxu0 0
    %3226 = vmatpush1.bf16.msra.mxu0 0
    %3227 = vmatprep.subr.bf16.mxu0 0
    %3228 = vmatpush1.bf16.msra.mxu0 0
    %3229 = vmatprep.subr.bf16.mxu0 0
    %3230 = vmatpush1.bf16.msra.mxu0 0
    %3231 = vmatprep.subr.bf16.mxu0 0
    %3232 = vmatpush1.bf16.msra.mxu0 0
    %3233 = vmatprep.subr.bf16.mxu0 0
    %3234 = vmatpush1.bf16.msra.mxu0 0
    %3235 = vmatprep.subr.bf16.mxu0 0
    %3236 = vmatpush1.bf16.msra.mxu0 0
    %3237 = vmatprep.subr.bf16.mxu0 0
    %3238 = vmatpush1.bf16.msra.mxu0 0
    %3239 = vmatprep.subr.bf16.mxu0 0
    %3240 = vmatpush1.bf16.msra.mxu0 0
    %3241 = vmatprep.subr.bf16.mxu0 0
    %3242 = vmatpush1.bf16.msra.mxu0 0
    %3243 = vmatprep.subr.bf16.mxu0 0
    %3244 = vmatpush1.bf16.msra.mxu0 0
    %3245 = vmatprep.mubr.bf16.mxu0 0
    %3246 = vmatmul.mubr.bf16.gmra.mrb[0].mxu0 %v3211
    %v3247 = vpop.f32.mrb[0].mxu0
    %v3248 = vadd.f32 %v3193, %v3247
    %v3249 = vpop.f32.mrb[0].mxu0
    %v3250 = vpop.f32.mrb[0].mxu0
    %v3251 = vadd.f32 %v3193, %v3250
    %v3252 = vpop.f32.mrb[0].mxu0
    %3253 = vdwg.mxu0
    %v3254 = vtanh.pop %v3248
    %v3255 = vtanh.pop %v3251
    %v3256 = vmul.f32 %v3254, 0.8333333
    %v3257 = vmul.f32 %v3255, 0.8333333
    %v3258 = vadd.f32 %v3145, %v3256
    %v3259 = vadd.f32 %v3146, %v3257
    %v3260 = vsel %vm41, %v3258, 0.0
    %3261 = vadd.xlane.f32.xlu0 %v3260
    %v3262 = vpop.xlane.xlu0 %3261
    %v3263 = vsel %vm41, %v3259, 0.0
    %3264 = vadd.xlane.f32.xlu0 %v3263
    %v3265 = vpop.xlane.xlu0 %3264
    %v3266 = vmul.f32 %v3262, %v48
    %v3267 = vmul.f32 %v3265, %v48
    %v3268 = vsub.f32 %v3258, %v3266
    %v3269 = vsub.f32 %v3259, %v3267
    %v3270 = vmul.f32 %v3268, %v3268
    %v3271 = vmul.f32 %v3269, %v3269
    %v3272 = vsel %vm41, %v3270, 0.0
    %3273 = vadd.xlane.f32.xlu0 %v3272
    %v3274 = vpop.xlane.xlu0 %3273
    %v3275 = vsel %vm41, %v3271, 0.0
    %3276 = vadd.xlane.f32.xlu0 %v3275
    %v3277 = vpop.xlane.xlu0 %3276
    %v3278 = vmul.f32 %v3274, %v48
    %v3279 = vmul.f32 %v3277, %v48
    %v3280 = vadd.f32 %v3278, 1e-05
    %v3281 = vadd.f32 %v3279, 1e-05
    %v3282 = vrsqrt.pop %v3280
    %v3283 = vrsqrt.pop %v3281
    %v3284 = vmul.f32 %v3268, %v3282
    %v3285 = vmul.f32 %v3269, %v3283
    %v3286 = vlaneseq
    %v3287 = vshrl.u32 %v3286, 7
    %v3288 = vsub.s32 5, %v3287
    %v3289 = vrot.slane %v1738, %v3288
    %v3290 = vmul.f32 %v3284, %v3289
    %v3291 = vmul.f32 %v3285, %v3289
    %v3292 = vlaneseq
    %v3293 = vshrl.u32 %v3292, 7
    %v3294 = vsub.s32 7, %v3293
    %v3295 = vrot.slane %v1738, %v3294
    %v3296 = vadd.f32 %v3290, %v3295
    %v3297 = vadd.f32 %v3291, %v3295
    %v3298 = vpack.c.bf16 %v3297, %v3296
    %v3299 = vlaneseq
    %v3300 = vshrl.u32 %v3299, 7
    %v3301 = vsub.s32 1, %v3300
    %v3302 = vrot.slane %v1739, %v3301
    %3303 = vrot.lane.b32.xlu0 %v3095, 64
    %v3304 = vpop.permute.xlu0 %3303
    %3305 = vrot.lane.b32.xlu0 %v3096, 64
    %v3306 = vpop.permute.xlu0 %3305
    %v3310 = vsel %vm41, %v3298, 0
    %3312 = vmatprep.subr.bf16.mxu0 0
    %3313 = vmatpush1.bf16.msra.mxu0 %v3304
    %3314 = vmatprep.subr.bf16.mxu0 0
    %3315 = vmatpush1.bf16.msra.mxu0 %v3306
    %3316 = vmatprep.subr.bf16.mxu0 0
    %3317 = vmatpush1.bf16.msra.mxu0 0
    %3318 = vmatprep.subr.bf16.mxu0 0
    %3319 = vmatpush1.bf16.msra.mxu0 0
    %3320 = vmatprep.subr.bf16.mxu0 0
    %3321 = vmatpush1.bf16.msra.mxu0 0
    %3322 = vmatprep.subr.bf16.mxu0 0
    %3323 = vmatpush1.bf16.msra.mxu0 0
    %3324 = vmatprep.subr.bf16.mxu0 0
    %3325 = vmatpush1.bf16.msra.mxu0 0
    %3326 = vmatprep.subr.bf16.mxu0 0
    %3327 = vmatpush1.bf16.msra.mxu0 0
    %3328 = vmatprep.subr.bf16.mxu0 0
    %3329 = vmatpush1.bf16.msra.mxu0 0
    %3330 = vmatprep.subr.bf16.mxu0 0
    %3331 = vmatpush1.bf16.msra.mxu0 0
    %3332 = vmatprep.subr.bf16.mxu0 0
    %3333 = vmatpush1.bf16.msra.mxu0 0
    %3334 = vmatprep.subr.bf16.mxu0 0
    %3335 = vmatpush1.bf16.msra.mxu0 0
    %3336 = vmatprep.subr.bf16.mxu0 0
    %3337 = vmatpush1.bf16.msra.mxu0 0
    %3338 = vmatprep.subr.bf16.mxu0 0
    %3339 = vmatpush1.bf16.msra.mxu0 0
    %3340 = vmatprep.subr.bf16.mxu0 0
    %3341 = vmatpush1.bf16.msra.mxu0 0
    %3342 = vmatprep.subr.bf16.mxu0 0
    %3343 = vmatpush1.bf16.msra.mxu0 0
    %3344 = vmatprep.mubr.bf16.mxu0 0
    %3345 = vmatmul.mubr.bf16.gmra.mrb[0].mxu0 %v3310
    %v3346 = vpop.f32.mrb[0].mxu0
    %v3347 = vadd.f32 %v3302, %v3346
    %v3348 = vpop.f32.mrb[0].mxu0
    %v3349 = vpop.f32.mrb[0].mxu0
    %v3350 = vadd.f32 %v3302, %v3349
    %v3351 = vpop.f32.mrb[0].mxu0
    %3352 = vdwg.mxu0
    %v3353 = vtanh.pop %v3347
    %v3354 = vtanh.pop %v3350
    %v3355 = vmul.f32 %v3353, 0.41666666
    %v3356 = vmul.f32 %v3354, 0.41666666
    %v3357 = vadd.f32 %v3258, %v3355
    %v3358 = vadd.f32 %v3259, %v3356
    %v3359 = vld [vmem:[%s5] sm:$0x1]
    %v3360 = vld [vmem:[%s5 + $0x1] sm:$0x1]
    %v3361 = vsel %vm41, %v3357, 0.0
    %3362 = vadd.xlane.f32.xlu0 %v3361
    %v3363 = vpop.xlane.xlu0 %3362
    %v3364 = vsel %vm41, %v3358, 0.0
    %3365 = vadd.xlane.f32.xlu0 %v3364
    %v3366 = vpop.xlane.xlu0 %3365
    %v3367 = vmul.f32 %v3363, %v48
    %v3368 = vmul.f32 %v3366, %v48
    %v3369 = vsub.f32 %v3357, %v3367
    %v3370 = vsub.f32 %v3358, %v3368
    %v3371 = vmul.f32 %v3369, %v3369
    %v3372 = vmul.f32 %v3370, %v3370
    %v3373 = vsel %vm41, %v3371, 0.0
    %3374 = vadd.xlane.f32.xlu0 %v3373
    %v3375 = vpop.xlane.xlu0 %3374
    %v3376 = vsel %vm41, %v3372, 0.0
    %3377 = vadd.xlane.f32.xlu0 %v3376
    %v3378 = vpop.xlane.xlu0 %3377
    %v3379 = vmul.f32 %v3375, %v48
    %v3380 = vmul.f32 %v3378, %v48
    %v3381 = vadd.f32 %v3379, 1e-05
    %v3382 = vadd.f32 %v3380, 1e-05
    %v3383 = vrsqrt.pop %v3381
    %v3384 = vrsqrt.pop %v3382
    %v3385 = vmul.f32 %v3369, %v3383
    %v3386 = vmul.f32 %v3370, %v3384
    %v3387 = vlaneseq
    %v3388 = vshrl.u32 %v3387, 7
    %v3389 = vsub.s32 0, %v3388
    %v3390 = vrot.slane %v3359, %v3389
    %v3391 = vmul.f32 %v3385, %v3390
    %v3392 = vmul.f32 %v3386, %v3390
    %v3393 = vlaneseq
    %v3394 = vshrl.u32 %v3393, 7
    %v3395 = vsub.s32 0, %v3394
    %v3396 = vrot.slane %v3360, %v3395
    %v3397 = vadd.f32 %v3391, %v3396
    %v3398 = vadd.f32 %v3392, %v3396
    %3399 = vst.msk [vmem:[#allocation5] sm:$0xff] %vm41, %v3397
    %3400 = vst.msk [vmem:[#allocation5 + $0x8] sm:$0xff] %vm41, %v3398
    // Predicated region
    $region26: #{fractal_mamba_forward.1} parent=1 // pred_check
      _
    $region27: #{fractal_mamba_forward.1} parent=1 // pred_check_branch
      %3402 = sbr.rel (0) target = $region29
    $region28: #{fractal_mamba_forward.1} parent=1 // pred_region
      %s3404 = ssub.s32 256, 256
      %3405 = vsyncadd [#allocation6], %s3404
      %s3406 = sshll.u32 [#allocation5], 4
      %s3407 = int_to_ptr.vmem [resolvable:$true] %s3406
      %3412 = dma.vmem_to_hbm [thread:$0]  %s3407, 256, %s6, [#allocation6], 128, 128, 8
    $region29: #{fractal_mamba_forward.1} parent=1 // pred_fallthru
      _
    // Predicated region
    $region30: #{fractal_mamba_forward.1} parent=1 // pred_check
      _
    $region31: #{fractal_mamba_forward.1} parent=1 // pred_check_branch
      %3414 = sbr.rel (0) target = $region33
    $region32: #{fractal_mamba_forward.1} parent=1 // pred_region
      %3415 = dma.done [#allocation6], 256
    $region33: #{fractal_mamba_forward.1} parent=1 // pred_fallthru
      _
    %3416 = vsyncpa [#allocation6], 1

</llo_original>
